<compile_context>
chip_gen: v7x
topology: tpu7x:2x2x1
jax: 0.10.0
libtpu: 0.0.40
codegen_flags: <defaults>
</compile_context>

<pallas_src>
import numpy as np
import jax
import jax.numpy as jnp
from jax.experimental import pallas as pl
from jax.experimental.pallas import tpu as pltpu

K = 3            # kernel size
K_TAPS = K * K   # 9
CPAD = 8         # sublane-aligned padding for the narrow internal channel dims


# ---------------------------------------------------------------------------
# Single fused Pallas kernel
# inputs : x(16,512) s1(VMEM,bf16) s2/s3/s4(ANY,bf16) wpack(40,144) vecs(16,10)
# scratch: VMEM buffers for s2/s3/s4 + DMA semaphores
# ---------------------------------------------------------------------------
def _fused_ae_kernel(x_ref, s1_ref, s2_hbm, s3_hbm, s4_hbm, w_ref, v_ref,
                     o_ref,
                     s2_buf, s3_buf, s4_buf, sem):
    # Kick off the later-layer gather-matrix DMAs so they overlap layer-1
    # compute (S1 is auto-DMA'd into VMEM before the kernel body starts).
    cp2 = pltpu.make_async_copy(s2_hbm, s2_buf, sem.at[0])
    cp3 = pltpu.make_async_copy(s3_hbm, s3_buf, sem.at[1])
    cp4 = pltpu.make_async_copy(s4_hbm, s4_buf, sem.at[2])
    cp2.start()
    cp3.start()
    cp4.start()

    wv = w_ref[...]          # (40, 144) packed conv weight matrices (f32)
    vv = v_ref[...]          # (16, 10)  packed bias / gamma / beta columns

    def conv_layer(a, s_bf16, w, b):
        # a: (Cin_pad, M_in) f32   s: (M_in, 9*M_out) bf16 {0,1}
        # w: (Cout_pad, 9*Cin_pad) f32   b: (Cout_pad, 1) f32
        g = jnp.dot(a, s_bf16.astype(jnp.float32),
                    preferred_element_type=jnp.float32)        # (Cin_pad, 9*M_out)
        m_out = g.shape[1] // K_TAPS
        gs = jnp.concatenate(                                   # (9*Cin_pad, M_out)
            [g[:, t * m_out:(t + 1) * m_out] for t in range(K_TAPS)], axis=0)
        return jnp.dot(w, gs, preferred_element_type=jnp.float32) + b

    def bn_relu(z, gamma, beta):
        # training-mode BatchNorm: per-channel (row) stats over lanes (= N*H*W)
        mean = jnp.mean(z, axis=1, keepdims=True)
        var = jnp.mean(jnp.square(z - mean), axis=1, keepdims=True)
        y = (z - mean) * jax.lax.rsqrt(var + 1e-5) * gamma + beta
        return jnp.maximum(y, 0.0)

    def col(j, c):
        return vv[0:c, j:j + 1]

    # encoder layer 1: Conv(16 -> 2 pad 8, s2, p1) + BN + ReLU      -> (8, 128)
    a = bn_relu(conv_layer(x_ref[...], s1_ref[...], wv[0:8, 0:144], col(0, 8)),
                col(1, 8), col(2, 8))

    # encoder layer 2: Conv(2 -> 4 pad 8, s2, p1) + BN + ReLU       -> (8, 32)
    cp2.wait()
    a = bn_relu(conv_layer(a, s2_buf[...], wv[8:16, 0:72], col(3, 8)),
                col(4, 8), col(5, 8))

    # decoder layer 1: ConvT(4 -> 2 pad 8, s2, p1, op1) + BN + ReLU -> (8, 128)
    cp3.wait()
    a = bn_relu(conv_layer(a, s3_buf[...], wv[16:24, 0:72], col(6, 8)),
                col(7, 8), col(8, 8))

    # decoder layer 2: ConvT(2 -> 16, s2, p1, op1)                  -> (16, 512)
    cp4.wait()
    o_ref[...] = conv_layer(a, s4_buf[...], wv[24:40, 0:72], col(9, 16))


# ---------------------------------------------------------------------------
# Host-side constant preparation (pure indexing; built once, outside the jit)
# ---------------------------------------------------------------------------
def _conv_gather(n_batch, hin, win, hout, wout, k, stride, pad):
    """0/1 matrix S: (A @ S)[ci, t*M_out+m_out] = x[ci, n, oh*s-p+kh, ow*s-p+kw]."""
    m_in, m_out = n_batch * hin * win, n_batch * hout * wout
    s = np.zeros((m_in, k * k * m_out), np.float32)
    for n in range(n_batch):
        for oh in range(hout):
            for ow in range(wout):
                mo = (n * hout + oh) * wout + ow
                for kh in range(k):
                    ih = oh * stride - pad + kh
                    if not (0 <= ih < hin):
                        continue
                    for kw in range(k):
                        iw = ow * stride - pad + kw
                        if 0 <= iw < win:
                            mi = (n * hin + ih) * win + iw
                            s[mi, (kh * k + kw) * m_out + mo] = 1.0
    return s


def _convT_gather(n_batch, hin, win, hout, wout, k, stride, pad):
    """0/1 matrix for ConvTranspose2d: input (ih,iw) read at oh = ih*s - p + kh."""
    m_in, m_out = n_batch * hin * win, n_batch * hout * wout
    s = np.zeros((m_in, k * k * m_out), np.float32)
    for n in range(n_batch):
        for oh in range(hout):
            for ow in range(wout):
                mo = (n * hout + oh) * wout + ow
                for kh in range(k):
                    ph = oh + pad - kh
                    if ph % stride or not (0 <= ph // stride < hin):
                        continue
                    for kw in range(k):
                        pw = ow + pad - kw
                        if pw % stride or not (0 <= pw // stride < win):
                            continue
                        mi = (n * hin + ph // stride) * win + pw // stride
                        s[mi, (kh * k + kw) * m_out + mo] = 1.0
    return s


def _conv_wmat(w):    # torch Conv2d weight (Cout, Cin, k, k) -> (Cout, k*k*Cin)
    co, ci, k, _ = w.shape
    return jnp.transpose(w, (0, 2, 3, 1)).reshape(co, k * k * ci)


def _convT_wmat(w):   # torch ConvTranspose2d weight (Cin, Cout, k, k) -> (Cout, k*k*Cin)
    ci, co, k, _ = w.shape
    return jnp.transpose(w, (1, 2, 3, 0)).reshape(co, k * k * ci)


def _pad_wmat(w_mat, cout_pad, cin, cin_pad):
    """(Cout, 9*Cin) -> (Cout_pad, 9*Cin_pad); padded rows/cols are zero."""
    cout = w_mat.shape[0]
    w3 = w_mat.reshape(cout, K_TAPS, cin)
    w3 = jnp.pad(w3, ((0, cout_pad - cout), (0, 0), (0, cin_pad - cin)))
    return w3.reshape(cout_pad, K_TAPS * cin_pad)


def build_kernel_constants(params, batch, c_in=16, h=16, w=16, k=3):
    h1, w1 = h // 2, w // 2
    h2, w2 = h // 4, w // 4
    nf = params["enc_w1"].shape[0]     # 2
    nfe = params["enc_w2"].shape[0]    # 4

    # 0/1 spatial gather matrices, stored bf16 (exact) to halve the dominant DMA.
    s1 = jnp.asarray(_conv_gather(batch, h, w, h1, w1, k, 2, 1), jnp.bfloat16)
    s2 = jnp.asarray(_conv_gather(batch, h1, w1, h2, w2, k, 2, 1), jnp.bfloat16)
    s3 = jnp.asarray(_convT_gather(batch, h2, w2, h1, w1, k, 2, 1), jnp.bfloat16)
    s4 = jnp.asarray(_convT_gather(batch, h1, w1, h, w, k, 2, 1), jnp.bfloat16)

    # Weight matrices with channel dims padded to 8 (sublane-aligned tap blocks).
    w1m = _pad_wmat(_conv_wmat(params["enc_w1"]), CPAD, c_in, c_in)    # (8, 144)
    w2m = _pad_wmat(_conv_wmat(params["enc_w2"]), CPAD, nf, CPAD)      # (8, 72)
    w3m = _pad_wmat(_convT_wmat(params["dec_w1"]), CPAD, nfe, CPAD)    # (8, 72)
    w4m = _pad_wmat(_convT_wmat(params["dec_w2"]), c_in, nf, CPAD)     # (16, 72)

    wpack = jnp.zeros((40, K_TAPS * c_in), jnp.float32)                # (40, 144)
    wpack = wpack.at[0:8, 0:144].set(w1m)
    wpack = wpack.at[8:16, 0:72].set(w2m)
    wpack = wpack.at[16:24, 0:72].set(w3m)
    wpack = wpack.at[24:40, 0:72].set(w4m)

    cols = [params["enc_b1"], params["enc_g1"], params["enc_be1"],
            params["enc_b2"], params["enc_g2"], params["enc_be2"],
            params["dec_b1"], params["dec_g1"], params["dec_be1"],
            params["dec_b2"]]
    vecs = jnp.zeros((16, len(cols)), jnp.float32)
    for j, v in enumerate(cols):
        vecs = vecs.at[:v.shape[0], j].set(v.astype(jnp.float32))

    return (s1, s2, s3, s4, wpack, vecs)


# ---------------------------------------------------------------------------
# Forward: NCHW wrapper around the single pallas_call (layout plumbing only)
# ---------------------------------------------------------------------------
@jax.jit
def autoencoder_forward(x_nchw, consts):
    s1, s2, s3, s4, wpack, vecs = consts
    n, c, h, w = x_nchw.shape
    m = n * h * w
    x2d = jnp.transpose(x_nchw.astype(jnp.float32), (1, 0, 2, 3)).reshape(c, m)

    vmem = pl.BlockSpec(memory_space=pltpu.MemorySpace.VMEM)
    any_spec = pl.BlockSpec(memory_space=pl.ANY)

    # Advisory cost estimate (matmul FLOPs + total bytes moved).
    m1, m2 = s1.shape[1] // K_TAPS, s2.shape[1] // K_TAPS
    m3, m4 = s3.shape[1] // K_TAPS, s4.shape[1] // K_TAPS
    flops = 2 * (c * s1.shape[0] * s1.shape[1]
                 + CPAD * (s2.shape[0] * s2.shape[1]
                           + s3.shape[0] * s3.shape[1]
                           + s4.shape[0] * s4.shape[1]))
    flops += 2 * (CPAD * (K_TAPS * c) * m1 + CPAD * (K_TAPS * CPAD) * m2
                  + CPAD * (K_TAPS * CPAD) * m3 + c * (K_TAPS * CPAD) * m4)
    io_bytes = sum(int(np.prod(a.shape)) * a.dtype.itemsize
                   for a in (x2d, s1, s2, s3, s4, wpack, vecs)) + c * m * 4

    out2d = pl.pallas_call(
        _fused_ae_kernel,
        out_shape=jax.ShapeDtypeStruct((c, m), jnp.float32),
        in_specs=[vmem, vmem, any_spec, any_spec, any_spec, vmem, vmem],
        out_specs=vmem,
        scratch_shapes=[
            pltpu.VMEM(s2.shape, s2.dtype),
            pltpu.VMEM(s3.shape, s3.dtype),
            pltpu.VMEM(s4.shape, s4.dtype),
            pltpu.SemaphoreType.DMA((3,)),
        ],
        compiler_params=pltpu.CompilerParams(vmem_limit_bytes=32 * 1024 * 1024),
        cost_estimate=pl.CostEstimate(flops=int(flops), transcendentals=32,
                                      bytes_accessed=int(io_bytes)),
    )(x2d, s1, s2, s3, s4, wpack, vecs)
    return jnp.transpose(out2d.reshape(c, n, h, w), (1, 0, 2, 3))


# ---------------------------------------------------------------------------
# Parameters (forward semantics match the torch module; exact torch default
# ConvTranspose2d init RNG is not replicated — it does not affect the math)
# ---------------------------------------------------------------------------
def init_params(key, c_in=16, compression_ratio=8, kernel_size=3, expansion=2):
    nf = int(round(c_in / compression_ratio))   # 2
    nfe = nf * expansion                        # 4
    k = kernel_size
    keys = jax.random.split(key, 6)

    def kaiming(kk, shape):                     # kaiming_normal_, mode='fan_out'
        fan_out = shape[0] * shape[2] * shape[3]
        return jax.random.normal(kk, shape, jnp.float32) * jnp.sqrt(2.0 / fan_out)

    return {
        "enc_w1": kaiming(keys[0], (nf, c_in, k, k)),
        "enc_b1": jnp.zeros((nf,), jnp.float32),
        "enc_g1": jnp.ones((nf,), jnp.float32),
        "enc_be1": jnp.zeros((nf,), jnp.float32),
        "enc_w2": kaiming(keys[1], (nfe, nf, k, k)),
        "enc_b2": jnp.zeros((nfe,), jnp.float32),
        "enc_g2": jnp.ones((nfe,), jnp.float32),
        "enc_be2": jnp.zeros((nfe,), jnp.float32),
        "dec_w1": jax.random.normal(keys[2], (nfe, nf, k, k), jnp.float32) * 0.2,
        "dec_b1": jax.random.normal(keys[3], (nf,), jnp.float32) * 0.02,
        "dec_g1": jnp.ones((nf,), jnp.float32),
        "dec_be1": jnp.zeros((nf,), jnp.float32),
        "dec_w2": jax.random.normal(keys[4], (nf, c_in, k, k), jnp.float32) * 0.2,
        "dec_b2": jax.random.normal(keys[5], (c_in,), jnp.float32) * 0.02,
    }


# ---------------------------------------------------------------------------
# Pure-JAX reference (for in-script correctness check only)
# ---------------------------------------------------------------------------
def reference_forward(x, p):
    hi = jax.lax.Precision.HIGHEST

    def conv(x, w, b, s, pad):
        y = jax.lax.conv_general_dilated(x, w, (s, s), ((pad, pad), (pad, pad)),
                                         dimension_numbers=('NCHW', 'OIHW', 'NCHW'),
                                         precision=hi)
        return y + b[None, :, None, None]

    def convT(x, w, b, s, pad, op):
        k = w.shape[2]
        w2 = jnp.transpose(w[:, :, ::-1, ::-1], (1, 0, 2, 3))
        y = jax.lax.conv_general_dilated(
            x, w2, (1, 1), ((k - 1 - pad, k - 1 - pad + op),) * 2,
            lhs_dilation=(s, s), dimension_numbers=('NCHW', 'OIHW', 'NCHW'),
            precision=hi)
        return y + b[None, :, None, None]

    def bn_relu(x, g, b):
        mean = jnp.mean(x, axis=(0, 2, 3), keepdims=True)
        var = jnp.mean(jnp.square(x - mean), axis=(0, 2, 3), keepdims=True)
        y = (x - mean) * jax.lax.rsqrt(var + 1e-5) * g[None, :, None, None] \
            + b[None, :, None, None]
        return jnp.maximum(y, 0.0)

    x = bn_relu(conv(x, p["enc_w1"], p["enc_b1"], 2, 1), p["enc_g1"], p["enc_be1"])
    x = bn_relu(conv(x, p["enc_w2"], p["enc_b2"], 2, 1), p["enc_g2"], p["enc_be2"])
    x = bn_relu(convT(x, p["dec_w1"], p["dec_b1"], 2, 1, 1), p["dec_g1"], p["dec_be1"])
    return convT(x, p["dec_w2"], p["dec_b2"], 2, 1, 1)


if __name__ == "__main__":
    key = jax.random.PRNGKey(0)
    pkey, xkey = jax.random.split(key)

    batch, c_in, h, w = 2, 16, 16, 16
    params = init_params(pkey, c_in=c_in, compression_ratio=8, kernel_size=K)
    x = jax.random.normal(xkey, (batch, c_in, h, w), jnp.float32)

    consts = build_kernel_constants(params, batch, c_in, h, w, k=K)

    out = autoencoder_forward(x, consts)
    jax.block_until_ready(out)

    assert out.shape == x.shape, f"shape mismatch: {out.shape} vs {x.shape}"
    assert out.dtype == jnp.float32

    ref = reference_forward(x, params)
    err = float(jnp.max(jnp.abs(out - ref)))
    assert err < 5e-2, f"kernel/reference mismatch: max abs err = {err}"

    print("KERNEL_OK")
</pallas_src>

<mosaic_0001>
module attributes {stable_mosaic.version = 11 : i64} {
  func.func @_fused_ae_kernel(%arg0: memref<16x512xf32, #tpu.memory_space<vmem>>, %arg1: memref<512x1152xbf16, #tpu.memory_space<vmem>>, %arg2: memref<128x288xbf16, #tpu.memory_space<any>>, %arg3: memref<32x1152xbf16, #tpu.memory_space<any>>, %arg4: memref<128x4608xbf16, #tpu.memory_space<any>>, %arg5: memref<40x144xf32, #tpu.memory_space<vmem>>, %arg6: memref<16x10xf32, #tpu.memory_space<vmem>>, %arg7: memref<16x512xf32, #tpu.memory_space<vmem>>, %arg8: memref<128x288xbf16, #tpu.memory_space<vmem>>, %arg9: memref<32x1152xbf16, #tpu.memory_space<vmem>>, %arg10: memref<128x4608xbf16, #tpu.memory_space<vmem>>, %arg11: memref<3x!tpu.dma_semaphore, #tpu.memory_space<semaphore_mem>>) attributes {dimension_semantics = [], scalar_prefetch = 0 : i64, scratch_operands = 4 : i64, tpu.core_type = #tpu.core_type<tc>} {
    %c0_i32 = arith.constant 0 : i32
    %0 = tpu.memref_slice %arg11[%c0_i32] : memref<3x!tpu.dma_semaphore, #tpu.memory_space<semaphore_mem>> -> memref<1x!tpu.dma_semaphore, #tpu.memory_space<semaphore_mem>>
    %1 = tpu.memref_squeeze %0 : memref<1x!tpu.dma_semaphore, #tpu.memory_space<semaphore_mem>> -> memref<!tpu.dma_semaphore, #tpu.memory_space<semaphore_mem>>
    tpu.enqueue_dma source(%arg2 : memref<128x288xbf16, #tpu.memory_space<any>>) target(%arg8 : memref<128x288xbf16, #tpu.memory_space<vmem>>) target_semaphore(%1 : memref<!tpu.dma_semaphore, #tpu.memory_space<semaphore_mem>>)
    %c1_i32 = arith.constant 1 : i32
    %2 = tpu.memref_slice %arg11[%c1_i32] : memref<3x!tpu.dma_semaphore, #tpu.memory_space<semaphore_mem>> -> memref<1x!tpu.dma_semaphore, #tpu.memory_space<semaphore_mem>>
    %3 = tpu.memref_squeeze %2 : memref<1x!tpu.dma_semaphore, #tpu.memory_space<semaphore_mem>> -> memref<!tpu.dma_semaphore, #tpu.memory_space<semaphore_mem>>
    tpu.enqueue_dma source(%arg3 : memref<32x1152xbf16, #tpu.memory_space<any>>) target(%arg9 : memref<32x1152xbf16, #tpu.memory_space<vmem>>) target_semaphore(%3 : memref<!tpu.dma_semaphore, #tpu.memory_space<semaphore_mem>>)
    %c2_i32 = arith.constant 2 : i32
    %4 = tpu.memref_slice %arg11[%c2_i32] : memref<3x!tpu.dma_semaphore, #tpu.memory_space<semaphore_mem>> -> memref<1x!tpu.dma_semaphore, #tpu.memory_space<semaphore_mem>>
    %5 = tpu.memref_squeeze %4 : memref<1x!tpu.dma_semaphore, #tpu.memory_space<semaphore_mem>> -> memref<!tpu.dma_semaphore, #tpu.memory_space<semaphore_mem>>
    tpu.enqueue_dma source(%arg4 : memref<128x4608xbf16, #tpu.memory_space<any>>) target(%arg10 : memref<128x4608xbf16, #tpu.memory_space<vmem>>) target_semaphore(%5 : memref<!tpu.dma_semaphore, #tpu.memory_space<semaphore_mem>>)
    %c0 = arith.constant 0 : index
    %c0_0 = arith.constant 0 : index
    %6 = vector.load %arg5[%c0, %c0_0] : memref<40x144xf32, #tpu.memory_space<vmem>>, vector<40x144xf32>
    %c0_1 = arith.constant 0 : index
    %c0_2 = arith.constant 0 : index
    %7 = vector.load %arg6[%c0_1, %c0_2] : memref<16x10xf32, #tpu.memory_space<vmem>>, vector<16x10xf32>
    %c0_3 = arith.constant 0 : index
    %c0_4 = arith.constant 0 : index
    %8 = vector.load %arg0[%c0_3, %c0_4] : memref<16x512xf32, #tpu.memory_space<vmem>>, vector<16x512xf32>
    %c0_5 = arith.constant 0 : index
    %c0_6 = arith.constant 0 : index
    %9 = vector.load %arg1[%c0_5, %c0_6] : memref<512x1152xbf16, #tpu.memory_space<vmem>>, vector<512x1152xbf16>
    %10 = vector.extract_strided_slice %6 {offsets = [0, 0], sizes = [8, 144], strides = [1, 1]} : vector<40x144xf32> to vector<8x144xf32>
    %11 = vector.extract_strided_slice %7 {offsets = [0, 0], sizes = [8, 1], strides = [1, 1]} : vector<16x10xf32> to vector<8x1xf32>
    %12 = arith.extf %9 : vector<512x1152xbf16> to vector<512x1152xf32>
    %cst = arith.constant dense<0.000000e+00> : vector<16x1152xf32>
    %13 = tpu.matmul %8, %12, %cst {dimension_numbers = #tpu.dot_dimension_numbers<[1], [0], [0], [1], [0, 0, 1, 1], [], []>} : vector<16x512xf32>, vector<512x1152xf32>, vector<16x1152xf32> -> vector<16x1152xf32>
    %14 = vector.extract_strided_slice %13 {offsets = [0, 0], sizes = [16, 128], strides = [1, 1]} : vector<16x1152xf32> to vector<16x128xf32>
    %15 = vector.extract_strided_slice %13 {offsets = [0, 128], sizes = [16, 128], strides = [1, 1]} : vector<16x1152xf32> to vector<16x128xf32>
    %16 = vector.extract_strided_slice %13 {offsets = [0, 256], sizes = [16, 128], strides = [1, 1]} : vector<16x1152xf32> to vector<16x128xf32>
    %17 = vector.extract_strided_slice %13 {offsets = [0, 384], sizes = [16, 128], strides = [1, 1]} : vector<16x1152xf32> to vector<16x128xf32>
    %18 = vector.extract_strided_slice %13 {offsets = [0, 512], sizes = [16, 128], strides = [1, 1]} : vector<16x1152xf32> to vector<16x128xf32>
    %19 = vector.extract_strided_slice %13 {offsets = [0, 640], sizes = [16, 128], strides = [1, 1]} : vector<16x1152xf32> to vector<16x128xf32>
    %20 = vector.extract_strided_slice %13 {offsets = [0, 768], sizes = [16, 128], strides = [1, 1]} : vector<16x1152xf32> to vector<16x128xf32>
    %21 = vector.extract_strided_slice %13 {offsets = [0, 896], sizes = [16, 128], strides = [1, 1]} : vector<16x1152xf32> to vector<16x128xf32>
    %22 = vector.extract_strided_slice %13 {offsets = [0, 1024], sizes = [16, 128], strides = [1, 1]} : vector<16x1152xf32> to vector<16x128xf32>
    %23 = tpu.concatenate %14, %15, %16, %17, %18, %19, %20, %21, %22 in 0 : vector<16x128xf32>, vector<16x128xf32>, vector<16x128xf32>, vector<16x128xf32>, vector<16x128xf32>, vector<16x128xf32>, vector<16x128xf32>, vector<16x128xf32>, vector<16x128xf32> -> vector<144x128xf32>
    %cst_7 = arith.constant dense<0.000000e+00> : vector<8x128xf32>
    %24 = tpu.matmul %10, %23, %cst_7 {dimension_numbers = #tpu.dot_dimension_numbers<[1], [0], [0], [1], [0, 0, 1, 1], [], []>} : vector<8x144xf32>, vector<144x128xf32>, vector<8x128xf32> -> vector<8x128xf32>
    %25 = vector.broadcast %11 : vector<8x1xf32> to vector<8x128xf32>
    %26 = arith.addf %24, %25 : vector<8x128xf32>
    %27 = vector.extract_strided_slice %7 {offsets = [0, 1], sizes = [8, 1], strides = [1, 1]} : vector<16x10xf32> to vector<8x1xf32>
    %28 = vector.extract_strided_slice %7 {offsets = [0, 2], sizes = [8, 1], strides = [1, 1]} : vector<16x10xf32> to vector<8x1xf32>
    %cst_8 = arith.constant dense<0.000000e+00> : vector<8xf32>
    %29 = vector.multi_reduction <add>, %26, %cst_8 [1] : vector<8x128xf32> to vector<8xf32>
    %30 = vector.shape_cast %29 : vector<8xf32> to vector<8x1xf32>
    %cst_9 = arith.constant 1.280000e+02 : f32
    %31 = vector.broadcast %cst_9 : f32 to vector<8x1xf32>
    %32 = arith.divf %30, %31 : vector<8x1xf32>
    %33 = vector.broadcast %32 : vector<8x1xf32> to vector<8x128xf32>
    %34 = arith.subf %26, %33 : vector<8x128xf32>
    %35 = arith.mulf %34, %34 : vector<8x128xf32>
    %cst_10 = arith.constant dense<0.000000e+00> : vector<8xf32>
    %36 = vector.multi_reduction <add>, %35, %cst_10 [1] : vector<8x128xf32> to vector<8xf32>
    %37 = vector.shape_cast %36 : vector<8xf32> to vector<8x1xf32>
    %cst_11 = arith.constant 1.280000e+02 : f32
    %38 = vector.broadcast %cst_11 : f32 to vector<8x1xf32>
    %39 = arith.divf %37, %38 : vector<8x1xf32>
    %40 = vector.broadcast %32 : vector<8x1xf32> to vector<8x128xf32>
    %41 = arith.subf %26, %40 : vector<8x128xf32>
    %cst_12 = arith.constant 9.99999974E-6 : f32
    %42 = vector.broadcast %cst_12 : f32 to vector<8x1xf32>
    %43 = arith.addf %39, %42 : vector<8x1xf32>
    %44 = math.rsqrt %43 : vector<8x1xf32>
    %45 = vector.broadcast %44 : vector<8x1xf32> to vector<8x128xf32>
    %46 = arith.mulf %41, %45 : vector<8x128xf32>
    %47 = vector.broadcast %27 : vector<8x1xf32> to vector<8x128xf32>
    %48 = arith.mulf %46, %47 : vector<8x128xf32>
    %49 = vector.broadcast %28 : vector<8x1xf32> to vector<8x128xf32>
    %50 = arith.addf %48, %49 : vector<8x128xf32>
    %cst_13 = arith.constant 0.000000e+00 : f32
    %51 = vector.broadcast %cst_13 : f32 to vector<8x128xf32>
    %52 = arith.maximumf %50, %51 : vector<8x128xf32>
    %c0_i32_14 = arith.constant 0 : i32
    %53 = tpu.memref_slice %arg11[%c0_i32_14] : memref<3x!tpu.dma_semaphore, #tpu.memory_space<semaphore_mem>> -> memref<1x!tpu.dma_semaphore, #tpu.memory_space<semaphore_mem>>
    %54 = tpu.memref_squeeze %53 : memref<1x!tpu.dma_semaphore, #tpu.memory_space<semaphore_mem>> -> memref<!tpu.dma_semaphore, #tpu.memory_space<semaphore_mem>>
    tpu.wait_dma2 semaphore(%54 : memref<!tpu.dma_semaphore, #tpu.memory_space<semaphore_mem>>) src(%arg2 : memref<128x288xbf16, #tpu.memory_space<any>>) dst(%arg8 : memref<128x288xbf16, #tpu.memory_space<vmem>>)
    %c0_15 = arith.constant 0 : index
    %c0_16 = arith.constant 0 : index
    %55 = vector.load %arg8[%c0_15, %c0_16] : memref<128x288xbf16, #tpu.memory_space<vmem>>, vector<128x288xbf16>
    %56 = vector.extract_strided_slice %6 {offsets = [8, 0], sizes = [8, 72], strides = [1, 1]} : vector<40x144xf32> to vector<8x72xf32>
    %57 = vector.extract_strided_slice %7 {offsets = [0, 3], sizes = [8, 1], strides = [1, 1]} : vector<16x10xf32> to vector<8x1xf32>
    %58 = arith.extf %55 : vector<128x288xbf16> to vector<128x288xf32>
    %cst_17 = arith.constant dense<0.000000e+00> : vector<8x288xf32>
    %59 = tpu.matmul %52, %58, %cst_17 {dimension_numbers = #tpu.dot_dimension_numbers<[1], [0], [0], [1], [0, 0, 1, 1], [], []>} : vector<8x128xf32>, vector<128x288xf32>, vector<8x288xf32> -> vector<8x288xf32>
    %60 = vector.extract_strided_slice %59 {offsets = [0, 0], sizes = [8, 32], strides = [1, 1]} : vector<8x288xf32> to vector<8x32xf32>
    %61 = vector.extract_strided_slice %59 {offsets = [0, 32], sizes = [8, 32], strides = [1, 1]} : vector<8x288xf32> to vector<8x32xf32>
    %62 = vector.extract_strided_slice %59 {offsets = [0, 64], sizes = [8, 32], strides = [1, 1]} : vector<8x288xf32> to vector<8x32xf32>
    %63 = vector.extract_strided_slice %59 {offsets = [0, 96], sizes = [8, 32], strides = [1, 1]} : vector<8x288xf32> to vector<8x32xf32>
    %64 = vector.extract_strided_slice %59 {offsets = [0, 128], sizes = [8, 32], strides = [1, 1]} : vector<8x288xf32> to vector<8x32xf32>
    %65 = vector.extract_strided_slice %59 {offsets = [0, 160], sizes = [8, 32], strides = [1, 1]} : vector<8x288xf32> to vector<8x32xf32>
    %66 = vector.extract_strided_slice %59 {offsets = [0, 192], sizes = [8, 32], strides = [1, 1]} : vector<8x288xf32> to vector<8x32xf32>
    %67 = vector.extract_strided_slice %59 {offsets = [0, 224], sizes = [8, 32], strides = [1, 1]} : vector<8x288xf32> to vector<8x32xf32>
    %68 = vector.extract_strided_slice %59 {offsets = [0, 256], sizes = [8, 32], strides = [1, 1]} : vector<8x288xf32> to vector<8x32xf32>
    %69 = tpu.concatenate %60, %61, %62, %63, %64, %65, %66, %67, %68 in 0 : vector<8x32xf32>, vector<8x32xf32>, vector<8x32xf32>, vector<8x32xf32>, vector<8x32xf32>, vector<8x32xf32>, vector<8x32xf32>, vector<8x32xf32>, vector<8x32xf32> -> vector<72x32xf32>
    %cst_18 = arith.constant dense<0.000000e+00> : vector<8x32xf32>
    %70 = tpu.matmul %56, %69, %cst_18 {dimension_numbers = #tpu.dot_dimension_numbers<[1], [0], [0], [1], [0, 0, 1, 1], [], []>} : vector<8x72xf32>, vector<72x32xf32>, vector<8x32xf32> -> vector<8x32xf32>
    %71 = vector.broadcast %57 : vector<8x1xf32> to vector<8x32xf32>
    %72 = arith.addf %70, %71 : vector<8x32xf32>
    %73 = vector.extract_strided_slice %7 {offsets = [0, 4], sizes = [8, 1], strides = [1, 1]} : vector<16x10xf32> to vector<8x1xf32>
    %74 = vector.extract_strided_slice %7 {offsets = [0, 5], sizes = [8, 1], strides = [1, 1]} : vector<16x10xf32> to vector<8x1xf32>
    %cst_19 = arith.constant dense<0.000000e+00> : vector<8xf32>
    %75 = vector.multi_reduction <add>, %72, %cst_19 [1] : vector<8x32xf32> to vector<8xf32>
    %76 = vector.shape_cast %75 : vector<8xf32> to vector<8x1xf32>
    %cst_20 = arith.constant 3.200000e+01 : f32
    %77 = vector.broadcast %cst_20 : f32 to vector<8x1xf32>
    %78 = arith.divf %76, %77 : vector<8x1xf32>
    %79 = vector.broadcast %78 : vector<8x1xf32> to vector<8x32xf32>
    %80 = arith.subf %72, %79 : vector<8x32xf32>
    %81 = arith.mulf %80, %80 : vector<8x32xf32>
    %cst_21 = arith.constant dense<0.000000e+00> : vector<8xf32>
    %82 = vector.multi_reduction <add>, %81, %cst_21 [1] : vector<8x32xf32> to vector<8xf32>
    %83 = vector.shape_cast %82 : vector<8xf32> to vector<8x1xf32>
    %cst_22 = arith.constant 3.200000e+01 : f32
    %84 = vector.broadcast %cst_22 : f32 to vector<8x1xf32>
    %85 = arith.divf %83, %84 : vector<8x1xf32>
    %86 = vector.broadcast %78 : vector<8x1xf32> to vector<8x32xf32>
    %87 = arith.subf %72, %86 : vector<8x32xf32>
    %cst_23 = arith.constant 9.99999974E-6 : f32
    %88 = vector.broadcast %cst_23 : f32 to vector<8x1xf32>
    %89 = arith.addf %85, %88 : vector<8x1xf32>
    %90 = math.rsqrt %89 : vector<8x1xf32>
    %91 = vector.broadcast %90 : vector<8x1xf32> to vector<8x32xf32>
    %92 = arith.mulf %87, %91 : vector<8x32xf32>
    %93 = vector.broadcast %73 : vector<8x1xf32> to vector<8x32xf32>
    %94 = arith.mulf %92, %93 : vector<8x32xf32>
    %95 = vector.broadcast %74 : vector<8x1xf32> to vector<8x32xf32>
    %96 = arith.addf %94, %95 : vector<8x32xf32>
    %cst_24 = arith.constant 0.000000e+00 : f32
    %97 = vector.broadcast %cst_24 : f32 to vector<8x32xf32>
    %98 = arith.maximumf %96, %97 : vector<8x32xf32>
    %c1_i32_25 = arith.constant 1 : i32
    %99 = tpu.memref_slice %arg11[%c1_i32_25] : memref<3x!tpu.dma_semaphore, #tpu.memory_space<semaphore_mem>> -> memref<1x!tpu.dma_semaphore, #tpu.memory_space<semaphore_mem>>
    %100 = tpu.memref_squeeze %99 : memref<1x!tpu.dma_semaphore, #tpu.memory_space<semaphore_mem>> -> memref<!tpu.dma_semaphore, #tpu.memory_space<semaphore_mem>>
    tpu.wait_dma2 semaphore(%100 : memref<!tpu.dma_semaphore, #tpu.memory_space<semaphore_mem>>) src(%arg3 : memref<32x1152xbf16, #tpu.memory_space<any>>) dst(%arg9 : memref<32x1152xbf16, #tpu.memory_space<vmem>>)
    %c0_26 = arith.constant 0 : index
    %c0_27 = arith.constant 0 : index
    %101 = vector.load %arg9[%c0_26, %c0_27] : memref<32x1152xbf16, #tpu.memory_space<vmem>>, vector<32x1152xbf16>
    %102 = vector.extract_strided_slice %6 {offsets = [16, 0], sizes = [8, 72], strides = [1, 1]} : vector<40x144xf32> to vector<8x72xf32>
    %103 = vector.extract_strided_slice %7 {offsets = [0, 6], sizes = [8, 1], strides = [1, 1]} : vector<16x10xf32> to vector<8x1xf32>
    %104 = arith.extf %101 : vector<32x1152xbf16> to vector<32x1152xf32>
    %cst_28 = arith.constant dense<0.000000e+00> : vector<8x1152xf32>
    %105 = tpu.matmul %98, %104, %cst_28 {dimension_numbers = #tpu.dot_dimension_numbers<[1], [0], [0], [1], [0, 0, 1, 1], [], []>} : vector<8x32xf32>, vector<32x1152xf32>, vector<8x1152xf32> -> vector<8x1152xf32>
    %106 = vector.extract_strided_slice %105 {offsets = [0, 0], sizes = [8, 128], strides = [1, 1]} : vector<8x1152xf32> to vector<8x128xf32>
    %107 = vector.extract_strided_slice %105 {offsets = [0, 128], sizes = [8, 128], strides = [1, 1]} : vector<8x1152xf32> to vector<8x128xf32>
    %108 = vector.extract_strided_slice %105 {offsets = [0, 256], sizes = [8, 128], strides = [1, 1]} : vector<8x1152xf32> to vector<8x128xf32>
    %109 = vector.extract_strided_slice %105 {offsets = [0, 384], sizes = [8, 128], strides = [1, 1]} : vector<8x1152xf32> to vector<8x128xf32>
    %110 = vector.extract_strided_slice %105 {offsets = [0, 512], sizes = [8, 128], strides = [1, 1]} : vector<8x1152xf32> to vector<8x128xf32>
    %111 = vector.extract_strided_slice %105 {offsets = [0, 640], sizes = [8, 128], strides = [1, 1]} : vector<8x1152xf32> to vector<8x128xf32>
    %112 = vector.extract_strided_slice %105 {offsets = [0, 768], sizes = [8, 128], strides = [1, 1]} : vector<8x1152xf32> to vector<8x128xf32>
    %113 = vector.extract_strided_slice %105 {offsets = [0, 896], sizes = [8, 128], strides = [1, 1]} : vector<8x1152xf32> to vector<8x128xf32>
    %114 = vector.extract_strided_slice %105 {offsets = [0, 1024], sizes = [8, 128], strides = [1, 1]} : vector<8x1152xf32> to vector<8x128xf32>
    %115 = tpu.concatenate %106, %107, %108, %109, %110, %111, %112, %113, %114 in 0 : vector<8x128xf32>, vector<8x128xf32>, vector<8x128xf32>, vector<8x128xf32>, vector<8x128xf32>, vector<8x128xf32>, vector<8x128xf32>, vector<8x128xf32>, vector<8x128xf32> -> vector<72x128xf32>
    %cst_29 = arith.constant dense<0.000000e+00> : vector<8x128xf32>
    %116 = tpu.matmul %102, %115, %cst_29 {dimension_numbers = #tpu.dot_dimension_numbers<[1], [0], [0], [1], [0, 0, 1, 1], [], []>} : vector<8x72xf32>, vector<72x128xf32>, vector<8x128xf32> -> vector<8x128xf32>
    %117 = vector.broadcast %103 : vector<8x1xf32> to vector<8x128xf32>
    %118 = arith.addf %116, %117 : vector<8x128xf32>
    %119 = vector.extract_strided_slice %7 {offsets = [0, 7], sizes = [8, 1], strides = [1, 1]} : vector<16x10xf32> to vector<8x1xf32>
    %120 = vector.extract_strided_slice %7 {offsets = [0, 8], sizes = [8, 1], strides = [1, 1]} : vector<16x10xf32> to vector<8x1xf32>
    %cst_30 = arith.constant dense<0.000000e+00> : vector<8xf32>
    %121 = vector.multi_reduction <add>, %118, %cst_30 [1] : vector<8x128xf32> to vector<8xf32>
    %122 = vector.shape_cast %121 : vector<8xf32> to vector<8x1xf32>
    %cst_31 = arith.constant 1.280000e+02 : f32
    %123 = vector.broadcast %cst_31 : f32 to vector<8x1xf32>
    %124 = arith.divf %122, %123 : vector<8x1xf32>
    %125 = vector.broadcast %124 : vector<8x1xf32> to vector<8x128xf32>
    %126 = arith.subf %118, %125 : vector<8x128xf32>
    %127 = arith.mulf %126, %126 : vector<8x128xf32>
    %cst_32 = arith.constant dense<0.000000e+00> : vector<8xf32>
    %128 = vector.multi_reduction <add>, %127, %cst_32 [1] : vector<8x128xf32> to vector<8xf32>
    %129 = vector.shape_cast %128 : vector<8xf32> to vector<8x1xf32>
    %cst_33 = arith.constant 1.280000e+02 : f32
    %130 = vector.broadcast %cst_33 : f32 to vector<8x1xf32>
    %131 = arith.divf %129, %130 : vector<8x1xf32>
    %132 = vector.broadcast %124 : vector<8x1xf32> to vector<8x128xf32>
    %133 = arith.subf %118, %132 : vector<8x128xf32>
    %cst_34 = arith.constant 9.99999974E-6 : f32
    %134 = vector.broadcast %cst_34 : f32 to vector<8x1xf32>
    %135 = arith.addf %131, %134 : vector<8x1xf32>
    %136 = math.rsqrt %135 : vector<8x1xf32>
    %137 = vector.broadcast %136 : vector<8x1xf32> to vector<8x128xf32>
    %138 = arith.mulf %133, %137 : vector<8x128xf32>
    %139 = vector.broadcast %119 : vector<8x1xf32> to vector<8x128xf32>
    %140 = arith.mulf %138, %139 : vector<8x128xf32>
    %141 = vector.broadcast %120 : vector<8x1xf32> to vector<8x128xf32>
    %142 = arith.addf %140, %141 : vector<8x128xf32>
    %cst_35 = arith.constant 0.000000e+00 : f32
    %143 = vector.broadcast %cst_35 : f32 to vector<8x128xf32>
    %144 = arith.maximumf %142, %143 : vector<8x128xf32>
    %c2_i32_36 = arith.constant 2 : i32
    %145 = tpu.memref_slice %arg11[%c2_i32_36] : memref<3x!tpu.dma_semaphore, #tpu.memory_space<semaphore_mem>> -> memref<1x!tpu.dma_semaphore, #tpu.memory_space<semaphore_mem>>
    %146 = tpu.memref_squeeze %145 : memref<1x!tpu.dma_semaphore, #tpu.memory_space<semaphore_mem>> -> memref<!tpu.dma_semaphore, #tpu.memory_space<semaphore_mem>>
    tpu.wait_dma2 semaphore(%146 : memref<!tpu.dma_semaphore, #tpu.memory_space<semaphore_mem>>) src(%arg4 : memref<128x4608xbf16, #tpu.memory_space<any>>) dst(%arg10 : memref<128x4608xbf16, #tpu.memory_space<vmem>>)
    %c0_37 = arith.constant 0 : index
    %c0_38 = arith.constant 0 : index
    %147 = vector.load %arg10[%c0_37, %c0_38] : memref<128x4608xbf16, #tpu.memory_space<vmem>>, vector<128x4608xbf16>
    %148 = vector.extract_strided_slice %6 {offsets = [24, 0], sizes = [16, 72], strides = [1, 1]} : vector<40x144xf32> to vector<16x72xf32>
    %149 = vector.extract_strided_slice %7 {offsets = [0, 9], sizes = [16, 1], strides = [1, 1]} : vector<16x10xf32> to vector<16x1xf32>
    %150 = arith.extf %147 : vector<128x4608xbf16> to vector<128x4608xf32>
    %cst_39 = arith.constant dense<0.000000e+00> : vector<8x4608xf32>
    %151 = tpu.matmul %144, %150, %cst_39 {dimension_numbers = #tpu.dot_dimension_numbers<[1], [0], [0], [1], [0, 0, 1, 1], [], []>} : vector<8x128xf32>, vector<128x4608xf32>, vector<8x4608xf32> -> vector<8x4608xf32>
    %152 = vector.extract_strided_slice %151 {offsets = [0, 0], sizes = [8, 512], strides = [1, 1]} : vector<8x4608xf32> to vector<8x512xf32>
    %153 = vector.extract_strided_slice %151 {offsets = [0, 512], sizes = [8, 512], strides = [1, 1]} : vector<8x4608xf32> to vector<8x512xf32>
    %154 = vector.extract_strided_slice %151 {offsets = [0, 1024], sizes = [8, 512], strides = [1, 1]} : vector<8x4608xf32> to vector<8x512xf32>
    %155 = vector.extract_strided_slice %151 {offsets = [0, 1536], sizes = [8, 512], strides = [1, 1]} : vector<8x4608xf32> to vector<8x512xf32>
    %156 = vector.extract_strided_slice %151 {offsets = [0, 2048], sizes = [8, 512], strides = [1, 1]} : vector<8x4608xf32> to vector<8x512xf32>
    %157 = vector.extract_strided_slice %151 {offsets = [0, 2560], sizes = [8, 512], strides = [1, 1]} : vector<8x4608xf32> to vector<8x512xf32>
    %158 = vector.extract_strided_slice %151 {offsets = [0, 3072], sizes = [8, 512], strides = [1, 1]} : vector<8x4608xf32> to vector<8x512xf32>
    %159 = vector.extract_strided_slice %151 {offsets = [0, 3584], sizes = [8, 512], strides = [1, 1]} : vector<8x4608xf32> to vector<8x512xf32>
    %160 = vector.extract_strided_slice %151 {offsets = [0, 4096], sizes = [8, 512], strides = [1, 1]} : vector<8x4608xf32> to vector<8x512xf32>
    %161 = tpu.concatenate %152, %153, %154, %155, %156, %157, %158, %159, %160 in 0 : vector<8x512xf32>, vector<8x512xf32>, vector<8x512xf32>, vector<8x512xf32>, vector<8x512xf32>, vector<8x512xf32>, vector<8x512xf32>, vector<8x512xf32>, vector<8x512xf32> -> vector<72x512xf32>
    %cst_40 = arith.constant dense<0.000000e+00> : vector<16x512xf32>
    %162 = tpu.matmul %148, %161, %cst_40 {dimension_numbers = #tpu.dot_dimension_numbers<[1], [0], [0], [1], [0, 0, 1, 1], [], []>} : vector<16x72xf32>, vector<72x512xf32>, vector<16x512xf32> -> vector<16x512xf32>
    %163 = vector.broadcast %149 : vector<16x1xf32> to vector<16x512xf32>
    %164 = arith.addf %162, %163 : vector<16x512xf32>
    %c0_41 = arith.constant 0 : index
    %c0_42 = arith.constant 0 : index
    %165 = vector.load %arg7[%c0_41, %c0_42] : memref<16x512xf32, #tpu.memory_space<vmem>>, vector<16x512xf32>
    tpu.vector_store %arg7[%c0_41, %c0_42], %164 {strides = array<i32>} : memref<16x512xf32, #tpu.memory_space<vmem>>, vector<16x512xf32>,
    return
  }
}

</mosaic_0001>

<llo_original>
// kernel: autoencoder_forward.1
$region0: #{autoencoder_forward.1}
  #allocation0 [shape = 'u32[]', space=smem, size = 0x4, offset = 0x4, fixed_abs, tag = 'smem constant byte address 0x4 - core index']
  #allocation1 [shape = 'u32[144,128]{1,0:T(1,128)}', space=vmem, size = 0x12000, scoped, tag = 'internal scratch']
  #allocation2 [shape = 'bf16[128,288]{1,0:T(16,128)(2,1)}', space=vmem, size = 0x18000, scoped, tag = 'scratch operand']
  #allocation3 [shape = 'bf16[32,1152]{1,0:T(16,128)(2,1)}', space=vmem, size = 0x12000, scoped, tag = 'scratch operand']
  #allocation4 [shape = 'bf16[128,4608]{1,0:T(16,128)(2,1)}', space=vmem, size = 0x120000, scoped, tag = 'scratch operand']
  #allocation5 [shape = 's32[3]{0}', space=sflag, size = 0xc, scoped, tag = 'scratch operand']
  #allocation11 [shape = 's32[]', space=sflag, size = 0x4, offset = 0, fixed_abs, tag = 'sflag constant byte address 0x0 - dummy sync flag']
  #allocation12 [shape = 's32[]', space=sflag, size = 0x4, offset = 0, fixed_abs, tag = 'sflag constant byte address 0x0 - dummy sync flag']
  #allocation14 [shape = 's32[]', space=sflag, size = 0x4, offset = 0, fixed_abs, tag = 'sflag constant byte address 0x0 - dummy sync flag']
  %s0 = inlined_call_operand.vmem [shape: f32[16,512], index: 0, kind: input, shape index: {}]
  %s1 = inlined_call_operand.hbm [shape: bf16[512,1152], index: 1, kind: input, shape index: {}]
  %s2 = inlined_call_operand.vmem [shape: bf16[128,288], index: 2, kind: input, shape index: {}]
  %s3 = inlined_call_operand.hbm [shape: bf16[32,1152], index: 3, kind: input, shape index: {}]
  %s4 = inlined_call_operand.hbm [shape: bf16[128,4608], index: 4, kind: input, shape index: {}]
  %s5 = inlined_call_operand.hbm [shape: f32[40,144], index: 5, kind: input, shape index: {}]
  %s6 = inlined_call_operand.hbm [shape: f32[16,10], index: 6, kind: input, shape index: {}]
  %s7 = inlined_call_operand.vmem [shape: f32[16,512], index: 7, kind: output, shape index: {}]
  %s8 = sld [smem:[#allocation0]]
  $region75: #{autoencoder_forward.1} parent=0
    _
  %s10 = ssub.s32 1, %s8
  %s11 = scalar_select 0, %s10, %s8
  $region1: #{autoencoder_forward.1} parent=0
    #allocation6 [shape = 'u8[1179648]{0}', space=vmem, size = 0x120000, scoped, tag = 'input window, operand 1, single buffered']
    #allocation7 [shape = 's32[1]{0}', space=sflag, size = 0x4, scoped, tag = 'scoped memory for autoencoder_forward.1']
    #allocation8 [shape = 'u8[40960]{0}', space=vmem, size = 0xa000, scoped, tag = 'input window, operand 5, single buffered']
    #allocation9 [shape = 's32[1]{0}', space=sflag, size = 0x4, scoped, tag = 'scoped memory for autoencoder_forward.1']
    #allocation10 [shape = 'u8[8192]{0}', space=vmem, size = 0x2000, scoped, tag = 'input window, operand 6, single buffered']
    #allocation13 [shape = 'u32[9]{0}', space=smem, size = 0x24, scoped, tag = 'DMA stride descriptor']
    #allocation15 [shape = 'u32[9]{0}', space=smem, size = 0x24, scoped, tag = 'DMA stride descriptor']
    %12 = vsyncpa [#allocation7], 0
    %13 = vsyncpa [#allocation9], 0
    // Predicated region
    $region2: #{autoencoder_forward.1} parent=1 // pred_check
      _
    $region3: #{autoencoder_forward.1} parent=1 // pred_check_branch
      %15 = sbr.rel (0) target = $region5
    $region4: #{autoencoder_forward.1} parent=1 // pred_region
      _
    $region5: #{autoencoder_forward.1} parent=1 // pred_fallthru
      _
    // Predicated region
    $region6: #{autoencoder_forward.1} parent=1 // pred_check
      _
    $region7: #{autoencoder_forward.1} parent=1 // pred_check_branch
      %17 = sbr.rel (0) target = $region9
    $region8: #{autoencoder_forward.1} parent=1 // pred_region
      %s19 = ssub.s32 36864, 36864
      %20 = vsyncadd [#allocation7], %s19
      %s21 = sshll.u32 [#allocation6], 4
      %s22 = int_to_ptr.vmem [resolvable:$true] %s21
      %27 = dma.hbm_to_vmem [thread:$0]  %s1, 36864, %s22, [#allocation7], 576, 576, 36
    $region9: #{autoencoder_forward.1} parent=1 // pred_fallthru
      _
    // Predicated region
    $region10: #{autoencoder_forward.1} parent=1 // pred_check
      _
    $region11: #{autoencoder_forward.1} parent=1 // pred_check_branch
      %29 = sbr.rel (0) target = $region13
    $region12: #{autoencoder_forward.1} parent=1 // pred_region
      %s31 = ssub.s32 1280, 1280
      %32 = vsyncadd [#allocation9], %s31
      %s33 = sshll.u32 [#allocation8], 4
      %s34 = int_to_ptr.vmem [resolvable:$true] %s33
      %39 = dma.hbm_to_vmem [thread:$0]  %s5, 1280, %s34, [#allocation9], 256, 256, 16
    $region13: #{autoencoder_forward.1} parent=1 // pred_fallthru
      _
    // Predicated region
    $region14: #{autoencoder_forward.1} parent=1 // pred_check
      _
    $region15: #{autoencoder_forward.1} parent=1 // pred_check_branch
      %41 = sbr.rel (0) target = $region17
    $region16: #{autoencoder_forward.1} parent=1 // pred_region
      %s43 = ssub.s32 256, 256
      %44 = vsyncadd [#allocation9], %s43
      %s45 = sshll.u32 [#allocation10], 4
      %s46 = int_to_ptr.vmem [resolvable:$true] %s45
      %51 = dma.hbm_to_vmem [thread:$0]  %s6, 256, %s46, [#allocation9], 128, 128, 8
    $region17: #{autoencoder_forward.1} parent=1 // pred_fallthru
      _
    // Predicated region
    $region18: #{autoencoder_forward.1} parent=1 // pred_check
      _
    $region19: #{autoencoder_forward.1} parent=1 // pred_check_branch
      %53 = sbr.rel (0) target = $region21
    $region20: #{autoencoder_forward.1} parent=1 // pred_region
      %54 = dma.done [#allocation7], 36864
    $region21: #{autoencoder_forward.1} parent=1 // pred_fallthru
      _
    // Predicated region
    $region22: #{autoencoder_forward.1} parent=1 // pred_check
      _
    $region23: #{autoencoder_forward.1} parent=1 // pred_check_branch
      %56 = sbr.rel (0) target = $region25
    $region24: #{autoencoder_forward.1} parent=1 // pred_region
      %57 = dma.done [#allocation9], 1280
    $region25: #{autoencoder_forward.1} parent=1 // pred_fallthru
      _
    // Predicated region
    $region26: #{autoencoder_forward.1} parent=1 // pred_check
      _
    $region27: #{autoencoder_forward.1} parent=1 // pred_check_branch
      %59 = sbr.rel (0) target = $region29
    $region28: #{autoencoder_forward.1} parent=1 // pred_region
      %60 = dma.done [#allocation9], 256
    $region29: #{autoencoder_forward.1} parent=1 // pred_fallthru
      _
    %p62 = scmp.lt.u32.totalorder 4, 8
    %p63 = pneg %p62
    // Predicated region
    $region30: #{autoencoder_forward.1} parent=1 // pred_check
      _
    $region31: #{autoencoder_forward.1} parent=1 // pred_check_branch
      %65 = sbr.rel (%p62) target = $region33
    $region32: #{autoencoder_forward.1} parent=1 // pred_region
      %s174 = sand.u32 4, 7
      %p175 = scmp.eq.s32.totalorder %s174, 0
      %p176 = pneg %p175
      // Predicated region
      $region45: #{autoencoder_forward.1} parent=32 // pred_check
        _
      $region46: #{autoencoder_forward.1} parent=32 // pred_check_branch
        %178 = sbr.rel (%p175) target = $region48
      $region47: #{autoencoder_forward.1} parent=32 // pred_region
        %s179 = sand.u32 4, 7
        %s180 = ssub.s32 4, %s179
        %s181 = scalar_lea.vmem %s2, %s180
        %s182 = ssub.s32 4, %s179
        %s183 = scalar_lea.vmem [#allocation2], %s182
        loop: start=0, step=1, limit=1
        $region49: #{autoencoder_forward.1} parent=47 // loop_pre_header
          _
        $region50: #{autoencoder_forward.1} parent=47 // loop_header
          %s185 = sphi 0, %s189
          %p186 = scmp.ge.s32.totalorder %s185, 1
          %s190 = sphi %s2, %s2
          %s191 = sphi [#allocation2], [#allocation2]
        $region51: #{autoencoder_forward.1} parent=47 // loop_header_branch
          %188 = sbr.rel (%p186) target = $region55
        $region52: #{autoencoder_forward.1} parent=47 // loop_body
          _
        $region53: #{autoencoder_forward.1} parent=47 // loop_footer
          %s189 = sadd.s32 1, %s185
        $region54: #{autoencoder_forward.1} parent=47 // loop_footer_branch
          %184 = sbr.rel target = $region50
        $region55: #{autoencoder_forward.1} parent=47 // loop_exit
          _
        %s192 = sshllo.u32 0, %s179
        loop: start=0, step=1, limit=1
        $region56: #{autoencoder_forward.1} parent=47 // loop_pre_header
          _
        $region57: #{autoencoder_forward.1} parent=47 // loop_header
          %s194 = sphi 0, %s198
          %p195 = scmp.ge.s32.totalorder %s194, 1
          %s199 = sphi %s181, %s181
          %s200 = sphi %s183, %s183
        $region58: #{autoencoder_forward.1} parent=47 // loop_header_branch
          %197 = sbr.rel (%p195) target = $region62
        $region59: #{autoencoder_forward.1} parent=47 // loop_body
          %v201 = vld [vmem:[%s199] sm:%s192]
          %202 = vst [vmem:[%s200] sm:%s192] %v201
          %v203 = vld [vmem:[%s199 + $0xc] sm:%s192]
          %204 = vst [vmem:[%s200 + $0x4] sm:%s192] %v203
          %v205 = vld [vmem:[%s199 + $0x4] sm:%s192]
          %206 = vst [vmem:[%s200 + $0x8] sm:%s192] %v205
          %v207 = vld [vmem:[%s199 + $0x10] sm:%s192]
          %208 = vst [vmem:[%s200 + $0xc] sm:%s192] %v207
          %v209 = vld [vmem:[%s199 + $0x8] sm:%s192]
          %210 = vst [vmem:[%s200 + $0x10] sm:%s192] %v209
          %v211 = vld [vmem:[%s199 + $0x14] sm:%s192]
          %212 = vst [vmem:[%s200 + $0x14] sm:%s192] %v211
          %v213 = vld [vmem:[%s199 + $0x18] sm:%s192]
          %214 = vst [vmem:[%s200 + $0x18] sm:%s192] %v213
          %v215 = vld [vmem:[%s199 + $0x24] sm:%s192]
          %216 = vst [vmem:[%s200 + $0x1c] sm:%s192] %v215
          %v217 = vld [vmem:[%s199 + $0x1c] sm:%s192]
          %218 = vst [vmem:[%s200 + $0x20] sm:%s192] %v217
          %v219 = vld [vmem:[%s199 + $0x28] sm:%s192]
          %220 = vst [vmem:[%s200 + $0x24] sm:%s192] %v219
          %v221 = vld [vmem:[%s199 + $0x20] sm:%s192]
          %222 = vst [vmem:[%s200 + $0x28] sm:%s192] %v221
          %v223 = vld [vmem:[%s199 + $0x2c] sm:%s192]
          %224 = vst [vmem:[%s200 + $0x2c] sm:%s192] %v223
          %v225 = vld [vmem:[%s199 + $0x30] sm:%s192]
          %226 = vst [vmem:[%s200 + $0x30] sm:%s192] %v225
          %v227 = vld [vmem:[%s199 + $0x3c] sm:%s192]
          %228 = vst [vmem:[%s200 + $0x34] sm:%s192] %v227
          %v229 = vld [vmem:[%s199 + $0x34] sm:%s192]
          %230 = vst [vmem:[%s200 + $0x38] sm:%s192] %v229
          %v231 = vld [vmem:[%s199 + $0x40] sm:%s192]
          %232 = vst [vmem:[%s200 + $0x3c] sm:%s192] %v231
          %v233 = vld [vmem:[%s199 + $0x38] sm:%s192]
          %234 = vst [vmem:[%s200 + $0x40] sm:%s192] %v233
          %v235 = vld [vmem:[%s199 + $0x44] sm:%s192]
          %236 = vst [vmem:[%s200 + $0x44] sm:%s192] %v235
          %v237 = vld [vmem:[%s199 + $0x48] sm:%s192]
          %238 = vst [vmem:[%s200 + $0x48] sm:%s192] %v237
          %v239 = vld [vmem:[%s199 + $0x54] sm:%s192]
          %240 = vst [vmem:[%s200 + $0x4c] sm:%s192] %v239
          %v241 = vld [vmem:[%s199 + $0x4c] sm:%s192]
          %242 = vst [vmem:[%s200 + $0x50] sm:%s192] %v241
          %v243 = vld [vmem:[%s199 + $0x58] sm:%s192]
          %244 = vst [vmem:[%s200 + $0x54] sm:%s192] %v243
          %v245 = vld [vmem:[%s199 + $0x50] sm:%s192]
          %246 = vst [vmem:[%s200 + $0x58] sm:%s192] %v245
          %v247 = vld [vmem:[%s199 + $0x5c] sm:%s192]
          %248 = vst [vmem:[%s200 + $0x5c] sm:%s192] %v247
          %v249 = vld [vmem:[%s199 + $0x60] sm:%s192]
          %250 = vst [vmem:[%s200 + $0x60] sm:%s192] %v249
          %v251 = vld [vmem:[%s199 + $0x6c] sm:%s192]
          %252 = vst [vmem:[%s200 + $0x64] sm:%s192] %v251
          %v253 = vld [vmem:[%s199 + $0x64] sm:%s192]
          %254 = vst [vmem:[%s200 + $0x68] sm:%s192] %v253
          %v255 = vld [vmem:[%s199 + $0x70] sm:%s192]
          %256 = vst [vmem:[%s200 + $0x6c] sm:%s192] %v255
          %v257 = vld [vmem:[%s199 + $0x68] sm:%s192]
          %258 = vst [vmem:[%s200 + $0x70] sm:%s192] %v257
          %v259 = vld [vmem:[%s199 + $0x74] sm:%s192]
          %260 = vst [vmem:[%s200 + $0x74] sm:%s192] %v259
          %v261 = vld [vmem:[%s199 + $0x78] sm:%s192]
          %262 = vst [vmem:[%s200 + $0x78] sm:%s192] %v261
          %v263 = vld [vmem:[%s199 + $0x84] sm:%s192]
          %264 = vst [vmem:[%s200 + $0x7c] sm:%s192] %v263
          %v265 = vld [vmem:[%s199 + $0x7c] sm:%s192]
          %266 = vst [vmem:[%s200 + $0x80] sm:%s192] %v265
          %v267 = vld [vmem:[%s199 + $0x88] sm:%s192]
          %268 = vst [vmem:[%s200 + $0x84] sm:%s192] %v267
          %v269 = vld [vmem:[%s199 + $0x80] sm:%s192]
          %270 = vst [vmem:[%s200 + $0x88] sm:%s192] %v269
          %v271 = vld [vmem:[%s199 + $0x8c] sm:%s192]
          %272 = vst [vmem:[%s200 + $0x8c] sm:%s192] %v271
          %v273 = vld [vmem:[%s199 + $0x90] sm:%s192]
          %274 = vst [vmem:[%s200 + $0x90] sm:%s192] %v273
          %v275 = vld [vmem:[%s199 + $0x9c] sm:%s192]
          %276 = vst [vmem:[%s200 + $0x94] sm:%s192] %v275
          %v277 = vld [vmem:[%s199 + $0x94] sm:%s192]
          %278 = vst [vmem:[%s200 + $0x98] sm:%s192] %v277
          %v279 = vld [vmem:[%s199 + $0xa0] sm:%s192]
          %280 = vst [vmem:[%s200 + $0x9c] sm:%s192] %v279
          %v281 = vld [vmem:[%s199 + $0x98] sm:%s192]
          %282 = vst [vmem:[%s200 + $0xa0] sm:%s192] %v281
          %v283 = vld [vmem:[%s199 + $0xa4] sm:%s192]
          %284 = vst [vmem:[%s200 + $0xa4] sm:%s192] %v283
          %v285 = vld [vmem:[%s199 + $0xa8] sm:%s192]
          %286 = vst [vmem:[%s200 + $0xa8] sm:%s192] %v285
          %v287 = vld [vmem:[%s199 + $0xb4] sm:%s192]
          %288 = vst [vmem:[%s200 + $0xac] sm:%s192] %v287
          %v289 = vld [vmem:[%s199 + $0xac] sm:%s192]
          %290 = vst [vmem:[%s200 + $0xb0] sm:%s192] %v289
          %v291 = vld [vmem:[%s199 + $0xb8] sm:%s192]
          %292 = vst [vmem:[%s200 + $0xb4] sm:%s192] %v291
          %v293 = vld [vmem:[%s199 + $0xb0] sm:%s192]
          %294 = vst [vmem:[%s200 + $0xb8] sm:%s192] %v293
          %v295 = vld [vmem:[%s199 + $0xbc] sm:%s192]
          %296 = vst [vmem:[%s200 + $0xbc] sm:%s192] %v295
        $region60: #{autoencoder_forward.1} parent=47 // loop_footer
          %s198 = sadd.s32 1, %s194
        $region61: #{autoencoder_forward.1} parent=47 // loop_footer_branch
          %193 = sbr.rel target = $region57
        $region62: #{autoencoder_forward.1} parent=47 // loop_exit
          _
      $region48: #{autoencoder_forward.1} parent=32 // pred_fallthru
        _
    $region33: #{autoencoder_forward.1} parent=1 // pred_fallthru
      _
    // Predicated region
    $region34: #{autoencoder_forward.1} parent=1 // pred_check
      %p66 = pneg %p62
    $region35: #{autoencoder_forward.1} parent=1 // pred_check_branch
      %68 = sbr.rel (%p66) target = $region37
    $region36: #{autoencoder_forward.1} parent=1 // pred_region
      %s69 = sshllo.u32 0, 4
      loop: start=0, step=1, limit=1
      $region38: #{autoencoder_forward.1} parent=36 // loop_pre_header
        _
      $region39: #{autoencoder_forward.1} parent=36 // loop_header
        %s71 = sphi 0, %s75
        %p72 = scmp.ge.s32.totalorder %s71, 1
        %s76 = sphi %s2, %s2
        %s77 = sphi [#allocation2], [#allocation2]
      $region40: #{autoencoder_forward.1} parent=36 // loop_header_branch
        %74 = sbr.rel (%p72) target = $region44
      $region41: #{autoencoder_forward.1} parent=36 // loop_body
        %v78 = vld [vmem:[%s76] sm:%s69]
        %79 = vst [vmem:[%s77] sm:%s69] %v78
        %v80 = vld [vmem:[%s76 + $0xc] sm:%s69]
        %81 = vst [vmem:[%s77 + $0x4] sm:%s69] %v80
        %v82 = vld [vmem:[%s76 + $0x4] sm:%s69]
        %83 = vst [vmem:[%s77 + $0x8] sm:%s69] %v82
        %v84 = vld [vmem:[%s76 + $0x10] sm:%s69]
        %85 = vst [vmem:[%s77 + $0xc] sm:%s69] %v84
        %v86 = vld [vmem:[%s76 + $0x8] sm:%s69]
        %87 = vst [vmem:[%s77 + $0x10] sm:%s69] %v86
        %v88 = vld [vmem:[%s76 + $0x14] sm:%s69]
        %89 = vst [vmem:[%s77 + $0x14] sm:%s69] %v88
        %v90 = vld [vmem:[%s76 + $0x18] sm:%s69]
        %91 = vst [vmem:[%s77 + $0x18] sm:%s69] %v90
        %v92 = vld [vmem:[%s76 + $0x24] sm:%s69]
        %93 = vst [vmem:[%s77 + $0x1c] sm:%s69] %v92
        %v94 = vld [vmem:[%s76 + $0x1c] sm:%s69]
        %95 = vst [vmem:[%s77 + $0x20] sm:%s69] %v94
        %v96 = vld [vmem:[%s76 + $0x28] sm:%s69]
        %97 = vst [vmem:[%s77 + $0x24] sm:%s69] %v96
        %v98 = vld [vmem:[%s76 + $0x20] sm:%s69]
        %99 = vst [vmem:[%s77 + $0x28] sm:%s69] %v98
        %v100 = vld [vmem:[%s76 + $0x2c] sm:%s69]
        %101 = vst [vmem:[%s77 + $0x2c] sm:%s69] %v100
        %v102 = vld [vmem:[%s76 + $0x30] sm:%s69]
        %103 = vst [vmem:[%s77 + $0x30] sm:%s69] %v102
        %v104 = vld [vmem:[%s76 + $0x3c] sm:%s69]
        %105 = vst [vmem:[%s77 + $0x34] sm:%s69] %v104
        %v106 = vld [vmem:[%s76 + $0x34] sm:%s69]
        %107 = vst [vmem:[%s77 + $0x38] sm:%s69] %v106
        %v108 = vld [vmem:[%s76 + $0x40] sm:%s69]
        %109 = vst [vmem:[%s77 + $0x3c] sm:%s69] %v108
        %v110 = vld [vmem:[%s76 + $0x38] sm:%s69]
        %111 = vst [vmem:[%s77 + $0x40] sm:%s69] %v110
        %v112 = vld [vmem:[%s76 + $0x44] sm:%s69]
        %113 = vst [vmem:[%s77 + $0x44] sm:%s69] %v112
        %v114 = vld [vmem:[%s76 + $0x48] sm:%s69]
        %115 = vst [vmem:[%s77 + $0x48] sm:%s69] %v114
        %v116 = vld [vmem:[%s76 + $0x54] sm:%s69]
        %117 = vst [vmem:[%s77 + $0x4c] sm:%s69] %v116
        %v118 = vld [vmem:[%s76 + $0x4c] sm:%s69]
        %119 = vst [vmem:[%s77 + $0x50] sm:%s69] %v118
        %v120 = vld [vmem:[%s76 + $0x58] sm:%s69]
        %121 = vst [vmem:[%s77 + $0x54] sm:%s69] %v120
        %v122 = vld [vmem:[%s76 + $0x50] sm:%s69]
        %123 = vst [vmem:[%s77 + $0x58] sm:%s69] %v122
        %v124 = vld [vmem:[%s76 + $0x5c] sm:%s69]
        %125 = vst [vmem:[%s77 + $0x5c] sm:%s69] %v124
        %v126 = vld [vmem:[%s76 + $0x60] sm:%s69]
        %127 = vst [vmem:[%s77 + $0x60] sm:%s69] %v126
        %v128 = vld [vmem:[%s76 + $0x6c] sm:%s69]
        %129 = vst [vmem:[%s77 + $0x64] sm:%s69] %v128
        %v130 = vld [vmem:[%s76 + $0x64] sm:%s69]
        %131 = vst [vmem:[%s77 + $0x68] sm:%s69] %v130
        %v132 = vld [vmem:[%s76 + $0x70] sm:%s69]
        %133 = vst [vmem:[%s77 + $0x6c] sm:%s69] %v132
        %v134 = vld [vmem:[%s76 + $0x68] sm:%s69]
        %135 = vst [vmem:[%s77 + $0x70] sm:%s69] %v134
        %v136 = vld [vmem:[%s76 + $0x74] sm:%s69]
        %137 = vst [vmem:[%s77 + $0x74] sm:%s69] %v136
        %v138 = vld [vmem:[%s76 + $0x78] sm:%s69]
        %139 = vst [vmem:[%s77 + $0x78] sm:%s69] %v138
        %v140 = vld [vmem:[%s76 + $0x84] sm:%s69]
        %141 = vst [vmem:[%s77 + $0x7c] sm:%s69] %v140
        %v142 = vld [vmem:[%s76 + $0x7c] sm:%s69]
        %143 = vst [vmem:[%s77 + $0x80] sm:%s69] %v142
        %v144 = vld [vmem:[%s76 + $0x88] sm:%s69]
        %145 = vst [vmem:[%s77 + $0x84] sm:%s69] %v144
        %v146 = vld [vmem:[%s76 + $0x80] sm:%s69]
        %147 = vst [vmem:[%s77 + $0x88] sm:%s69] %v146
        %v148 = vld [vmem:[%s76 + $0x8c] sm:%s69]
        %149 = vst [vmem:[%s77 + $0x8c] sm:%s69] %v148
        %v150 = vld [vmem:[%s76 + $0x90] sm:%s69]
        %151 = vst [vmem:[%s77 + $0x90] sm:%s69] %v150
        %v152 = vld [vmem:[%s76 + $0x9c] sm:%s69]
        %153 = vst [vmem:[%s77 + $0x94] sm:%s69] %v152
        %v154 = vld [vmem:[%s76 + $0x94] sm:%s69]
        %155 = vst [vmem:[%s77 + $0x98] sm:%s69] %v154
        %v156 = vld [vmem:[%s76 + $0xa0] sm:%s69]
        %157 = vst [vmem:[%s77 + $0x9c] sm:%s69] %v156
        %v158 = vld [vmem:[%s76 + $0x98] sm:%s69]
        %159 = vst [vmem:[%s77 + $0xa0] sm:%s69] %v158
        %v160 = vld [vmem:[%s76 + $0xa4] sm:%s69]
        %161 = vst [vmem:[%s77 + $0xa4] sm:%s69] %v160
        %v162 = vld [vmem:[%s76 + $0xa8] sm:%s69]
        %163 = vst [vmem:[%s77 + $0xa8] sm:%s69] %v162
        %v164 = vld [vmem:[%s76 + $0xb4] sm:%s69]
        %165 = vst [vmem:[%s77 + $0xac] sm:%s69] %v164
        %v166 = vld [vmem:[%s76 + $0xac] sm:%s69]
        %167 = vst [vmem:[%s77 + $0xb0] sm:%s69] %v166
        %v168 = vld [vmem:[%s76 + $0xb8] sm:%s69]
        %169 = vst [vmem:[%s77 + $0xb4] sm:%s69] %v168
        %v170 = vld [vmem:[%s76 + $0xb0] sm:%s69]
        %171 = vst [vmem:[%s77 + $0xb8] sm:%s69] %v170
        %v172 = vld [vmem:[%s76 + $0xbc] sm:%s69]
        %173 = vst [vmem:[%s77 + $0xbc] sm:%s69] %v172
      $region42: #{autoencoder_forward.1} parent=36 // loop_footer
        %s75 = sadd.s32 1, %s71
      $region43: #{autoencoder_forward.1} parent=36 // loop_footer_branch
        %70 = sbr.rel target = $region39
      $region44: #{autoencoder_forward.1} parent=36 // loop_exit
        _
    $region37: #{autoencoder_forward.1} parent=1 // pred_fallthru
      _
    // Predicated region
    $region63: #{autoencoder_forward.1} parent=1 // pred_check
      _
    $region64: #{autoencoder_forward.1} parent=1 // pred_check_branch
      %299 = sbr.rel (0) target = $region66
    $region65: #{autoencoder_forward.1} parent=1 // pred_region
      %300 = vsyncadd [#allocation5], 3072
    $region66: #{autoencoder_forward.1} parent=1 // pred_fallthru
      _
    %s301 = scalar_lea.sflag [#allocation5], 1
    %s303 = sshll.u32 1, 14
    %s304 = sxor.u32 4294967295, %s303
    %s306 = sld [smem:[#allocation0]]
    %s307 = sadd.s32 2, %s306
    %s309 = sshll.u32 7, 26
    %s310 = sxor.u32 4294967295, %s309
    %s311 = sand.u32 0, %s310
    %s312 = sshll.u32 %s307, 26
    %s313 = sor.u32 %s311, %s312
    %s314 = sshll.u32 [#allocation3], 4
    %s315 = int_to_ptr.vmem [resolvable:$true] %s314
    %318 = sst [smem:[#allocation13]] 1152
    %s319 = scalar_lea.smem [#allocation13], 1
    %320 = sst [smem:[%s319]] 1152
    %s321 = scalar_lea.smem [#allocation13], 2
    %322 = sst [smem:[%s321]] 9
    %s323 = scalar_lea.smem [#allocation13], 3
    %324 = sst [smem:[%s323]] 64
    %s325 = scalar_lea.smem [#allocation13], 4
    %326 = sst [smem:[%s325]] 128
    %s327 = scalar_lea.smem [#allocation13], 5
    %328 = sst [smem:[%s327]] 2
    %s329 = scalar_lea.smem [#allocation13], 6
    %330 = sst [smem:[%s329]] 576
    %s331 = scalar_lea.smem [#allocation13], 7
    %332 = sst [smem:[%s331]] 64
    %s333 = scalar_lea.smem [#allocation13], 8
    %334 = sst [smem:[%s333]] 4
    %336 = dma.general %s3, 2304, %s315, %s301, [#allocation12], [#allocation13], %s313, 0
    %s337 = scalar_lea.sflag [#allocation5], 2
    %s339 = sshll.u32 1, 14
    %s340 = sxor.u32 4294967295, %s339
    %s342 = sadd.s32 2, %s306
    %s344 = sshll.u32 7, 26
    %s345 = sxor.u32 4294967295, %s344
    %s346 = sand.u32 0, %s345
    %s347 = sshll.u32 %s342, 26
    %s348 = sor.u32 %s346, %s347
    %s349 = sshll.u32 [#allocation4], 4
    %s350 = int_to_ptr.vmem [resolvable:$true] %s349
    %353 = sst [smem:[#allocation15]] 4608
    %s354 = scalar_lea.smem [#allocation15], 1
    %355 = sst [smem:[%s354]] 4608
    %s356 = scalar_lea.smem [#allocation15], 2
    %357 = sst [smem:[%s356]] 36
    %s358 = scalar_lea.smem [#allocation15], 3
    %359 = sst [smem:[%s358]] 64
    %s360 = scalar_lea.smem [#allocation15], 4
    %361 = sst [smem:[%s360]] 128
    %s362 = scalar_lea.smem [#allocation15], 5
    %363 = sst [smem:[%s362]] 2
    %s364 = scalar_lea.smem [#allocation15], 6
    %365 = sst [smem:[%s364]] 2304
    %s366 = scalar_lea.smem [#allocation15], 7
    %367 = sst [smem:[%s366]] 64
    %s368 = scalar_lea.smem [#allocation15], 8
    %369 = sst [smem:[%s368]] 4
    %371 = dma.general %s4, 36864, %s350, %s337, [#allocation14], [#allocation15], %s348, 0
    %v372 = vld [vmem:[#allocation8] sm:$0xff]
    %v373 = vld [vmem:[#allocation8 + $0x8] sm:$0xff]
    %v374 = vld [vmem:[#allocation8 + $0x10] sm:$0xff]
    %v375 = vld [vmem:[#allocation8 + $0x20] sm:$0xff]
    %v376 = vld [vmem:[#allocation8 + $0x30] sm:$0xff]
    %v377 = vld [vmem:[#allocation8 + $0x40] sm:$0xff]
    %v378 = vld [vmem:[#allocation10] sm:$0xff]
    %v379 = vld [vmem:[#allocation10 + $0x8] sm:$0xff]
    %v380 = vld [vmem:[%s0] sm:$0xff]
    %v381 = vld [vmem:[%s0 + $0x8] sm:$0xff]
    %v382 = vld [vmem:[%s0 + $0x10] sm:$0xff]
    %v383 = vld [vmem:[%s0 + $0x18] sm:$0xff]
    %v384 = vld [vmem:[%s0 + $0x20] sm:$0xff]
    %v385 = vld [vmem:[%s0 + $0x28] sm:$0xff]
    %v386 = vld [vmem:[%s0 + $0x30] sm:$0xff]
    %v387 = vld [vmem:[%s0 + $0x38] sm:$0xff]
    %v388 = vld [vmem:[#allocation6] sm:$0xff]
    %v389 = vld [vmem:[#allocation6 + $0x8] sm:$0xff]
    %v390 = vld [vmem:[#allocation6 + $0x10] sm:$0xff]
    %v391 = vld [vmem:[#allocation6 + $0x18] sm:$0xff]
    %v392 = vld [vmem:[#allocation6 + $0x20] sm:$0xf]
    %v393 = vld [vmem:[#allocation6 + $0x24] sm:$0xff]
    %v394 = vld [vmem:[#allocation6 + $0x2c] sm:$0xff]
    %v395 = vld [vmem:[#allocation6 + $0x34] sm:$0xff]
    %v396 = vld [vmem:[#allocation6 + $0x3c] sm:$0xff]
    %v397 = vld [vmem:[#allocation6 + $0x44] sm:$0xf]
    %v398 = vld [vmem:[#allocation6 + $0x48] sm:$0xff]
    %v399 = vld [vmem:[#allocation6 + $0x50] sm:$0xff]
    %v400 = vld [vmem:[#allocation6 + $0x58] sm:$0xff]
    %v401 = vld [vmem:[#allocation6 + $0x60] sm:$0xff]
    %v402 = vld [vmem:[#allocation6 + $0x68] sm:$0xf]
    %v403 = vld [vmem:[#allocation6 + $0x6c] sm:$0xff]
    %v404 = vld [vmem:[#allocation6 + $0x74] sm:$0xff]
    %v405 = vld [vmem:[#allocation6 + $0x7c] sm:$0xff]
    %v406 = vld [vmem:[#allocation6 + $0x84] sm:$0xff]
    %v407 = vld [vmem:[#allocation6 + $0x8c] sm:$0xf]
    %v408 = vld [vmem:[#allocation6 + $0x90] sm:$0xff]
    %v409 = vld [vmem:[#allocation6 + $0x98] sm:$0xff]
    %v410 = vld [vmem:[#allocation6 + $0xa0] sm:$0xff]
    %v411 = vld [vmem:[#allocation6 + $0xa8] sm:$0xff]
    %v412 = vld [vmem:[#allocation6 + $0xb0] sm:$0xf]
    %v413 = vld [vmem:[#allocation6 + $0xb4] sm:$0xff]
    %v414 = vld [vmem:[#allocation6 + $0xbc] sm:$0xff]
    %v415 = vld [vmem:[#allocation6 + $0xc4] sm:$0xff]
    %v416 = vld [vmem:[#allocation6 + $0xcc] sm:$0xff]
    %v417 = vld [vmem:[#allocation6 + $0xd4] sm:$0xf]
    %v418 = vld [vmem:[#allocation6 + $0xd8] sm:$0xff]
    %v419 = vld [vmem:[#allocation6 + $0xe0] sm:$0xff]
    %v420 = vld [vmem:[#allocation6 + $0xe8] sm:$0xff]
    %v421 = vld [vmem:[#allocation6 + $0xf0] sm:$0xff]
    %v422 = vld [vmem:[#allocation6 + $0xf8] sm:$0xf]
    %v423 = vld [vmem:[#allocation6 + $0xfc] sm:$0xff]
    %v424 = vld [vmem:[#allocation6 + $0x104] sm:$0xff]
    %v425 = vld [vmem:[#allocation6 + $0x10c] sm:$0xff]
    %v426 = vld [vmem:[#allocation6 + $0x114] sm:$0xff]
    %v427 = vld [vmem:[#allocation6 + $0x11c] sm:$0xf]
    %v428 = vld [vmem:[#allocation6 + $0x120] sm:$0xff]
    %v429 = vld [vmem:[#allocation6 + $0x128] sm:$0xff]
    %v430 = vld [vmem:[#allocation6 + $0x130] sm:$0xff]
    %v431 = vld [vmem:[#allocation6 + $0x138] sm:$0xff]
    %v432 = vld [vmem:[#allocation6 + $0x140] sm:$0xf]
    %v433 = vld [vmem:[#allocation6 + $0x144] sm:$0xff]
    %v434 = vld [vmem:[#allocation6 + $0x14c] sm:$0xff]
    %v435 = vld [vmem:[#allocation6 + $0x154] sm:$0xff]
    %v436 = vld [vmem:[#allocation6 + $0x15c] sm:$0xff]
    %v437 = vld [vmem:[#allocation6 + $0x164] sm:$0xf]
    %v438 = vld [vmem:[#allocation6 + $0x168] sm:$0xff]
    %v439 = vld [vmem:[#allocation6 + $0x170] sm:$0xff]
    %v440 = vld [vmem:[#allocation6 + $0x178] sm:$0xff]
    %v441 = vld [vmem:[#allocation6 + $0x180] sm:$0xff]
    %v442 = vld [vmem:[#allocation6 + $0x188] sm:$0xf]
    %v443 = vld [vmem:[#allocation6 + $0x18c] sm:$0xff]
    %v444 = vld [vmem:[#allocation6 + $0x194] sm:$0xff]
    %v445 = vld [vmem:[#allocation6 + $0x19c] sm:$0xff]
    %v446 = vld [vmem:[#allocation6 + $0x1a4] sm:$0xff]
    %v447 = vld [vmem:[#allocation6 + $0x1ac] sm:$0xf]
    %v448 = vld [vmem:[#allocation6 + $0x1b0] sm:$0xff]
    %v449 = vld [vmem:[#allocation6 + $0x1b8] sm:$0xff]
    %v450 = vld [vmem:[#allocation6 + $0x1c0] sm:$0xff]
    %v451 = vld [vmem:[#allocation6 + $0x1c8] sm:$0xff]
    %v452 = vld [vmem:[#allocation6 + $0x1d0] sm:$0xf]
    %v453 = vld [vmem:[#allocation6 + $0x1d4] sm:$0xff]
    %v454 = vld [vmem:[#allocation6 + $0x1dc] sm:$0xff]
    %v455 = vld [vmem:[#allocation6 + $0x1e4] sm:$0xff]
    %v456 = vld [vmem:[#allocation6 + $0x1ec] sm:$0xff]
    %v457 = vld [vmem:[#allocation6 + $0x1f4] sm:$0xf]
    %v458 = vld [vmem:[#allocation6 + $0x1f8] sm:$0xff]
    %v459 = vld [vmem:[#allocation6 + $0x200] sm:$0xff]
    %v460 = vld [vmem:[#allocation6 + $0x208] sm:$0xff]
    %v461 = vld [vmem:[#allocation6 + $0x210] sm:$0xff]
    %v462 = vld [vmem:[#allocation6 + $0x218] sm:$0xf]
    %v463 = vld [vmem:[#allocation6 + $0x21c] sm:$0xff]
    %v464 = vld [vmem:[#allocation6 + $0x224] sm:$0xff]
    %v465 = vld [vmem:[#allocation6 + $0x22c] sm:$0xff]
    %v466 = vld [vmem:[#allocation6 + $0x234] sm:$0xff]
    %v467 = vld [vmem:[#allocation6 + $0x23c] sm:$0xf]
    %v468 = vld [vmem:[#allocation6 + $0x240] sm:$0xff]
    %v469 = vld [vmem:[#allocation6 + $0x248] sm:$0xff]
    %v470 = vld [vmem:[#allocation6 + $0x250] sm:$0xff]
    %v471 = vld [vmem:[#allocation6 + $0x258] sm:$0xff]
    %v472 = vld [vmem:[#allocation6 + $0x260] sm:$0xf]
    %v473 = vld [vmem:[#allocation6 + $0x264] sm:$0xff]
    %v474 = vld [vmem:[#allocation6 + $0x26c] sm:$0xff]
    %v475 = vld [vmem:[#allocation6 + $0x274] sm:$0xff]
    %v476 = vld [vmem:[#allocation6 + $0x27c] sm:$0xff]
    %v477 = vld [vmem:[#allocation6 + $0x284] sm:$0xf]
    %v478 = vld [vmem:[#allocation6 + $0x288] sm:$0xff]
    %v479 = vld [vmem:[#allocation6 + $0x290] sm:$0xff]
    %v480 = vld [vmem:[#allocation6 + $0x298] sm:$0xff]
    %v481 = vld [vmem:[#allocation6 + $0x2a0] sm:$0xff]
    %v482 = vld [vmem:[#allocation6 + $0x2a8] sm:$0xf]
    %v483 = vld [vmem:[#allocation6 + $0x2ac] sm:$0xff]
    %v484 = vld [vmem:[#allocation6 + $0x2b4] sm:$0xff]
    %v485 = vld [vmem:[#allocation6 + $0x2bc] sm:$0xff]
    %v486 = vld [vmem:[#allocation6 + $0x2c4] sm:$0xff]
    %v487 = vld [vmem:[#allocation6 + $0x2cc] sm:$0xf]
    %v488 = vld [vmem:[#allocation6 + $0x2d0] sm:$0xff]
    %v489 = vld [vmem:[#allocation6 + $0x2d8] sm:$0xff]
    %v490 = vld [vmem:[#allocation6 + $0x2e0] sm:$0xff]
    %v491 = vld [vmem:[#allocation6 + $0x2e8] sm:$0xff]
    %v492 = vld [vmem:[#allocation6 + $0x2f0] sm:$0xf]
    %v493 = vld [vmem:[#allocation6 + $0x2f4] sm:$0xff]
    %v494 = vld [vmem:[#allocation6 + $0x2fc] sm:$0xff]
    %v495 = vld [vmem:[#allocation6 + $0x304] sm:$0xff]
    %v496 = vld [vmem:[#allocation6 + $0x30c] sm:$0xff]
    %v497 = vld [vmem:[#allocation6 + $0x314] sm:$0xf]
    %v498 = vld [vmem:[#allocation6 + $0x318] sm:$0xff]
    %v499 = vld [vmem:[#allocation6 + $0x320] sm:$0xff]
    %v500 = vld [vmem:[#allocation6 + $0x328] sm:$0xff]
    %v501 = vld [vmem:[#allocation6 + $0x330] sm:$0xff]
    %v502 = vld [vmem:[#allocation6 + $0x338] sm:$0xf]
    %v503 = vld [vmem:[#allocation6 + $0x33c] sm:$0xff]
    %v504 = vld [vmem:[#allocation6 + $0x344] sm:$0xff]
    %v505 = vld [vmem:[#allocation6 + $0x34c] sm:$0xff]
    %v506 = vld [vmem:[#allocation6 + $0x354] sm:$0xff]
    %v507 = vld [vmem:[#allocation6 + $0x35c] sm:$0xf]
    %v508 = vld [vmem:[#allocation6 + $0x360] sm:$0xff]
    %v509 = vld [vmem:[#allocation6 + $0x368] sm:$0xff]
    %v510 = vld [vmem:[#allocation6 + $0x370] sm:$0xff]
    %v511 = vld [vmem:[#allocation6 + $0x378] sm:$0xff]
    %v512 = vld [vmem:[#allocation6 + $0x380] sm:$0xf]
    %v513 = vld [vmem:[#allocation6 + $0x384] sm:$0xff]
    %v514 = vld [vmem:[#allocation6 + $0x38c] sm:$0xff]
    %v515 = vld [vmem:[#allocation6 + $0x394] sm:$0xff]
    %v516 = vld [vmem:[#allocation6 + $0x39c] sm:$0xff]
    %v517 = vld [vmem:[#allocation6 + $0x3a4] sm:$0xf]
    %v518 = vld [vmem:[#allocation6 + $0x3a8] sm:$0xff]
    %v519 = vld [vmem:[#allocation6 + $0x3b0] sm:$0xff]
    %v520 = vld [vmem:[#allocation6 + $0x3b8] sm:$0xff]
    %v521 = vld [vmem:[#allocation6 + $0x3c0] sm:$0xff]
    %v522 = vld [vmem:[#allocation6 + $0x3c8] sm:$0xf]
    %v523 = vld [vmem:[#allocation6 + $0x3cc] sm:$0xff]
    %v524 = vld [vmem:[#allocation6 + $0x3d4] sm:$0xff]
    %v525 = vld [vmem:[#allocation6 + $0x3dc] sm:$0xff]
    %v526 = vld [vmem:[#allocation6 + $0x3e4] sm:$0xff]
    %v527 = vld [vmem:[#allocation6 + $0x3ec] sm:$0xf]
    %v528 = vld [vmem:[#allocation6 + $0x3f0] sm:$0xff]
    %v529 = vld [vmem:[#allocation6 + $0x3f8] sm:$0xff]
    %v530 = vld [vmem:[#allocation6 + $0x400] sm:$0xff]
    %v531 = vld [vmem:[#allocation6 + $0x408] sm:$0xff]
    %v532 = vld [vmem:[#allocation6 + $0x410] sm:$0xf]
    %v533 = vld [vmem:[#allocation6 + $0x414] sm:$0xff]
    %v534 = vld [vmem:[#allocation6 + $0x41c] sm:$0xff]
    %v535 = vld [vmem:[#allocation6 + $0x424] sm:$0xff]
    %v536 = vld [vmem:[#allocation6 + $0x42c] sm:$0xff]
    %v537 = vld [vmem:[#allocation6 + $0x434] sm:$0xf]
    %v538 = vld [vmem:[#allocation6 + $0x438] sm:$0xff]
    %v539 = vld [vmem:[#allocation6 + $0x440] sm:$0xff]
    %v540 = vld [vmem:[#allocation6 + $0x448] sm:$0xff]
    %v541 = vld [vmem:[#allocation6 + $0x450] sm:$0xff]
    %v542 = vld [vmem:[#allocation6 + $0x458] sm:$0xf]
    %v543 = vld [vmem:[#allocation6 + $0x45c] sm:$0xff]
    %v544 = vld [vmem:[#allocation6 + $0x464] sm:$0xff]
    %v545 = vld [vmem:[#allocation6 + $0x46c] sm:$0xff]
    %v546 = vld [vmem:[#allocation6 + $0x474] sm:$0xff]
    %v547 = vld [vmem:[#allocation6 + $0x47c] sm:$0xf]
    %v548 = vld [vmem:[#allocation6 + $0x480] sm:$0xff]
    %v549 = vld [vmem:[#allocation6 + $0x488] sm:$0xff]
    %v550 = vld [vmem:[#allocation6 + $0x490] sm:$0xff]
    %v551 = vld [vmem:[#allocation6 + $0x498] sm:$0xff]
    %v552 = vld [vmem:[#allocation6 + $0x4a0] sm:$0xf]
    %v553 = vld [vmem:[#allocation6 + $0x4a4] sm:$0xff]
    %v554 = vld [vmem:[#allocation6 + $0x4ac] sm:$0xff]
    %v555 = vld [vmem:[#allocation6 + $0x4b4] sm:$0xff]
    %v556 = vld [vmem:[#allocation6 + $0x4bc] sm:$0xff]
    %v557 = vld [vmem:[#allocation6 + $0x4c4] sm:$0xf]
    %v558 = vld [vmem:[#allocation6 + $0x4c8] sm:$0xff]
    %v559 = vld [vmem:[#allocation6 + $0x4d0] sm:$0xff]
    %v560 = vld [vmem:[#allocation6 + $0x4d8] sm:$0xff]
    %v561 = vld [vmem:[#allocation6 + $0x4e0] sm:$0xff]
    %v562 = vld [vmem:[#allocation6 + $0x4e8] sm:$0xf]
    %v563 = vld [vmem:[#allocation6 + $0x4ec] sm:$0xff]
    %v564 = vld [vmem:[#allocation6 + $0x4f4] sm:$0xff]
    %v565 = vld [vmem:[#allocation6 + $0x4fc] sm:$0xff]
    %v566 = vld [vmem:[#allocation6 + $0x504] sm:$0xff]
    %v567 = vld [vmem:[#allocation6 + $0x50c] sm:$0xf]
    %v568 = vld [vmem:[#allocation6 + $0x510] sm:$0xff]
    %v569 = vld [vmem:[#allocation6 + $0x518] sm:$0xff]
    %v570 = vld [vmem:[#allocation6 + $0x520] sm:$0xff]
    %v571 = vld [vmem:[#allocation6 + $0x528] sm:$0xff]
    %v572 = vld [vmem:[#allocation6 + $0x530] sm:$0xf]
    %v573 = vld [vmem:[#allocation6 + $0x534] sm:$0xff]
    %v574 = vld [vmem:[#allocation6 + $0x53c] sm:$0xff]
    %v575 = vld [vmem:[#allocation6 + $0x544] sm:$0xff]
    %v576 = vld [vmem:[#allocation6 + $0x54c] sm:$0xff]
    %v577 = vld [vmem:[#allocation6 + $0x554] sm:$0xf]
    %v578 = vld [vmem:[#allocation6 + $0x558] sm:$0xff]
    %v579 = vld [vmem:[#allocation6 + $0x560] sm:$0xff]
    %v580 = vld [vmem:[#allocation6 + $0x568] sm:$0xff]
    %v581 = vld [vmem:[#allocation6 + $0x570] sm:$0xff]
    %v582 = vld [vmem:[#allocation6 + $0x578] sm:$0xf]
    %v583 = vld [vmem:[#allocation6 + $0x57c] sm:$0xff]
    %v584 = vld [vmem:[#allocation6 + $0x584] sm:$0xff]
    %v585 = vld [vmem:[#allocation6 + $0x58c] sm:$0xff]
    %v586 = vld [vmem:[#allocation6 + $0x594] sm:$0xff]
    %v587 = vld [vmem:[#allocation6 + $0x59c] sm:$0xf]
    %v588 = vld [vmem:[#allocation6 + $0x5a0] sm:$0xff]
    %v589 = vld [vmem:[#allocation6 + $0x5a8] sm:$0xff]
    %v590 = vld [vmem:[#allocation6 + $0x5b0] sm:$0xff]
    %v591 = vld [vmem:[#allocation6 + $0x5b8] sm:$0xff]
    %v592 = vld [vmem:[#allocation6 + $0x5c0] sm:$0xf]
    %v593 = vld [vmem:[#allocation6 + $0x5c4] sm:$0xff]
    %v594 = vld [vmem:[#allocation6 + $0x5cc] sm:$0xff]
    %v595 = vld [vmem:[#allocation6 + $0x5d4] sm:$0xff]
    %v596 = vld [vmem:[#allocation6 + $0x5dc] sm:$0xff]
    %v597 = vld [vmem:[#allocation6 + $0x5e4] sm:$0xf]
    %v598 = vld [vmem:[#allocation6 + $0x5e8] sm:$0xff]
    %v599 = vld [vmem:[#allocation6 + $0x5f0] sm:$0xff]
    %v600 = vld [vmem:[#allocation6 + $0x5f8] sm:$0xff]
    %v601 = vld [vmem:[#allocation6 + $0x600] sm:$0xff]
    %v602 = vld [vmem:[#allocation6 + $0x608] sm:$0xf]
    %v603 = vld [vmem:[#allocation6 + $0x60c] sm:$0xff]
    %v604 = vld [vmem:[#allocation6 + $0x614] sm:$0xff]
    %v605 = vld [vmem:[#allocation6 + $0x61c] sm:$0xff]
    %v606 = vld [vmem:[#allocation6 + $0x624] sm:$0xff]
    %v607 = vld [vmem:[#allocation6 + $0x62c] sm:$0xf]
    %v608 = vld [vmem:[#allocation6 + $0x630] sm:$0xff]
    %v609 = vld [vmem:[#allocation6 + $0x638] sm:$0xff]
    %v610 = vld [vmem:[#allocation6 + $0x640] sm:$0xff]
    %v611 = vld [vmem:[#allocation6 + $0x648] sm:$0xff]
    %v612 = vld [vmem:[#allocation6 + $0x650] sm:$0xf]
    %v613 = vld [vmem:[#allocation6 + $0x654] sm:$0xff]
    %v614 = vld [vmem:[#allocation6 + $0x65c] sm:$0xff]
    %v615 = vld [vmem:[#allocation6 + $0x664] sm:$0xff]
    %v616 = vld [vmem:[#allocation6 + $0x66c] sm:$0xff]
    %v617 = vld [vmem:[#allocation6 + $0x674] sm:$0xf]
    %v618 = vld [vmem:[#allocation6 + $0x678] sm:$0xff]
    %v619 = vld [vmem:[#allocation6 + $0x680] sm:$0xff]
    %v620 = vld [vmem:[#allocation6 + $0x688] sm:$0xff]
    %v621 = vld [vmem:[#allocation6 + $0x690] sm:$0xff]
    %v622 = vld [vmem:[#allocation6 + $0x698] sm:$0xf]
    %v623 = vld [vmem:[#allocation6 + $0x69c] sm:$0xff]
    %v624 = vld [vmem:[#allocation6 + $0x6a4] sm:$0xff]
    %v625 = vld [vmem:[#allocation6 + $0x6ac] sm:$0xff]
    %v626 = vld [vmem:[#allocation6 + $0x6b4] sm:$0xff]
    %v627 = vld [vmem:[#allocation6 + $0x6bc] sm:$0xf]
    %v628 = vld [vmem:[#allocation6 + $0x6c0] sm:$0xff]
    %v629 = vld [vmem:[#allocation6 + $0x6c8] sm:$0xff]
    %v630 = vld [vmem:[#allocation6 + $0x6d0] sm:$0xff]
    %v631 = vld [vmem:[#allocation6 + $0x6d8] sm:$0xff]
    %v632 = vld [vmem:[#allocation6 + $0x6e0] sm:$0xf]
    %v633 = vld [vmem:[#allocation6 + $0x6e4] sm:$0xff]
    %v634 = vld [vmem:[#allocation6 + $0x6ec] sm:$0xff]
    %v635 = vld [vmem:[#allocation6 + $0x6f4] sm:$0xff]
    %v636 = vld [vmem:[#allocation6 + $0x6fc] sm:$0xff]
    %v637 = vld [vmem:[#allocation6 + $0x704] sm:$0xf]
    %v638 = vld [vmem:[#allocation6 + $0x708] sm:$0xff]
    %v639 = vld [vmem:[#allocation6 + $0x710] sm:$0xff]
    %v640 = vld [vmem:[#allocation6 + $0x718] sm:$0xff]
    %v641 = vld [vmem:[#allocation6 + $0x720] sm:$0xff]
    %v642 = vld [vmem:[#allocation6 + $0x728] sm:$0xf]
    %v643 = vld [vmem:[#allocation6 + $0x72c] sm:$0xff]
    %v644 = vld [vmem:[#allocation6 + $0x734] sm:$0xff]
    %v645 = vld [vmem:[#allocation6 + $0x73c] sm:$0xff]
    %v646 = vld [vmem:[#allocation6 + $0x744] sm:$0xff]
    %v647 = vld [vmem:[#allocation6 + $0x74c] sm:$0xf]
    %v648 = vld [vmem:[#allocation6 + $0x750] sm:$0xff]
    %v649 = vld [vmem:[#allocation6 + $0x758] sm:$0xff]
    %v650 = vld [vmem:[#allocation6 + $0x760] sm:$0xff]
    %v651 = vld [vmem:[#allocation6 + $0x768] sm:$0xff]
    %v652 = vld [vmem:[#allocation6 + $0x770] sm:$0xf]
    %v653 = vld [vmem:[#allocation6 + $0x774] sm:$0xff]
    %v654 = vld [vmem:[#allocation6 + $0x77c] sm:$0xff]
    %v655 = vld [vmem:[#allocation6 + $0x784] sm:$0xff]
    %v656 = vld [vmem:[#allocation6 + $0x78c] sm:$0xff]
    %v657 = vld [vmem:[#allocation6 + $0x794] sm:$0xf]
    %v658 = vld [vmem:[#allocation6 + $0x798] sm:$0xff]
    %v659 = vld [vmem:[#allocation6 + $0x7a0] sm:$0xff]
    %v660 = vld [vmem:[#allocation6 + $0x7a8] sm:$0xff]
    %v661 = vld [vmem:[#allocation6 + $0x7b0] sm:$0xff]
    %v662 = vld [vmem:[#allocation6 + $0x7b8] sm:$0xf]
    %v663 = vld [vmem:[#allocation6 + $0x7bc] sm:$0xff]
    %v664 = vld [vmem:[#allocation6 + $0x7c4] sm:$0xff]
    %v665 = vld [vmem:[#allocation6 + $0x7cc] sm:$0xff]
    %v666 = vld [vmem:[#allocation6 + $0x7d4] sm:$0xff]
    %v667 = vld [vmem:[#allocation6 + $0x7dc] sm:$0xf]
    %v668 = vld [vmem:[#allocation6 + $0x7e0] sm:$0xff]
    %v669 = vld [vmem:[#allocation6 + $0x7e8] sm:$0xff]
    %v670 = vld [vmem:[#allocation6 + $0x7f0] sm:$0xff]
    %v671 = vld [vmem:[#allocation6 + $0x7f8] sm:$0xff]
    %v672 = vld [vmem:[#allocation6 + $0x800] sm:$0xf]
    %v673 = vld [vmem:[#allocation6 + $0x804] sm:$0xff]
    %v674 = vld [vmem:[#allocation6 + $0x80c] sm:$0xff]
    %v675 = vld [vmem:[#allocation6 + $0x814] sm:$0xff]
    %v676 = vld [vmem:[#allocation6 + $0x81c] sm:$0xff]
    %v677 = vld [vmem:[#allocation6 + $0x824] sm:$0xf]
    %v678 = vld [vmem:[#allocation6 + $0x828] sm:$0xff]
    %v679 = vld [vmem:[#allocation6 + $0x830] sm:$0xff]
    %v680 = vld [vmem:[#allocation6 + $0x838] sm:$0xff]
    %v681 = vld [vmem:[#allocation6 + $0x840] sm:$0xff]
    %v682 = vld [vmem:[#allocation6 + $0x848] sm:$0xf]
    %v683 = vld [vmem:[#allocation6 + $0x84c] sm:$0xff]
    %v684 = vld [vmem:[#allocation6 + $0x854] sm:$0xff]
    %v685 = vld [vmem:[#allocation6 + $0x85c] sm:$0xff]
    %v686 = vld [vmem:[#allocation6 + $0x864] sm:$0xff]
    %v687 = vld [vmem:[#allocation6 + $0x86c] sm:$0xf]
    %v688 = vld [vmem:[#allocation6 + $0x870] sm:$0xff]
    %v689 = vld [vmem:[#allocation6 + $0x878] sm:$0xff]
    %v690 = vld [vmem:[#allocation6 + $0x880] sm:$0xff]
    %v691 = vld [vmem:[#allocation6 + $0x888] sm:$0xff]
    %v692 = vld [vmem:[#allocation6 + $0x890] sm:$0xf]
    %v693 = vld [vmem:[#allocation6 + $0x894] sm:$0xff]
    %v694 = vld [vmem:[#allocation6 + $0x89c] sm:$0xff]
    %v695 = vld [vmem:[#allocation6 + $0x8a4] sm:$0xff]
    %v696 = vld [vmem:[#allocation6 + $0x8ac] sm:$0xff]
    %v697 = vld [vmem:[#allocation6 + $0x8b4] sm:$0xf]
    %v698 = vld [vmem:[#allocation6 + $0x8b8] sm:$0xff]
    %v699 = vld [vmem:[#allocation6 + $0x8c0] sm:$0xff]
    %v700 = vld [vmem:[#allocation6 + $0x8c8] sm:$0xff]
    %v701 = vld [vmem:[#allocation6 + $0x8d0] sm:$0xff]
    %v702 = vld [vmem:[#allocation6 + $0x8d8] sm:$0xf]
    %v703 = vld [vmem:[#allocation6 + $0x8dc] sm:$0xff]
    %v704 = vld [vmem:[#allocation6 + $0x8e4] sm:$0xff]
    %v705 = vld [vmem:[#allocation6 + $0x8ec] sm:$0xff]
    %v706 = vld [vmem:[#allocation6 + $0x8f4] sm:$0xff]
    %v707 = vld [vmem:[#allocation6 + $0x8fc] sm:$0xf]
    %v708 = vunpack.c.l.bf16 %v388
    %v709 = vunpack.c.h.bf16 %v388
    %v710 = vunpack.c.l.bf16 %v389
    %v711 = vunpack.c.h.bf16 %v389
    %v712 = vunpack.c.l.bf16 %v390
    %v713 = vunpack.c.h.bf16 %v390
    %v714 = vunpack.c.l.bf16 %v391
    %v715 = vunpack.c.h.bf16 %v391
    %v716 = vunpack.c.l.bf16 %v392
    %v717 = vunpack.c.l.bf16 %v393
    %v718 = vunpack.c.h.bf16 %v393
    %v719 = vunpack.c.l.bf16 %v394
    %v720 = vunpack.c.h.bf16 %v394
    %v721 = vunpack.c.l.bf16 %v395
    %v722 = vunpack.c.h.bf16 %v395
    %v723 = vunpack.c.l.bf16 %v396
    %v724 = vunpack.c.h.bf16 %v396
    %v725 = vunpack.c.l.bf16 %v397
    %v726 = vunpack.c.l.bf16 %v398
    %v727 = vunpack.c.h.bf16 %v398
    %v728 = vunpack.c.l.bf16 %v399
    %v729 = vunpack.c.h.bf16 %v399
    %v730 = vunpack.c.l.bf16 %v400
    %v731 = vunpack.c.h.bf16 %v400
    %v732 = vunpack.c.l.bf16 %v401
    %v733 = vunpack.c.h.bf16 %v401
    %v734 = vunpack.c.l.bf16 %v402
    %v735 = vunpack.c.l.bf16 %v403
    %v736 = vunpack.c.h.bf16 %v403
    %v737 = vunpack.c.l.bf16 %v404
    %v738 = vunpack.c.h.bf16 %v404
    %v739 = vunpack.c.l.bf16 %v405
    %v740 = vunpack.c.h.bf16 %v405
    %v741 = vunpack.c.l.bf16 %v406
    %v742 = vunpack.c.h.bf16 %v406
    %v743 = vunpack.c.l.bf16 %v407
    %v744 = vunpack.c.l.bf16 %v408
    %v745 = vunpack.c.h.bf16 %v408
    %v746 = vunpack.c.l.bf16 %v409
    %v747 = vunpack.c.h.bf16 %v409
    %v748 = vunpack.c.l.bf16 %v410
    %v749 = vunpack.c.h.bf16 %v410
    %v750 = vunpack.c.l.bf16 %v411
    %v751 = vunpack.c.h.bf16 %v411
    %v752 = vunpack.c.l.bf16 %v412
    %v753 = vunpack.c.l.bf16 %v413
    %v754 = vunpack.c.h.bf16 %v413
    %v755 = vunpack.c.l.bf16 %v414
    %v756 = vunpack.c.h.bf16 %v414
    %v757 = vunpack.c.l.bf16 %v415
    %v758 = vunpack.c.h.bf16 %v415
    %v759 = vunpack.c.l.bf16 %v416
    %v760 = vunpack.c.h.bf16 %v416
    %v761 = vunpack.c.l.bf16 %v417
    %v762 = vunpack.c.l.bf16 %v418
    %v763 = vunpack.c.h.bf16 %v418
    %v764 = vunpack.c.l.bf16 %v419
    %v765 = vunpack.c.h.bf16 %v419
    %v766 = vunpack.c.l.bf16 %v420
    %v767 = vunpack.c.h.bf16 %v420
    %v768 = vunpack.c.l.bf16 %v421
    %v769 = vunpack.c.h.bf16 %v421
    %v770 = vunpack.c.l.bf16 %v422
    %v771 = vunpack.c.l.bf16 %v423
    %v772 = vunpack.c.h.bf16 %v423
    %v773 = vunpack.c.l.bf16 %v424
    %v774 = vunpack.c.h.bf16 %v424
    %v775 = vunpack.c.l.bf16 %v425
    %v776 = vunpack.c.h.bf16 %v425
    %v777 = vunpack.c.l.bf16 %v426
    %v778 = vunpack.c.h.bf16 %v426
    %v779 = vunpack.c.l.bf16 %v427
    %v780 = vunpack.c.l.bf16 %v428
    %v781 = vunpack.c.h.bf16 %v428
    %v782 = vunpack.c.l.bf16 %v429
    %v783 = vunpack.c.h.bf16 %v429
    %v784 = vunpack.c.l.bf16 %v430
    %v785 = vunpack.c.h.bf16 %v430
    %v786 = vunpack.c.l.bf16 %v431
    %v787 = vunpack.c.h.bf16 %v431
    %v788 = vunpack.c.l.bf16 %v432
    %v789 = vunpack.c.l.bf16 %v433
    %v790 = vunpack.c.h.bf16 %v433
    %v791 = vunpack.c.l.bf16 %v434
    %v792 = vunpack.c.h.bf16 %v434
    %v793 = vunpack.c.l.bf16 %v435
    %v794 = vunpack.c.h.bf16 %v435
    %v795 = vunpack.c.l.bf16 %v436
    %v796 = vunpack.c.h.bf16 %v436
    %v797 = vunpack.c.l.bf16 %v437
    %v798 = vunpack.c.l.bf16 %v438
    %v799 = vunpack.c.h.bf16 %v438
    %v800 = vunpack.c.l.bf16 %v439
    %v801 = vunpack.c.h.bf16 %v439
    %v802 = vunpack.c.l.bf16 %v440
    %v803 = vunpack.c.h.bf16 %v440
    %v804 = vunpack.c.l.bf16 %v441
    %v805 = vunpack.c.h.bf16 %v441
    %v806 = vunpack.c.l.bf16 %v442
    %v807 = vunpack.c.l.bf16 %v443
    %v808 = vunpack.c.h.bf16 %v443
    %v809 = vunpack.c.l.bf16 %v444
    %v810 = vunpack.c.h.bf16 %v444
    %v811 = vunpack.c.l.bf16 %v445
    %v812 = vunpack.c.h.bf16 %v445
    %v813 = vunpack.c.l.bf16 %v446
    %v814 = vunpack.c.h.bf16 %v446
    %v815 = vunpack.c.l.bf16 %v447
    %v816 = vunpack.c.l.bf16 %v448
    %v817 = vunpack.c.h.bf16 %v448
    %v818 = vunpack.c.l.bf16 %v449
    %v819 = vunpack.c.h.bf16 %v449
    %v820 = vunpack.c.l.bf16 %v450
    %v821 = vunpack.c.h.bf16 %v450
    %v822 = vunpack.c.l.bf16 %v451
    %v823 = vunpack.c.h.bf16 %v451
    %v824 = vunpack.c.l.bf16 %v452
    %v825 = vunpack.c.l.bf16 %v453
    %v826 = vunpack.c.h.bf16 %v453
    %v827 = vunpack.c.l.bf16 %v454
    %v828 = vunpack.c.h.bf16 %v454
    %v829 = vunpack.c.l.bf16 %v455
    %v830 = vunpack.c.h.bf16 %v455
    %v831 = vunpack.c.l.bf16 %v456
    %v832 = vunpack.c.h.bf16 %v456
    %v833 = vunpack.c.l.bf16 %v457
    %v834 = vunpack.c.l.bf16 %v458
    %v835 = vunpack.c.h.bf16 %v458
    %v836 = vunpack.c.l.bf16 %v459
    %v837 = vunpack.c.h.bf16 %v459
    %v838 = vunpack.c.l.bf16 %v460
    %v839 = vunpack.c.h.bf16 %v460
    %v840 = vunpack.c.l.bf16 %v461
    %v841 = vunpack.c.h.bf16 %v461
    %v842 = vunpack.c.l.bf16 %v462
    %v843 = vunpack.c.l.bf16 %v463
    %v844 = vunpack.c.h.bf16 %v463
    %v845 = vunpack.c.l.bf16 %v464
    %v846 = vunpack.c.h.bf16 %v464
    %v847 = vunpack.c.l.bf16 %v465
    %v848 = vunpack.c.h.bf16 %v465
    %v849 = vunpack.c.l.bf16 %v466
    %v850 = vunpack.c.h.bf16 %v466
    %v851 = vunpack.c.l.bf16 %v467
    %v852 = vunpack.c.l.bf16 %v468
    %v853 = vunpack.c.h.bf16 %v468
    %v854 = vunpack.c.l.bf16 %v469
    %v855 = vunpack.c.h.bf16 %v469
    %v856 = vunpack.c.l.bf16 %v470
    %v857 = vunpack.c.h.bf16 %v470
    %v858 = vunpack.c.l.bf16 %v471
    %v859 = vunpack.c.h.bf16 %v471
    %v860 = vunpack.c.l.bf16 %v472
    %v861 = vunpack.c.l.bf16 %v473
    %v862 = vunpack.c.h.bf16 %v473
    %v863 = vunpack.c.l.bf16 %v474
    %v864 = vunpack.c.h.bf16 %v474
    %v865 = vunpack.c.l.bf16 %v475
    %v866 = vunpack.c.h.bf16 %v475
    %v867 = vunpack.c.l.bf16 %v476
    %v868 = vunpack.c.h.bf16 %v476
    %v869 = vunpack.c.l.bf16 %v477
    %v870 = vunpack.c.l.bf16 %v478
    %v871 = vunpack.c.h.bf16 %v478
    %v872 = vunpack.c.l.bf16 %v479
    %v873 = vunpack.c.h.bf16 %v479
    %v874 = vunpack.c.l.bf16 %v480
    %v875 = vunpack.c.h.bf16 %v480
    %v876 = vunpack.c.l.bf16 %v481
    %v877 = vunpack.c.h.bf16 %v481
    %v878 = vunpack.c.l.bf16 %v482
    %v879 = vunpack.c.l.bf16 %v483
    %v880 = vunpack.c.h.bf16 %v483
    %v881 = vunpack.c.l.bf16 %v484
    %v882 = vunpack.c.h.bf16 %v484
    %v883 = vunpack.c.l.bf16 %v485
    %v884 = vunpack.c.h.bf16 %v485
    %v885 = vunpack.c.l.bf16 %v486
    %v886 = vunpack.c.h.bf16 %v486
    %v887 = vunpack.c.l.bf16 %v487
    %v888 = vunpack.c.l.bf16 %v488
    %v889 = vunpack.c.h.bf16 %v488
    %v890 = vunpack.c.l.bf16 %v489
    %v891 = vunpack.c.h.bf16 %v489
    %v892 = vunpack.c.l.bf16 %v490
    %v893 = vunpack.c.h.bf16 %v490
    %v894 = vunpack.c.l.bf16 %v491
    %v895 = vunpack.c.h.bf16 %v491
    %v896 = vunpack.c.l.bf16 %v492
    %v897 = vunpack.c.l.bf16 %v493
    %v898 = vunpack.c.h.bf16 %v493
    %v899 = vunpack.c.l.bf16 %v494
    %v900 = vunpack.c.h.bf16 %v494
    %v901 = vunpack.c.l.bf16 %v495
    %v902 = vunpack.c.h.bf16 %v495
    %v903 = vunpack.c.l.bf16 %v496
    %v904 = vunpack.c.h.bf16 %v496
    %v905 = vunpack.c.l.bf16 %v497
    %v906 = vunpack.c.l.bf16 %v498
    %v907 = vunpack.c.h.bf16 %v498
    %v908 = vunpack.c.l.bf16 %v499
    %v909 = vunpack.c.h.bf16 %v499
    %v910 = vunpack.c.l.bf16 %v500
    %v911 = vunpack.c.h.bf16 %v500
    %v912 = vunpack.c.l.bf16 %v501
    %v913 = vunpack.c.h.bf16 %v501
    %v914 = vunpack.c.l.bf16 %v502
    %v915 = vunpack.c.l.bf16 %v503
    %v916 = vunpack.c.h.bf16 %v503
    %v917 = vunpack.c.l.bf16 %v504
    %v918 = vunpack.c.h.bf16 %v504
    %v919 = vunpack.c.l.bf16 %v505
    %v920 = vunpack.c.h.bf16 %v505
    %v921 = vunpack.c.l.bf16 %v506
    %v922 = vunpack.c.h.bf16 %v506
    %v923 = vunpack.c.l.bf16 %v507
    %v924 = vunpack.c.l.bf16 %v508
    %v925 = vunpack.c.h.bf16 %v508
    %v926 = vunpack.c.l.bf16 %v509
    %v927 = vunpack.c.h.bf16 %v509
    %v928 = vunpack.c.l.bf16 %v510
    %v929 = vunpack.c.h.bf16 %v510
    %v930 = vunpack.c.l.bf16 %v511
    %v931 = vunpack.c.h.bf16 %v511
    %v932 = vunpack.c.l.bf16 %v512
    %v933 = vunpack.c.l.bf16 %v513
    %v934 = vunpack.c.h.bf16 %v513
    %v935 = vunpack.c.l.bf16 %v514
    %v936 = vunpack.c.h.bf16 %v514
    %v937 = vunpack.c.l.bf16 %v515
    %v938 = vunpack.c.h.bf16 %v515
    %v939 = vunpack.c.l.bf16 %v516
    %v940 = vunpack.c.h.bf16 %v516
    %v941 = vunpack.c.l.bf16 %v517
    %v942 = vunpack.c.l.bf16 %v518
    %v943 = vunpack.c.h.bf16 %v518
    %v944 = vunpack.c.l.bf16 %v519
    %v945 = vunpack.c.h.bf16 %v519
    %v946 = vunpack.c.l.bf16 %v520
    %v947 = vunpack.c.h.bf16 %v520
    %v948 = vunpack.c.l.bf16 %v521
    %v949 = vunpack.c.h.bf16 %v521
    %v950 = vunpack.c.l.bf16 %v522
    %v951 = vunpack.c.l.bf16 %v523
    %v952 = vunpack.c.h.bf16 %v523
    %v953 = vunpack.c.l.bf16 %v524
    %v954 = vunpack.c.h.bf16 %v524
    %v955 = vunpack.c.l.bf16 %v525
    %v956 = vunpack.c.h.bf16 %v525
    %v957 = vunpack.c.l.bf16 %v526
    %v958 = vunpack.c.h.bf16 %v526
    %v959 = vunpack.c.l.bf16 %v527
    %v960 = vunpack.c.l.bf16 %v528
    %v961 = vunpack.c.h.bf16 %v528
    %v962 = vunpack.c.l.bf16 %v529
    %v963 = vunpack.c.h.bf16 %v529
    %v964 = vunpack.c.l.bf16 %v530
    %v965 = vunpack.c.h.bf16 %v530
    %v966 = vunpack.c.l.bf16 %v531
    %v967 = vunpack.c.h.bf16 %v531
    %v968 = vunpack.c.l.bf16 %v532
    %v969 = vunpack.c.l.bf16 %v533
    %v970 = vunpack.c.h.bf16 %v533
    %v971 = vunpack.c.l.bf16 %v534
    %v972 = vunpack.c.h.bf16 %v534
    %v973 = vunpack.c.l.bf16 %v535
    %v974 = vunpack.c.h.bf16 %v535
    %v975 = vunpack.c.l.bf16 %v536
    %v976 = vunpack.c.h.bf16 %v536
    %v977 = vunpack.c.l.bf16 %v537
    %v978 = vunpack.c.l.bf16 %v538
    %v979 = vunpack.c.h.bf16 %v538
    %v980 = vunpack.c.l.bf16 %v539
    %v981 = vunpack.c.h.bf16 %v539
    %v982 = vunpack.c.l.bf16 %v540
    %v983 = vunpack.c.h.bf16 %v540
    %v984 = vunpack.c.l.bf16 %v541
    %v985 = vunpack.c.h.bf16 %v541
    %v986 = vunpack.c.l.bf16 %v542
    %v987 = vunpack.c.l.bf16 %v543
    %v988 = vunpack.c.h.bf16 %v543
    %v989 = vunpack.c.l.bf16 %v544
    %v990 = vunpack.c.h.bf16 %v544
    %v991 = vunpack.c.l.bf16 %v545
    %v992 = vunpack.c.h.bf16 %v545
    %v993 = vunpack.c.l.bf16 %v546
    %v994 = vunpack.c.h.bf16 %v546
    %v995 = vunpack.c.l.bf16 %v547
    %v996 = vunpack.c.l.bf16 %v548
    %v997 = vunpack.c.h.bf16 %v548
    %v998 = vunpack.c.l.bf16 %v549
    %v999 = vunpack.c.h.bf16 %v549
    %v1000 = vunpack.c.l.bf16 %v550
    %v1001 = vunpack.c.h.bf16 %v550
    %v1002 = vunpack.c.l.bf16 %v551
    %v1003 = vunpack.c.h.bf16 %v551
    %v1004 = vunpack.c.l.bf16 %v552
    %v1005 = vunpack.c.l.bf16 %v553
    %v1006 = vunpack.c.h.bf16 %v553
    %v1007 = vunpack.c.l.bf16 %v554
    %v1008 = vunpack.c.h.bf16 %v554
    %v1009 = vunpack.c.l.bf16 %v555
    %v1010 = vunpack.c.h.bf16 %v555
    %v1011 = vunpack.c.l.bf16 %v556
    %v1012 = vunpack.c.h.bf16 %v556
    %v1013 = vunpack.c.l.bf16 %v557
    %v1014 = vunpack.c.l.bf16 %v558
    %v1015 = vunpack.c.h.bf16 %v558
    %v1016 = vunpack.c.l.bf16 %v559
    %v1017 = vunpack.c.h.bf16 %v559
    %v1018 = vunpack.c.l.bf16 %v560
    %v1019 = vunpack.c.h.bf16 %v560
    %v1020 = vunpack.c.l.bf16 %v561
    %v1021 = vunpack.c.h.bf16 %v561
    %v1022 = vunpack.c.l.bf16 %v562
    %v1023 = vunpack.c.l.bf16 %v563
    %v1024 = vunpack.c.h.bf16 %v563
    %v1025 = vunpack.c.l.bf16 %v564
    %v1026 = vunpack.c.h.bf16 %v564
    %v1027 = vunpack.c.l.bf16 %v565
    %v1028 = vunpack.c.h.bf16 %v565
    %v1029 = vunpack.c.l.bf16 %v566
    %v1030 = vunpack.c.h.bf16 %v566
    %v1031 = vunpack.c.l.bf16 %v567
    %v1032 = vunpack.c.l.bf16 %v568
    %v1033 = vunpack.c.h.bf16 %v568
    %v1034 = vunpack.c.l.bf16 %v569
    %v1035 = vunpack.c.h.bf16 %v569
    %v1036 = vunpack.c.l.bf16 %v570
    %v1037 = vunpack.c.h.bf16 %v570
    %v1038 = vunpack.c.l.bf16 %v571
    %v1039 = vunpack.c.h.bf16 %v571
    %v1040 = vunpack.c.l.bf16 %v572
    %v1041 = vunpack.c.l.bf16 %v573
    %v1042 = vunpack.c.h.bf16 %v573
    %v1043 = vunpack.c.l.bf16 %v574
    %v1044 = vunpack.c.h.bf16 %v574
    %v1045 = vunpack.c.l.bf16 %v575
    %v1046 = vunpack.c.h.bf16 %v575
    %v1047 = vunpack.c.l.bf16 %v576
    %v1048 = vunpack.c.h.bf16 %v576
    %v1049 = vunpack.c.l.bf16 %v577
    %v1050 = vunpack.c.l.bf16 %v578
    %v1051 = vunpack.c.h.bf16 %v578
    %v1052 = vunpack.c.l.bf16 %v579
    %v1053 = vunpack.c.h.bf16 %v579
    %v1054 = vunpack.c.l.bf16 %v580
    %v1055 = vunpack.c.h.bf16 %v580
    %v1056 = vunpack.c.l.bf16 %v581
    %v1057 = vunpack.c.h.bf16 %v581
    %v1058 = vunpack.c.l.bf16 %v582
    %v1059 = vunpack.c.l.bf16 %v583
    %v1060 = vunpack.c.h.bf16 %v583
    %v1061 = vunpack.c.l.bf16 %v584
    %v1062 = vunpack.c.h.bf16 %v584
    %v1063 = vunpack.c.l.bf16 %v585
    %v1064 = vunpack.c.h.bf16 %v585
    %v1065 = vunpack.c.l.bf16 %v586
    %v1066 = vunpack.c.h.bf16 %v586
    %v1067 = vunpack.c.l.bf16 %v587
    %v1068 = vunpack.c.l.bf16 %v588
    %v1069 = vunpack.c.h.bf16 %v588
    %v1070 = vunpack.c.l.bf16 %v589
    %v1071 = vunpack.c.h.bf16 %v589
    %v1072 = vunpack.c.l.bf16 %v590
    %v1073 = vunpack.c.h.bf16 %v590
    %v1074 = vunpack.c.l.bf16 %v591
    %v1075 = vunpack.c.h.bf16 %v591
    %v1076 = vunpack.c.l.bf16 %v592
    %v1077 = vunpack.c.l.bf16 %v593
    %v1078 = vunpack.c.h.bf16 %v593
    %v1079 = vunpack.c.l.bf16 %v594
    %v1080 = vunpack.c.h.bf16 %v594
    %v1081 = vunpack.c.l.bf16 %v595
    %v1082 = vunpack.c.h.bf16 %v595
    %v1083 = vunpack.c.l.bf16 %v596
    %v1084 = vunpack.c.h.bf16 %v596
    %v1085 = vunpack.c.l.bf16 %v597
    %v1086 = vunpack.c.l.bf16 %v598
    %v1087 = vunpack.c.h.bf16 %v598
    %v1088 = vunpack.c.l.bf16 %v599
    %v1089 = vunpack.c.h.bf16 %v599
    %v1090 = vunpack.c.l.bf16 %v600
    %v1091 = vunpack.c.h.bf16 %v600
    %v1092 = vunpack.c.l.bf16 %v601
    %v1093 = vunpack.c.h.bf16 %v601
    %v1094 = vunpack.c.l.bf16 %v602
    %v1095 = vunpack.c.l.bf16 %v603
    %v1096 = vunpack.c.h.bf16 %v603
    %v1097 = vunpack.c.l.bf16 %v604
    %v1098 = vunpack.c.h.bf16 %v604
    %v1099 = vunpack.c.l.bf16 %v605
    %v1100 = vunpack.c.h.bf16 %v605
    %v1101 = vunpack.c.l.bf16 %v606
    %v1102 = vunpack.c.h.bf16 %v606
    %v1103 = vunpack.c.l.bf16 %v607
    %v1104 = vunpack.c.l.bf16 %v608
    %v1105 = vunpack.c.h.bf16 %v608
    %v1106 = vunpack.c.l.bf16 %v609
    %v1107 = vunpack.c.h.bf16 %v609
    %v1108 = vunpack.c.l.bf16 %v610
    %v1109 = vunpack.c.h.bf16 %v610
    %v1110 = vunpack.c.l.bf16 %v611
    %v1111 = vunpack.c.h.bf16 %v611
    %v1112 = vunpack.c.l.bf16 %v612
    %v1113 = vunpack.c.l.bf16 %v613
    %v1114 = vunpack.c.h.bf16 %v613
    %v1115 = vunpack.c.l.bf16 %v614
    %v1116 = vunpack.c.h.bf16 %v614
    %v1117 = vunpack.c.l.bf16 %v615
    %v1118 = vunpack.c.h.bf16 %v615
    %v1119 = vunpack.c.l.bf16 %v616
    %v1120 = vunpack.c.h.bf16 %v616
    %v1121 = vunpack.c.l.bf16 %v617
    %v1122 = vunpack.c.l.bf16 %v618
    %v1123 = vunpack.c.h.bf16 %v618
    %v1124 = vunpack.c.l.bf16 %v619
    %v1125 = vunpack.c.h.bf16 %v619
    %v1126 = vunpack.c.l.bf16 %v620
    %v1127 = vunpack.c.h.bf16 %v620
    %v1128 = vunpack.c.l.bf16 %v621
    %v1129 = vunpack.c.h.bf16 %v621
    %v1130 = vunpack.c.l.bf16 %v622
    %v1131 = vunpack.c.l.bf16 %v623
    %v1132 = vunpack.c.h.bf16 %v623
    %v1133 = vunpack.c.l.bf16 %v624
    %v1134 = vunpack.c.h.bf16 %v624
    %v1135 = vunpack.c.l.bf16 %v625
    %v1136 = vunpack.c.h.bf16 %v625
    %v1137 = vunpack.c.l.bf16 %v626
    %v1138 = vunpack.c.h.bf16 %v626
    %v1139 = vunpack.c.l.bf16 %v627
    %v1140 = vunpack.c.l.bf16 %v628
    %v1141 = vunpack.c.h.bf16 %v628
    %v1142 = vunpack.c.l.bf16 %v629
    %v1143 = vunpack.c.h.bf16 %v629
    %v1144 = vunpack.c.l.bf16 %v630
    %v1145 = vunpack.c.h.bf16 %v630
    %v1146 = vunpack.c.l.bf16 %v631
    %v1147 = vunpack.c.h.bf16 %v631
    %v1148 = vunpack.c.l.bf16 %v632
    %v1149 = vunpack.c.l.bf16 %v633
    %v1150 = vunpack.c.h.bf16 %v633
    %v1151 = vunpack.c.l.bf16 %v634
    %v1152 = vunpack.c.h.bf16 %v634
    %v1153 = vunpack.c.l.bf16 %v635
    %v1154 = vunpack.c.h.bf16 %v635
    %v1155 = vunpack.c.l.bf16 %v636
    %v1156 = vunpack.c.h.bf16 %v636
    %v1157 = vunpack.c.l.bf16 %v637
    %v1158 = vunpack.c.l.bf16 %v638
    %v1159 = vunpack.c.h.bf16 %v638
    %v1160 = vunpack.c.l.bf16 %v639
    %v1161 = vunpack.c.h.bf16 %v639
    %v1162 = vunpack.c.l.bf16 %v640
    %v1163 = vunpack.c.h.bf16 %v640
    %v1164 = vunpack.c.l.bf16 %v641
    %v1165 = vunpack.c.h.bf16 %v641
    %v1166 = vunpack.c.l.bf16 %v642
    %v1167 = vunpack.c.l.bf16 %v643
    %v1168 = vunpack.c.h.bf16 %v643
    %v1169 = vunpack.c.l.bf16 %v644
    %v1170 = vunpack.c.h.bf16 %v644
    %v1171 = vunpack.c.l.bf16 %v645
    %v1172 = vunpack.c.h.bf16 %v645
    %v1173 = vunpack.c.l.bf16 %v646
    %v1174 = vunpack.c.h.bf16 %v646
    %v1175 = vunpack.c.l.bf16 %v647
    %v1176 = vunpack.c.l.bf16 %v648
    %v1177 = vunpack.c.h.bf16 %v648
    %v1178 = vunpack.c.l.bf16 %v649
    %v1179 = vunpack.c.h.bf16 %v649
    %v1180 = vunpack.c.l.bf16 %v650
    %v1181 = vunpack.c.h.bf16 %v650
    %v1182 = vunpack.c.l.bf16 %v651
    %v1183 = vunpack.c.h.bf16 %v651
    %v1184 = vunpack.c.l.bf16 %v652
    %v1185 = vunpack.c.l.bf16 %v653
    %v1186 = vunpack.c.h.bf16 %v653
    %v1187 = vunpack.c.l.bf16 %v654
    %v1188 = vunpack.c.h.bf16 %v654
    %v1189 = vunpack.c.l.bf16 %v655
    %v1190 = vunpack.c.h.bf16 %v655
    %v1191 = vunpack.c.l.bf16 %v656
    %v1192 = vunpack.c.h.bf16 %v656
    %v1193 = vunpack.c.l.bf16 %v657
    %v1194 = vunpack.c.l.bf16 %v658
    %v1195 = vunpack.c.h.bf16 %v658
    %v1196 = vunpack.c.l.bf16 %v659
    %v1197 = vunpack.c.h.bf16 %v659
    %v1198 = vunpack.c.l.bf16 %v660
    %v1199 = vunpack.c.h.bf16 %v660
    %v1200 = vunpack.c.l.bf16 %v661
    %v1201 = vunpack.c.h.bf16 %v661
    %v1202 = vunpack.c.l.bf16 %v662
    %v1203 = vunpack.c.l.bf16 %v663
    %v1204 = vunpack.c.h.bf16 %v663
    %v1205 = vunpack.c.l.bf16 %v664
    %v1206 = vunpack.c.h.bf16 %v664
    %v1207 = vunpack.c.l.bf16 %v665
    %v1208 = vunpack.c.h.bf16 %v665
    %v1209 = vunpack.c.l.bf16 %v666
    %v1210 = vunpack.c.h.bf16 %v666
    %v1211 = vunpack.c.l.bf16 %v667
    %v1212 = vunpack.c.l.bf16 %v668
    %v1213 = vunpack.c.h.bf16 %v668
    %v1214 = vunpack.c.l.bf16 %v669
    %v1215 = vunpack.c.h.bf16 %v669
    %v1216 = vunpack.c.l.bf16 %v670
    %v1217 = vunpack.c.h.bf16 %v670
    %v1218 = vunpack.c.l.bf16 %v671
    %v1219 = vunpack.c.h.bf16 %v671
    %v1220 = vunpack.c.l.bf16 %v672
    %v1221 = vunpack.c.l.bf16 %v673
    %v1222 = vunpack.c.h.bf16 %v673
    %v1223 = vunpack.c.l.bf16 %v674
    %v1224 = vunpack.c.h.bf16 %v674
    %v1225 = vunpack.c.l.bf16 %v675
    %v1226 = vunpack.c.h.bf16 %v675
    %v1227 = vunpack.c.l.bf16 %v676
    %v1228 = vunpack.c.h.bf16 %v676
    %v1229 = vunpack.c.l.bf16 %v677
    %v1230 = vunpack.c.l.bf16 %v678
    %v1231 = vunpack.c.h.bf16 %v678
    %v1232 = vunpack.c.l.bf16 %v679
    %v1233 = vunpack.c.h.bf16 %v679
    %v1234 = vunpack.c.l.bf16 %v680
    %v1235 = vunpack.c.h.bf16 %v680
    %v1236 = vunpack.c.l.bf16 %v681
    %v1237 = vunpack.c.h.bf16 %v681
    %v1238 = vunpack.c.l.bf16 %v682
    %v1239 = vunpack.c.l.bf16 %v683
    %v1240 = vunpack.c.h.bf16 %v683
    %v1241 = vunpack.c.l.bf16 %v684
    %v1242 = vunpack.c.h.bf16 %v684
    %v1243 = vunpack.c.l.bf16 %v685
    %v1244 = vunpack.c.h.bf16 %v685
    %v1245 = vunpack.c.l.bf16 %v686
    %v1246 = vunpack.c.h.bf16 %v686
    %v1247 = vunpack.c.l.bf16 %v687
    %v1248 = vunpack.c.l.bf16 %v688
    %v1249 = vunpack.c.h.bf16 %v688
    %v1250 = vunpack.c.l.bf16 %v689
    %v1251 = vunpack.c.h.bf16 %v689
    %v1252 = vunpack.c.l.bf16 %v690
    %v1253 = vunpack.c.h.bf16 %v690
    %v1254 = vunpack.c.l.bf16 %v691
    %v1255 = vunpack.c.h.bf16 %v691
    %v1256 = vunpack.c.l.bf16 %v692
    %v1257 = vunpack.c.l.bf16 %v693
    %v1258 = vunpack.c.h.bf16 %v693
    %v1259 = vunpack.c.l.bf16 %v694
    %v1260 = vunpack.c.h.bf16 %v694
    %v1261 = vunpack.c.l.bf16 %v695
    %v1262 = vunpack.c.h.bf16 %v695
    %v1263 = vunpack.c.l.bf16 %v696
    %v1264 = vunpack.c.h.bf16 %v696
    %v1265 = vunpack.c.l.bf16 %v697
    %v1266 = vunpack.c.l.bf16 %v698
    %v1267 = vunpack.c.h.bf16 %v698
    %v1268 = vunpack.c.l.bf16 %v699
    %v1269 = vunpack.c.h.bf16 %v699
    %v1270 = vunpack.c.l.bf16 %v700
    %v1271 = vunpack.c.h.bf16 %v700
    %v1272 = vunpack.c.l.bf16 %v701
    %v1273 = vunpack.c.h.bf16 %v701
    %v1274 = vunpack.c.l.bf16 %v702
    %v1275 = vunpack.c.l.bf16 %v703
    %v1276 = vunpack.c.h.bf16 %v703
    %v1277 = vunpack.c.l.bf16 %v704
    %v1278 = vunpack.c.h.bf16 %v704
    %v1279 = vunpack.c.l.bf16 %v705
    %v1280 = vunpack.c.h.bf16 %v705
    %v1281 = vunpack.c.l.bf16 %v706
    %v1282 = vunpack.c.h.bf16 %v706
    %v1283 = vunpack.c.l.bf16 %v707
    %1284 = vmatprep.subr.mxu0 %v709
    %1285 = vmatpush1.msra.mxu0 %v708
    %1286 = vmatprep.subr.mxu0 %v718
    %1287 = vmatpush1.msra.mxu0 %v717
    %1288 = vmatprep.subr.mxu0 %v727
    %1289 = vmatpush1.msra.mxu0 %v726
    %1290 = vmatprep.subr.mxu0 %v736
    %1291 = vmatpush1.msra.mxu0 %v735
    %1292 = vmatprep.subr.mxu0 %v745
    %1293 = vmatpush1.msra.mxu0 %v744
    %1294 = vmatprep.subr.mxu0 %v754
    %1295 = vmatpush1.msra.mxu0 %v753
    %1296 = vmatprep.subr.mxu0 %v763
    %1297 = vmatpush1.msra.mxu0 %v762
    %1298 = vmatprep.subr.mxu0 %v772
    %1299 = vmatpush1.msra.mxu0 %v771
    %1300 = vmatprep.subr.mxu0 %v781
    %1301 = vmatpush1.msra.mxu0 %v780
    %1302 = vmatprep.subr.mxu0 %v790
    %1303 = vmatpush1.msra.mxu0 %v789
    %1304 = vmatprep.subr.mxu0 %v799
    %1305 = vmatpush1.msra.mxu0 %v798
    %1306 = vmatprep.subr.mxu0 %v808
    %1307 = vmatpush1.msra.mxu0 %v807
    %1308 = vmatprep.subr.mxu0 %v817
    %1309 = vmatpush1.msra.mxu0 %v816
    %1310 = vmatprep.subr.mxu0 %v826
    %1311 = vmatpush1.msra.mxu0 %v825
    %1312 = vmatprep.subr.mxu0 %v835
    %1313 = vmatpush1.msra.mxu0 %v834
    %1314 = vmatprep.subr.mxu0 %v844
    %1315 = vmatpush1.msra.mxu0 %v843
    %1316 = vmatprep.subr.mxu0 %v853
    %1317 = vmatpush1.msra.mxu0 %v852
    %1318 = vmatprep.subr.mxu0 %v862
    %1319 = vmatpush1.msra.mxu0 %v861
    %1320 = vmatprep.subr.mxu0 %v871
    %1321 = vmatpush1.msra.mxu0 %v870
    %1322 = vmatprep.subr.mxu0 %v880
    %1323 = vmatpush1.msra.mxu0 %v879
    %1324 = vmatprep.subr.mxu0 %v889
    %1325 = vmatpush1.msra.mxu0 %v888
    %1326 = vmatprep.subr.mxu0 %v898
    %1327 = vmatpush1.msra.mxu0 %v897
    %1328 = vmatprep.subr.mxu0 %v907
    %1329 = vmatpush1.msra.mxu0 %v906
    %1330 = vmatprep.subr.mxu0 %v916
    %1331 = vmatpush1.msra.mxu0 %v915
    %1332 = vmatprep.subr.mxu0 %v925
    %1333 = vmatpush1.msra.mxu0 %v924
    %1334 = vmatprep.subr.mxu0 %v934
    %1335 = vmatpush1.msra.mxu0 %v933
    %1336 = vmatprep.subr.mxu0 %v943
    %1337 = vmatpush1.msra.mxu0 %v942
    %1338 = vmatprep.subr.mxu0 %v952
    %1339 = vmatpush1.msra.mxu0 %v951
    %1340 = vmatprep.subr.mxu0 %v961
    %1341 = vmatpush1.msra.mxu0 %v960
    %1342 = vmatprep.subr.mxu0 %v970
    %1343 = vmatpush1.msra.mxu0 %v969
    %1344 = vmatprep.subr.mxu0 %v979
    %1345 = vmatpush1.msra.mxu0 %v978
    %1346 = vmatprep.subr.mxu0 %v988
    %1347 = vmatpush1.msra.mxu0 %v987
    %1348 = vmatprep.mubr.f32.mxu0 %v381
    %1349 = vmatmul.mubr.f32.gmra.mrb[0].mxu0 %v380
    %v1350 = vpop.f32.mrb[0].mxu0
    %v1351 = vadd.f32 0.0, %v1350
    %v1352 = vpop.f32.mrb[0].mxu0
    %v1353 = vadd.f32 0.0, %v1352
    %1354 = vmatprep.mubr.f32.mxu0 %v385
    %1355 = vmatmul.mubr.f32.gmra.mrb[0].mxu0 %v384
    %v1356 = vpop.f32.mrb[0].mxu0
    %v1357 = vadd.f32 0.0, %v1356
    %v1358 = vpop.f32.mrb[0].mxu0
    %v1359 = vadd.f32 0.0, %v1358
    %1360 = vdwg.mxu0
    %1361 = vmatprep.subr.mxu0 %v997
    %1362 = vmatpush1.msra.mxu0 %v996
    %1363 = vmatprep.subr.mxu0 %v1006
    %1364 = vmatpush1.msra.mxu0 %v1005
    %1365 = vmatprep.subr.mxu0 %v1015
    %1366 = vmatpush1.msra.mxu0 %v1014
    %1367 = vmatprep.subr.mxu0 %v1024
    %1368 = vmatpush1.msra.mxu0 %v1023
    %1369 = vmatprep.subr.mxu0 %v1033
    %1370 = vmatpush1.msra.mxu0 %v1032
    %1371 = vmatprep.subr.mxu0 %v1042
    %1372 = vmatpush1.msra.mxu0 %v1041
    %1373 = vmatprep.subr.mxu0 %v1051
    %1374 = vmatpush1.msra.mxu0 %v1050
    %1375 = vmatprep.subr.mxu0 %v1060
    %1376 = vmatpush1.msra.mxu0 %v1059
    %1377 = vmatprep.subr.mxu0 %v1069
    %1378 = vmatpush1.msra.mxu0 %v1068
    %1379 = vmatprep.subr.mxu0 %v1078
    %1380 = vmatpush1.msra.mxu0 %v1077
    %1381 = vmatprep.subr.mxu0 %v1087
    %1382 = vmatpush1.msra.mxu0 %v1086
    %1383 = vmatprep.subr.mxu0 %v1096
    %1384 = vmatpush1.msra.mxu0 %v1095
    %1385 = vmatprep.subr.mxu0 %v1105
    %1386 = vmatpush1.msra.mxu0 %v1104
    %1387 = vmatprep.subr.mxu0 %v1114
    %1388 = vmatpush1.msra.mxu0 %v1113
    %1389 = vmatprep.subr.mxu0 %v1123
    %1390 = vmatpush1.msra.mxu0 %v1122
    %1391 = vmatprep.subr.mxu0 %v1132
    %1392 = vmatpush1.msra.mxu0 %v1131
    %1393 = vmatprep.subr.mxu0 %v1141
    %1394 = vmatpush1.msra.mxu0 %v1140
    %1395 = vmatprep.subr.mxu0 %v1150
    %1396 = vmatpush1.msra.mxu0 %v1149
    %1397 = vmatprep.subr.mxu0 %v1159
    %1398 = vmatpush1.msra.mxu0 %v1158
    %1399 = vmatprep.subr.mxu0 %v1168
    %1400 = vmatpush1.msra.mxu0 %v1167
    %1401 = vmatprep.subr.mxu0 %v1177
    %1402 = vmatpush1.msra.mxu0 %v1176
    %1403 = vmatprep.subr.mxu0 %v1186
    %1404 = vmatpush1.msra.mxu0 %v1185
    %1405 = vmatprep.subr.mxu0 %v1195
    %1406 = vmatpush1.msra.mxu0 %v1194
    %1407 = vmatprep.subr.mxu0 %v1204
    %1408 = vmatpush1.msra.mxu0 %v1203
    %1409 = vmatprep.subr.mxu0 %v1213
    %1410 = vmatpush1.msra.mxu0 %v1212
    %1411 = vmatprep.subr.mxu0 %v1222
    %1412 = vmatpush1.msra.mxu0 %v1221
    %1413 = vmatprep.subr.mxu0 %v1231
    %1414 = vmatpush1.msra.mxu0 %v1230
    %1415 = vmatprep.subr.mxu0 %v1240
    %1416 = vmatpush1.msra.mxu0 %v1239
    %1417 = vmatprep.subr.mxu0 %v1249
    %1418 = vmatpush1.msra.mxu0 %v1248
    %1419 = vmatprep.subr.mxu0 %v1258
    %1420 = vmatpush1.msra.mxu0 %v1257
    %1421 = vmatprep.subr.mxu0 %v1267
    %1422 = vmatpush1.msra.mxu0 %v1266
    %1423 = vmatprep.subr.mxu0 %v1276
    %1424 = vmatpush1.msra.mxu0 %v1275
    %1425 = vmatprep.mubr.f32.mxu0 %v383
    %1426 = vmatmul.mubr.f32.gmra.mrb[0].mxu0 %v382
    %v1427 = vpop.f32.mrb[0].mxu0
    %v1428 = vadd.f32 %v1351, %v1427
    %v1429 = vpop.f32.mrb[0].mxu0
    %v1430 = vadd.f32 %v1353, %v1429
    %1431 = vmatprep.mubr.f32.mxu0 %v387
    %1432 = vmatmul.mubr.f32.gmra.mrb[0].mxu0 %v386
    %v1433 = vpop.f32.mrb[0].mxu0
    %v1434 = vadd.f32 %v1357, %v1433
    %v1435 = vpop.f32.mrb[0].mxu0
    %v1436 = vadd.f32 %v1359, %v1435
    %1437 = vdwg.mxu0
    %1438 = vmatprep.subr.mxu0 %v711
    %1439 = vmatpush1.msra.mxu0 %v710
    %1440 = vmatprep.subr.mxu0 %v720
    %1441 = vmatpush1.msra.mxu0 %v719
    %1442 = vmatprep.subr.mxu0 %v729
    %1443 = vmatpush1.msra.mxu0 %v728
    %1444 = vmatprep.subr.mxu0 %v738
    %1445 = vmatpush1.msra.mxu0 %v737
    %1446 = vmatprep.subr.mxu0 %v747
    %1447 = vmatpush1.msra.mxu0 %v746
    %1448 = vmatprep.subr.mxu0 %v756
    %1449 = vmatpush1.msra.mxu0 %v755
    %1450 = vmatprep.subr.mxu0 %v765
    %1451 = vmatpush1.msra.mxu0 %v764
    %1452 = vmatprep.subr.mxu0 %v774
    %1453 = vmatpush1.msra.mxu0 %v773
    %1454 = vmatprep.subr.mxu0 %v783
    %1455 = vmatpush1.msra.mxu0 %v782
    %1456 = vmatprep.subr.mxu0 %v792
    %1457 = vmatpush1.msra.mxu0 %v791
    %1458 = vmatprep.subr.mxu0 %v801
    %1459 = vmatpush1.msra.mxu0 %v800
    %1460 = vmatprep.subr.mxu0 %v810
    %1461 = vmatpush1.msra.mxu0 %v809
    %1462 = vmatprep.subr.mxu0 %v819
    %1463 = vmatpush1.msra.mxu0 %v818
    %1464 = vmatprep.subr.mxu0 %v828
    %1465 = vmatpush1.msra.mxu0 %v827
    %1466 = vmatprep.subr.mxu0 %v837
    %1467 = vmatpush1.msra.mxu0 %v836
    %1468 = vmatprep.subr.mxu0 %v846
    %1469 = vmatpush1.msra.mxu0 %v845
    %1470 = vmatprep.subr.mxu0 %v855
    %1471 = vmatpush1.msra.mxu0 %v854
    %1472 = vmatprep.subr.mxu0 %v864
    %1473 = vmatpush1.msra.mxu0 %v863
    %1474 = vmatprep.subr.mxu0 %v873
    %1475 = vmatpush1.msra.mxu0 %v872
    %1476 = vmatprep.subr.mxu0 %v882
    %1477 = vmatpush1.msra.mxu0 %v881
    %1478 = vmatprep.subr.mxu0 %v891
    %1479 = vmatpush1.msra.mxu0 %v890
    %1480 = vmatprep.subr.mxu0 %v900
    %1481 = vmatpush1.msra.mxu0 %v899
    %1482 = vmatprep.subr.mxu0 %v909
    %1483 = vmatpush1.msra.mxu0 %v908
    %1484 = vmatprep.subr.mxu0 %v918
    %1485 = vmatpush1.msra.mxu0 %v917
    %1486 = vmatprep.subr.mxu0 %v927
    %1487 = vmatpush1.msra.mxu0 %v926
    %1488 = vmatprep.subr.mxu0 %v936
    %1489 = vmatpush1.msra.mxu0 %v935
    %1490 = vmatprep.subr.mxu0 %v945
    %1491 = vmatpush1.msra.mxu0 %v944
    %1492 = vmatprep.subr.mxu0 %v954
    %1493 = vmatpush1.msra.mxu0 %v953
    %1494 = vmatprep.subr.mxu0 %v963
    %1495 = vmatpush1.msra.mxu0 %v962
    %1496 = vmatprep.subr.mxu0 %v972
    %1497 = vmatpush1.msra.mxu0 %v971
    %1498 = vmatprep.subr.mxu0 %v981
    %1499 = vmatpush1.msra.mxu0 %v980
    %1500 = vmatprep.subr.mxu0 %v990
    %1501 = vmatpush1.msra.mxu0 %v989
    %1502 = vmatprep.mubr.f32.mxu0 %v381
    %1503 = vmatmul.mubr.f32.gmra.mrb[0].mxu0 %v380
    %v1504 = vpop.f32.mrb[0].mxu0
    %v1505 = vadd.f32 0.0, %v1504
    %v1506 = vpop.f32.mrb[0].mxu0
    %v1507 = vadd.f32 0.0, %v1506
    %1508 = vmatprep.mubr.f32.mxu0 %v385
    %1509 = vmatmul.mubr.f32.gmra.mrb[0].mxu0 %v384
    %v1510 = vpop.f32.mrb[0].mxu0
    %v1511 = vadd.f32 0.0, %v1510
    %v1512 = vpop.f32.mrb[0].mxu0
    %v1513 = vadd.f32 0.0, %v1512
    %1514 = vdwg.mxu0
    %1515 = vmatprep.subr.mxu0 %v999
    %1516 = vmatpush1.msra.mxu0 %v998
    %1517 = vmatprep.subr.mxu0 %v1008
    %1518 = vmatpush1.msra.mxu0 %v1007
    %1519 = vmatprep.subr.mxu0 %v1017
    %1520 = vmatpush1.msra.mxu0 %v1016
    %1521 = vmatprep.subr.mxu0 %v1026
    %1522 = vmatpush1.msra.mxu0 %v1025
    %1523 = vmatprep.subr.mxu0 %v1035
    %1524 = vmatpush1.msra.mxu0 %v1034
    %1525 = vmatprep.subr.mxu0 %v1044
    %1526 = vmatpush1.msra.mxu0 %v1043
    %1527 = vmatprep.subr.mxu0 %v1053
    %1528 = vmatpush1.msra.mxu0 %v1052
    %1529 = vmatprep.subr.mxu0 %v1062
    %1530 = vmatpush1.msra.mxu0 %v1061
    %1531 = vmatprep.subr.mxu0 %v1071
    %1532 = vmatpush1.msra.mxu0 %v1070
    %1533 = vmatprep.subr.mxu0 %v1080
    %1534 = vmatpush1.msra.mxu0 %v1079
    %1535 = vmatprep.subr.mxu0 %v1089
    %1536 = vmatpush1.msra.mxu0 %v1088
    %1537 = vmatprep.subr.mxu0 %v1098
    %1538 = vmatpush1.msra.mxu0 %v1097
    %1539 = vmatprep.subr.mxu0 %v1107
    %1540 = vmatpush1.msra.mxu0 %v1106
    %1541 = vmatprep.subr.mxu0 %v1116
    %1542 = vmatpush1.msra.mxu0 %v1115
    %1543 = vmatprep.subr.mxu0 %v1125
    %1544 = vmatpush1.msra.mxu0 %v1124
    %1545 = vmatprep.subr.mxu0 %v1134
    %1546 = vmatpush1.msra.mxu0 %v1133
    %1547 = vmatprep.subr.mxu0 %v1143
    %1548 = vmatpush1.msra.mxu0 %v1142
    %1549 = vmatprep.subr.mxu0 %v1152
    %1550 = vmatpush1.msra.mxu0 %v1151
    %1551 = vmatprep.subr.mxu0 %v1161
    %1552 = vmatpush1.msra.mxu0 %v1160
    %1553 = vmatprep.subr.mxu0 %v1170
    %1554 = vmatpush1.msra.mxu0 %v1169
    %1555 = vmatprep.subr.mxu0 %v1179
    %1556 = vmatpush1.msra.mxu0 %v1178
    %1557 = vmatprep.subr.mxu0 %v1188
    %1558 = vmatpush1.msra.mxu0 %v1187
    %1559 = vmatprep.subr.mxu0 %v1197
    %1560 = vmatpush1.msra.mxu0 %v1196
    %1561 = vmatprep.subr.mxu0 %v1206
    %1562 = vmatpush1.msra.mxu0 %v1205
    %1563 = vmatprep.subr.mxu0 %v1215
    %1564 = vmatpush1.msra.mxu0 %v1214
    %1565 = vmatprep.subr.mxu0 %v1224
    %1566 = vmatpush1.msra.mxu0 %v1223
    %1567 = vmatprep.subr.mxu0 %v1233
    %1568 = vmatpush1.msra.mxu0 %v1232
    %1569 = vmatprep.subr.mxu0 %v1242
    %1570 = vmatpush1.msra.mxu0 %v1241
    %1571 = vmatprep.subr.mxu0 %v1251
    %1572 = vmatpush1.msra.mxu0 %v1250
    %1573 = vmatprep.subr.mxu0 %v1260
    %1574 = vmatpush1.msra.mxu0 %v1259
    %1575 = vmatprep.subr.mxu0 %v1269
    %1576 = vmatpush1.msra.mxu0 %v1268
    %1577 = vmatprep.subr.mxu0 %v1278
    %1578 = vmatpush1.msra.mxu0 %v1277
    %1579 = vmatprep.mubr.f32.mxu0 %v383
    %1580 = vmatmul.mubr.f32.gmra.mrb[0].mxu0 %v382
    %v1581 = vpop.f32.mrb[0].mxu0
    %v1582 = vadd.f32 %v1505, %v1581
    %v1583 = vpop.f32.mrb[0].mxu0
    %v1584 = vadd.f32 %v1507, %v1583
    %1585 = vmatprep.mubr.f32.mxu0 %v387
    %1586 = vmatmul.mubr.f32.gmra.mrb[0].mxu0 %v386
    %v1587 = vpop.f32.mrb[0].mxu0
    %v1588 = vadd.f32 %v1511, %v1587
    %v1589 = vpop.f32.mrb[0].mxu0
    %v1590 = vadd.f32 %v1513, %v1589
    %1591 = vdwg.mxu0
    %1592 = vmatprep.subr.mxu0 %v713
    %1593 = vmatpush1.msra.mxu0 %v712
    %1594 = vmatprep.subr.mxu0 %v722
    %1595 = vmatpush1.msra.mxu0 %v721
    %1596 = vmatprep.subr.mxu0 %v731
    %1597 = vmatpush1.msra.mxu0 %v730
    %1598 = vmatprep.subr.mxu0 %v740
    %1599 = vmatpush1.msra.mxu0 %v739
    %1600 = vmatprep.subr.mxu0 %v749
    %1601 = vmatpush1.msra.mxu0 %v748
    %1602 = vmatprep.subr.mxu0 %v758
    %1603 = vmatpush1.msra.mxu0 %v757
    %1604 = vmatprep.subr.mxu0 %v767
    %1605 = vmatpush1.msra.mxu0 %v766
    %1606 = vmatprep.subr.mxu0 %v776
    %1607 = vmatpush1.msra.mxu0 %v775
    %1608 = vmatprep.subr.mxu0 %v785
    %1609 = vmatpush1.msra.mxu0 %v784
    %1610 = vmatprep.subr.mxu0 %v794
    %1611 = vmatpush1.msra.mxu0 %v793
    %1612 = vmatprep.subr.mxu0 %v803
    %1613 = vmatpush1.msra.mxu0 %v802
    %1614 = vmatprep.subr.mxu0 %v812
    %1615 = vmatpush1.msra.mxu0 %v811
    %1616 = vmatprep.subr.mxu0 %v821
    %1617 = vmatpush1.msra.mxu0 %v820
    %1618 = vmatprep.subr.mxu0 %v830
    %1619 = vmatpush1.msra.mxu0 %v829
    %1620 = vmatprep.subr.mxu0 %v839
    %1621 = vmatpush1.msra.mxu0 %v838
    %1622 = vmatprep.subr.mxu0 %v848
    %1623 = vmatpush1.msra.mxu0 %v847
    %1624 = vmatprep.subr.mxu0 %v857
    %1625 = vmatpush1.msra.mxu0 %v856
    %1626 = vmatprep.subr.mxu0 %v866
    %1627 = vmatpush1.msra.mxu0 %v865
    %1628 = vmatprep.subr.mxu0 %v875
    %1629 = vmatpush1.msra.mxu0 %v874
    %1630 = vmatprep.subr.mxu0 %v884
    %1631 = vmatpush1.msra.mxu0 %v883
    %1632 = vmatprep.subr.mxu0 %v893
    %1633 = vmatpush1.msra.mxu0 %v892
    %1634 = vmatprep.subr.mxu0 %v902
    %1635 = vmatpush1.msra.mxu0 %v901
    %1636 = vmatprep.subr.mxu0 %v911
    %1637 = vmatpush1.msra.mxu0 %v910
    %1638 = vmatprep.subr.mxu0 %v920
    %1639 = vmatpush1.msra.mxu0 %v919
    %1640 = vmatprep.subr.mxu0 %v929
    %1641 = vmatpush1.msra.mxu0 %v928
    %1642 = vmatprep.subr.mxu0 %v938
    %1643 = vmatpush1.msra.mxu0 %v937
    %1644 = vmatprep.subr.mxu0 %v947
    %1645 = vmatpush1.msra.mxu0 %v946
    %1646 = vmatprep.subr.mxu0 %v956
    %1647 = vmatpush1.msra.mxu0 %v955
    %1648 = vmatprep.subr.mxu0 %v965
    %1649 = vmatpush1.msra.mxu0 %v964
    %1650 = vmatprep.subr.mxu0 %v974
    %1651 = vmatpush1.msra.mxu0 %v973
    %1652 = vmatprep.subr.mxu0 %v983
    %1653 = vmatpush1.msra.mxu0 %v982
    %1654 = vmatprep.subr.mxu0 %v992
    %1655 = vmatpush1.msra.mxu0 %v991
    %1656 = vmatprep.mubr.f32.mxu0 %v381
    %1657 = vmatmul.mubr.f32.gmra.mrb[0].mxu0 %v380
    %v1658 = vpop.f32.mrb[0].mxu0
    %v1659 = vadd.f32 0.0, %v1658
    %v1660 = vpop.f32.mrb[0].mxu0
    %v1661 = vadd.f32 0.0, %v1660
    %1662 = vmatprep.mubr.f32.mxu0 %v385
    %1663 = vmatmul.mubr.f32.gmra.mrb[0].mxu0 %v384
    %v1664 = vpop.f32.mrb[0].mxu0
    %v1665 = vadd.f32 0.0, %v1664
    %v1666 = vpop.f32.mrb[0].mxu0
    %v1667 = vadd.f32 0.0, %v1666
    %1668 = vdwg.mxu0
    %1669 = vmatprep.subr.mxu0 %v1001
    %1670 = vmatpush1.msra.mxu0 %v1000
    %1671 = vmatprep.subr.mxu0 %v1010
    %1672 = vmatpush1.msra.mxu0 %v1009
    %1673 = vmatprep.subr.mxu0 %v1019
    %1674 = vmatpush1.msra.mxu0 %v1018
    %1675 = vmatprep.subr.mxu0 %v1028
    %1676 = vmatpush1.msra.mxu0 %v1027
    %1677 = vmatprep.subr.mxu0 %v1037
    %1678 = vmatpush1.msra.mxu0 %v1036
    %1679 = vmatprep.subr.mxu0 %v1046
    %1680 = vmatpush1.msra.mxu0 %v1045
    %1681 = vmatprep.subr.mxu0 %v1055
    %1682 = vmatpush1.msra.mxu0 %v1054
    %1683 = vmatprep.subr.mxu0 %v1064
    %1684 = vmatpush1.msra.mxu0 %v1063
    %1685 = vmatprep.subr.mxu0 %v1073
    %1686 = vmatpush1.msra.mxu0 %v1072
    %1687 = vmatprep.subr.mxu0 %v1082
    %1688 = vmatpush1.msra.mxu0 %v1081
    %1689 = vmatprep.subr.mxu0 %v1091
    %1690 = vmatpush1.msra.mxu0 %v1090
    %1691 = vmatprep.subr.mxu0 %v1100
    %1692 = vmatpush1.msra.mxu0 %v1099
    %1693 = vmatprep.subr.mxu0 %v1109
    %1694 = vmatpush1.msra.mxu0 %v1108
    %1695 = vmatprep.subr.mxu0 %v1118
    %1696 = vmatpush1.msra.mxu0 %v1117
    %1697 = vmatprep.subr.mxu0 %v1127
    %1698 = vmatpush1.msra.mxu0 %v1126
    %1699 = vmatprep.subr.mxu0 %v1136
    %1700 = vmatpush1.msra.mxu0 %v1135
    %1701 = vmatprep.subr.mxu0 %v1145
    %1702 = vmatpush1.msra.mxu0 %v1144
    %1703 = vmatprep.subr.mxu0 %v1154
    %1704 = vmatpush1.msra.mxu0 %v1153
    %1705 = vmatprep.subr.mxu0 %v1163
    %1706 = vmatpush1.msra.mxu0 %v1162
    %1707 = vmatprep.subr.mxu0 %v1172
    %1708 = vmatpush1.msra.mxu0 %v1171
    %1709 = vmatprep.subr.mxu0 %v1181
    %1710 = vmatpush1.msra.mxu0 %v1180
    %1711 = vmatprep.subr.mxu0 %v1190
    %1712 = vmatpush1.msra.mxu0 %v1189
    %1713 = vmatprep.subr.mxu0 %v1199
    %1714 = vmatpush1.msra.mxu0 %v1198
    %1715 = vmatprep.subr.mxu0 %v1208
    %1716 = vmatpush1.msra.mxu0 %v1207
    %1717 = vmatprep.subr.mxu0 %v1217
    %1718 = vmatpush1.msra.mxu0 %v1216
    %1719 = vmatprep.subr.mxu0 %v1226
    %1720 = vmatpush1.msra.mxu0 %v1225
    %1721 = vmatprep.subr.mxu0 %v1235
    %1722 = vmatpush1.msra.mxu0 %v1234
    %1723 = vmatprep.subr.mxu0 %v1244
    %1724 = vmatpush1.msra.mxu0 %v1243
    %1725 = vmatprep.subr.mxu0 %v1253
    %1726 = vmatpush1.msra.mxu0 %v1252
    %1727 = vmatprep.subr.mxu0 %v1262
    %1728 = vmatpush1.msra.mxu0 %v1261
    %1729 = vmatprep.subr.mxu0 %v1271
    %1730 = vmatpush1.msra.mxu0 %v1270
    %1731 = vmatprep.subr.mxu0 %v1280
    %1732 = vmatpush1.msra.mxu0 %v1279
    %1733 = vmatprep.mubr.f32.mxu0 %v383
    %1734 = vmatmul.mubr.f32.gmra.mrb[0].mxu0 %v382
    %v1735 = vpop.f32.mrb[0].mxu0
    %v1736 = vadd.f32 %v1659, %v1735
    %v1737 = vpop.f32.mrb[0].mxu0
    %v1738 = vadd.f32 %v1661, %v1737
    %1739 = vmatprep.mubr.f32.mxu0 %v387
    %1740 = vmatmul.mubr.f32.gmra.mrb[0].mxu0 %v386
    %v1741 = vpop.f32.mrb[0].mxu0
    %v1742 = vadd.f32 %v1665, %v1741
    %v1743 = vpop.f32.mrb[0].mxu0
    %v1744 = vadd.f32 %v1667, %v1743
    %1745 = vdwg.mxu0
    %1746 = vmatprep.subr.mxu0 %v715
    %1747 = vmatpush1.msra.mxu0 %v714
    %1748 = vmatprep.subr.mxu0 %v724
    %1749 = vmatpush1.msra.mxu0 %v723
    %1750 = vmatprep.subr.mxu0 %v733
    %1751 = vmatpush1.msra.mxu0 %v732
    %1752 = vmatprep.subr.mxu0 %v742
    %1753 = vmatpush1.msra.mxu0 %v741
    %1754 = vmatprep.subr.mxu0 %v751
    %1755 = vmatpush1.msra.mxu0 %v750
    %1756 = vmatprep.subr.mxu0 %v760
    %1757 = vmatpush1.msra.mxu0 %v759
    %1758 = vmatprep.subr.mxu0 %v769
    %1759 = vmatpush1.msra.mxu0 %v768
    %1760 = vmatprep.subr.mxu0 %v778
    %1761 = vmatpush1.msra.mxu0 %v777
    %1762 = vmatprep.subr.mxu0 %v787
    %1763 = vmatpush1.msra.mxu0 %v786
    %1764 = vmatprep.subr.mxu0 %v796
    %1765 = vmatpush1.msra.mxu0 %v795
    %1766 = vmatprep.subr.mxu0 %v805
    %1767 = vmatpush1.msra.mxu0 %v804
    %1768 = vmatprep.subr.mxu0 %v814
    %1769 = vmatpush1.msra.mxu0 %v813
    %1770 = vmatprep.subr.mxu0 %v823
    %1771 = vmatpush1.msra.mxu0 %v822
    %1772 = vmatprep.subr.mxu0 %v832
    %1773 = vmatpush1.msra.mxu0 %v831
    %1774 = vmatprep.subr.mxu0 %v841
    %1775 = vmatpush1.msra.mxu0 %v840
    %1776 = vmatprep.subr.mxu0 %v850
    %1777 = vmatpush1.msra.mxu0 %v849
    %1778 = vmatprep.subr.mxu0 %v859
    %1779 = vmatpush1.msra.mxu0 %v858
    %1780 = vmatprep.subr.mxu0 %v868
    %1781 = vmatpush1.msra.mxu0 %v867
    %1782 = vmatprep.subr.mxu0 %v877
    %1783 = vmatpush1.msra.mxu0 %v876
    %1784 = vmatprep.subr.mxu0 %v886
    %1785 = vmatpush1.msra.mxu0 %v885
    %1786 = vmatprep.subr.mxu0 %v895
    %1787 = vmatpush1.msra.mxu0 %v894
    %1788 = vmatprep.subr.mxu0 %v904
    %1789 = vmatpush1.msra.mxu0 %v903
    %1790 = vmatprep.subr.mxu0 %v913
    %1791 = vmatpush1.msra.mxu0 %v912
    %1792 = vmatprep.subr.mxu0 %v922
    %1793 = vmatpush1.msra.mxu0 %v921
    %1794 = vmatprep.subr.mxu0 %v931
    %1795 = vmatpush1.msra.mxu0 %v930
    %1796 = vmatprep.subr.mxu0 %v940
    %1797 = vmatpush1.msra.mxu0 %v939
    %1798 = vmatprep.subr.mxu0 %v949
    %1799 = vmatpush1.msra.mxu0 %v948
    %1800 = vmatprep.subr.mxu0 %v958
    %1801 = vmatpush1.msra.mxu0 %v957
    %1802 = vmatprep.subr.mxu0 %v967
    %1803 = vmatpush1.msra.mxu0 %v966
    %1804 = vmatprep.subr.mxu0 %v976
    %1805 = vmatpush1.msra.mxu0 %v975
    %1806 = vmatprep.subr.mxu0 %v985
    %1807 = vmatpush1.msra.mxu0 %v984
    %1808 = vmatprep.subr.mxu0 %v994
    %1809 = vmatpush1.msra.mxu0 %v993
    %1810 = vmatprep.mubr.f32.mxu0 %v381
    %1811 = vmatmul.mubr.f32.gmra.mrb[0].mxu0 %v380
    %v1812 = vpop.f32.mrb[0].mxu0
    %v1813 = vadd.f32 0.0, %v1812
    %v1814 = vpop.f32.mrb[0].mxu0
    %v1815 = vadd.f32 0.0, %v1814
    %1816 = vmatprep.mubr.f32.mxu0 %v385
    %1817 = vmatmul.mubr.f32.gmra.mrb[0].mxu0 %v384
    %v1818 = vpop.f32.mrb[0].mxu0
    %v1819 = vadd.f32 0.0, %v1818
    %v1820 = vpop.f32.mrb[0].mxu0
    %v1821 = vadd.f32 0.0, %v1820
    %1822 = vdwg.mxu0
    %1823 = vmatprep.subr.mxu0 %v1003
    %1824 = vmatpush1.msra.mxu0 %v1002
    %1825 = vmatprep.subr.mxu0 %v1012
    %1826 = vmatpush1.msra.mxu0 %v1011
    %1827 = vmatprep.subr.mxu0 %v1021
    %1828 = vmatpush1.msra.mxu0 %v1020
    %1829 = vmatprep.subr.mxu0 %v1030
    %1830 = vmatpush1.msra.mxu0 %v1029
    %1831 = vmatprep.subr.mxu0 %v1039
    %1832 = vmatpush1.msra.mxu0 %v1038
    %1833 = vmatprep.subr.mxu0 %v1048
    %1834 = vmatpush1.msra.mxu0 %v1047
    %1835 = vmatprep.subr.mxu0 %v1057
    %1836 = vmatpush1.msra.mxu0 %v1056
    %1837 = vmatprep.subr.mxu0 %v1066
    %1838 = vmatpush1.msra.mxu0 %v1065
    %1839 = vmatprep.subr.mxu0 %v1075
    %1840 = vmatpush1.msra.mxu0 %v1074
    %1841 = vmatprep.subr.mxu0 %v1084
    %1842 = vmatpush1.msra.mxu0 %v1083
    %1843 = vmatprep.subr.mxu0 %v1093
    %1844 = vmatpush1.msra.mxu0 %v1092
    %1845 = vmatprep.subr.mxu0 %v1102
    %1846 = vmatpush1.msra.mxu0 %v1101
    %1847 = vmatprep.subr.mxu0 %v1111
    %1848 = vmatpush1.msra.mxu0 %v1110
    %1849 = vmatprep.subr.mxu0 %v1120
    %1850 = vmatpush1.msra.mxu0 %v1119
    %1851 = vmatprep.subr.mxu0 %v1129
    %1852 = vmatpush1.msra.mxu0 %v1128
    %1853 = vmatprep.subr.mxu0 %v1138
    %1854 = vmatpush1.msra.mxu0 %v1137
    %1855 = vmatprep.subr.mxu0 %v1147
    %1856 = vmatpush1.msra.mxu0 %v1146
    %1857 = vmatprep.subr.mxu0 %v1156
    %1858 = vmatpush1.msra.mxu0 %v1155
    %1859 = vmatprep.subr.mxu0 %v1165
    %1860 = vmatpush1.msra.mxu0 %v1164
    %1861 = vmatprep.subr.mxu0 %v1174
    %1862 = vmatpush1.msra.mxu0 %v1173
    %1863 = vmatprep.subr.mxu0 %v1183
    %1864 = vmatpush1.msra.mxu0 %v1182
    %1865 = vmatprep.subr.mxu0 %v1192
    %1866 = vmatpush1.msra.mxu0 %v1191
    %1867 = vmatprep.subr.mxu0 %v1201
    %1868 = vmatpush1.msra.mxu0 %v1200
    %1869 = vmatprep.subr.mxu0 %v1210
    %1870 = vmatpush1.msra.mxu0 %v1209
    %1871 = vmatprep.subr.mxu0 %v1219
    %1872 = vmatpush1.msra.mxu0 %v1218
    %1873 = vmatprep.subr.mxu0 %v1228
    %1874 = vmatpush1.msra.mxu0 %v1227
    %1875 = vmatprep.subr.mxu0 %v1237
    %1876 = vmatpush1.msra.mxu0 %v1236
    %1877 = vmatprep.subr.mxu0 %v1246
    %1878 = vmatpush1.msra.mxu0 %v1245
    %1879 = vmatprep.subr.mxu0 %v1255
    %1880 = vmatpush1.msra.mxu0 %v1254
    %1881 = vmatprep.subr.mxu0 %v1264
    %1882 = vmatpush1.msra.mxu0 %v1263
    %1883 = vmatprep.subr.mxu0 %v1273
    %1884 = vmatpush1.msra.mxu0 %v1272
    %1885 = vmatprep.subr.mxu0 %v1282
    %1886 = vmatpush1.msra.mxu0 %v1281
    %1887 = vmatprep.mubr.f32.mxu0 %v383
    %1888 = vmatmul.mubr.f32.gmra.mrb[0].mxu0 %v382
    %v1889 = vpop.f32.mrb[0].mxu0
    %v1890 = vadd.f32 %v1813, %v1889
    %v1891 = vpop.f32.mrb[0].mxu0
    %v1892 = vadd.f32 %v1815, %v1891
    %1893 = vmatprep.mubr.f32.mxu0 %v387
    %1894 = vmatmul.mubr.f32.gmra.mrb[0].mxu0 %v386
    %v1895 = vpop.f32.mrb[0].mxu0
    %v1896 = vadd.f32 %v1819, %v1895
    %v1897 = vpop.f32.mrb[0].mxu0
    %v1898 = vadd.f32 %v1821, %v1897
    %1899 = vdwg.mxu0
    %1900 = vmatprep.subr.mxu0 0.0
    %1901 = vmatpush1.msra.mxu0 %v716
    %1902 = vmatprep.subr.mxu0 0.0
    %1903 = vmatpush1.msra.mxu0 %v725
    %1904 = vmatprep.subr.mxu0 0.0
    %1905 = vmatpush1.msra.mxu0 %v734
    %1906 = vmatprep.subr.mxu0 0.0
    %1907 = vmatpush1.msra.mxu0 %v743
    %1908 = vmatprep.subr.mxu0 0.0
    %1909 = vmatpush1.msra.mxu0 %v752
    %1910 = vmatprep.subr.mxu0 0.0
    %1911 = vmatpush1.msra.mxu0 %v761
    %1912 = vmatprep.subr.mxu0 0.0
    %1913 = vmatpush1.msra.mxu0 %v770
    %1914 = vmatprep.subr.mxu0 0.0
    %1915 = vmatpush1.msra.mxu0 %v779
    %1916 = vmatprep.subr.mxu0 0.0
    %1917 = vmatpush1.msra.mxu0 %v788
    %1918 = vmatprep.subr.mxu0 0.0
    %1919 = vmatpush1.msra.mxu0 %v797
    %1920 = vmatprep.subr.mxu0 0.0
    %1921 = vmatpush1.msra.mxu0 %v806
    %1922 = vmatprep.subr.mxu0 0.0
    %1923 = vmatpush1.msra.mxu0 %v815
    %1924 = vmatprep.subr.mxu0 0.0
    %1925 = vmatpush1.msra.mxu0 %v824
    %1926 = vmatprep.subr.mxu0 0.0
    %1927 = vmatpush1.msra.mxu0 %v833
    %1928 = vmatprep.subr.mxu0 0.0
    %1929 = vmatpush1.msra.mxu0 %v842
    %1930 = vmatprep.subr.mxu0 0.0
    %1931 = vmatpush1.msra.mxu0 %v851
    %1932 = vmatprep.subr.mxu0 0.0
    %1933 = vmatpush1.msra.mxu0 %v860
    %1934 = vmatprep.subr.mxu0 0.0
    %1935 = vmatpush1.msra.mxu0 %v869
    %1936 = vmatprep.subr.mxu0 0.0
    %1937 = vmatpush1.msra.mxu0 %v878
    %1938 = vmatprep.subr.mxu0 0.0
    %1939 = vmatpush1.msra.mxu0 %v887
    %1940 = vmatprep.subr.mxu0 0.0
    %1941 = vmatpush1.msra.mxu0 %v896
    %1942 = vmatprep.subr.mxu0 0.0
    %1943 = vmatpush1.msra.mxu0 %v905
    %1944 = vmatprep.subr.mxu0 0.0
    %1945 = vmatpush1.msra.mxu0 %v914
    %1946 = vmatprep.subr.mxu0 0.0
    %1947 = vmatpush1.msra.mxu0 %v923
    %1948 = vmatprep.subr.mxu0 0.0
    %1949 = vmatpush1.msra.mxu0 %v932
    %1950 = vmatprep.subr.mxu0 0.0
    %1951 = vmatpush1.msra.mxu0 %v941
    %1952 = vmatprep.subr.mxu0 0.0
    %1953 = vmatpush1.msra.mxu0 %v950
    %1954 = vmatprep.subr.mxu0 0.0
    %1955 = vmatpush1.msra.mxu0 %v959
    %1956 = vmatprep.subr.mxu0 0.0
    %1957 = vmatpush1.msra.mxu0 %v968
    %1958 = vmatprep.subr.mxu0 0.0
    %1959 = vmatpush1.msra.mxu0 %v977
    %1960 = vmatprep.subr.mxu0 0.0
    %1961 = vmatpush1.msra.mxu0 %v986
    %1962 = vmatprep.subr.mxu0 0.0
    %1963 = vmatpush1.msra.mxu0 %v995
    %1964 = vmatprep.mubr.f32.mxu0 %v381
    %1965 = vmatmul.mubr.f32.gmra.mrb[0].mxu0 %v380
    %v1966 = vpop.f32.mrb[0].mxu0
    %v1967 = vadd.f32 0.0, %v1966
    %v1968 = vpop.f32.mrb[0].mxu0
    %1969 = vmatprep.mubr.f32.mxu0 %v385
    %1970 = vmatmul.mubr.f32.gmra.mrb[0].mxu0 %v384
    %v1971 = vpop.f32.mrb[0].mxu0
    %v1972 = vadd.f32 0.0, %v1971
    %v1973 = vpop.f32.mrb[0].mxu0
    %1974 = vdwg.mxu0
    %1975 = vmatprep.subr.mxu0 0.0
    %1976 = vmatpush1.msra.mxu0 %v1004
    %1977 = vmatprep.subr.mxu0 0.0
    %1978 = vmatpush1.msra.mxu0 %v1013
    %1979 = vmatprep.subr.mxu0 0.0
    %1980 = vmatpush1.msra.mxu0 %v1022
    %1981 = vmatprep.subr.mxu0 0.0
    %1982 = vmatpush1.msra.mxu0 %v1031
    %1983 = vmatprep.subr.mxu0 0.0
    %1984 = vmatpush1.msra.mxu0 %v1040
    %1985 = vmatprep.subr.mxu0 0.0
    %1986 = vmatpush1.msra.mxu0 %v1049
    %1987 = vmatprep.subr.mxu0 0.0
    %1988 = vmatpush1.msra.mxu0 %v1058
    %1989 = vmatprep.subr.mxu0 0.0
    %1990 = vmatpush1.msra.mxu0 %v1067
    %1991 = vmatprep.subr.mxu0 0.0
    %1992 = vmatpush1.msra.mxu0 %v1076
    %1993 = vmatprep.subr.mxu0 0.0
    %1994 = vmatpush1.msra.mxu0 %v1085
    %1995 = vmatprep.subr.mxu0 0.0
    %1996 = vmatpush1.msra.mxu0 %v1094
    %1997 = vmatprep.subr.mxu0 0.0
    %1998 = vmatpush1.msra.mxu0 %v1103
    %1999 = vmatprep.subr.mxu0 0.0
    %2000 = vmatpush1.msra.mxu0 %v1112
    %2001 = vmatprep.subr.mxu0 0.0
    %2002 = vmatpush1.msra.mxu0 %v1121
    %2003 = vmatprep.subr.mxu0 0.0
    %2004 = vmatpush1.msra.mxu0 %v1130
    %2005 = vmatprep.subr.mxu0 0.0
    %2006 = vmatpush1.msra.mxu0 %v1139
    %2007 = vmatprep.subr.mxu0 0.0
    %2008 = vmatpush1.msra.mxu0 %v1148
    %2009 = vmatprep.subr.mxu0 0.0
    %2010 = vmatpush1.msra.mxu0 %v1157
    %2011 = vmatprep.subr.mxu0 0.0
    %2012 = vmatpush1.msra.mxu0 %v1166
    %2013 = vmatprep.subr.mxu0 0.0
    %2014 = vmatpush1.msra.mxu0 %v1175
    %2015 = vmatprep.subr.mxu0 0.0
    %2016 = vmatpush1.msra.mxu0 %v1184
    %2017 = vmatprep.subr.mxu0 0.0
    %2018 = vmatpush1.msra.mxu0 %v1193
    %2019 = vmatprep.subr.mxu0 0.0
    %2020 = vmatpush1.msra.mxu0 %v1202
    %2021 = vmatprep.subr.mxu0 0.0
    %2022 = vmatpush1.msra.mxu0 %v1211
    %2023 = vmatprep.subr.mxu0 0.0
    %2024 = vmatpush1.msra.mxu0 %v1220
    %2025 = vmatprep.subr.mxu0 0.0
    %2026 = vmatpush1.msra.mxu0 %v1229
    %2027 = vmatprep.subr.mxu0 0.0
    %2028 = vmatpush1.msra.mxu0 %v1238
    %2029 = vmatprep.subr.mxu0 0.0
    %2030 = vmatpush1.msra.mxu0 %v1247
    %2031 = vmatprep.subr.mxu0 0.0
    %2032 = vmatpush1.msra.mxu0 %v1256
    %2033 = vmatprep.subr.mxu0 0.0
    %2034 = vmatpush1.msra.mxu0 %v1265
    %2035 = vmatprep.subr.mxu0 0.0
    %2036 = vmatpush1.msra.mxu0 %v1274
    %2037 = vmatprep.subr.mxu0 0.0
    %2038 = vmatpush1.msra.mxu0 %v1283
    %2039 = vmatprep.mubr.f32.mxu0 %v383
    %2040 = vmatmul.mubr.f32.gmra.mrb[0].mxu0 %v382
    %v2041 = vpop.f32.mrb[0].mxu0
    %v2042 = vadd.f32 %v1967, %v2041
    %v2043 = vpop.f32.mrb[0].mxu0
    %2044 = vmatprep.mubr.f32.mxu0 %v387
    %2045 = vmatmul.mubr.f32.gmra.mrb[0].mxu0 %v386
    %v2046 = vpop.f32.mrb[0].mxu0
    %v2047 = vadd.f32 %v1972, %v2046
    %v2048 = vpop.f32.mrb[0].mxu0
    %2049 = vdwg.mxu0
    %2051 = vset.pattern.permute.xlu0 0
    %2052 = vperm.xlu0 %2051, %v378
    %v2053 = vpop.permute.xlu0 %2052
    %vm2055 = vcmask 130048
    %v2057 = vsel %vm2055, %v373, 0
    %2059 = vmatprep.subr.mxu0 0.0
    %2060 = vmatpush1.msra.mxu0 %v1428
    %2061 = vmatprep.subr.mxu0 0.0
    %2062 = vmatpush1.msra.mxu0 %v1434
    %2063 = vmatprep.subr.mxu0 0.0
    %2064 = vmatpush1.msra.mxu0 %v1430
    %2065 = vmatprep.subr.mxu0 0.0
    %2066 = vmatpush1.msra.mxu0 %v1436
    %2067 = vmatprep.subr.mxu0 0.0
    %2068 = vmatpush1.msra.mxu0 %v1582
    %2069 = vmatprep.subr.mxu0 0.0
    %2070 = vmatpush1.msra.mxu0 %v1588
    %2071 = vmatprep.subr.mxu0 0.0
    %2072 = vmatpush1.msra.mxu0 %v1584
    %2073 = vmatprep.subr.mxu0 0.0
    %2074 = vmatpush1.msra.mxu0 %v1590
    %2075 = vmatprep.subr.mxu0 0.0
    %2076 = vmatpush1.msra.mxu0 %v1736
    %2077 = vmatprep.subr.mxu0 0.0
    %2078 = vmatpush1.msra.mxu0 %v1742
    %2079 = vmatprep.subr.mxu0 0.0
    %2080 = vmatpush1.msra.mxu0 %v1738
    %2081 = vmatprep.subr.mxu0 0.0
    %2082 = vmatpush1.msra.mxu0 %v1744
    %2083 = vmatprep.subr.mxu0 0.0
    %2084 = vmatpush1.msra.mxu0 %v1890
    %2085 = vmatprep.subr.mxu0 0.0
    %2086 = vmatpush1.msra.mxu0 %v1896
    %2087 = vmatprep.subr.mxu0 0.0
    %2088 = vmatpush1.msra.mxu0 %v1892
    %2089 = vmatprep.subr.mxu0 0.0
    %2090 = vmatpush1.msra.mxu0 %v1898
    %2091 = vmatprep.subr.mxu0 0.0
    %2092 = vmatpush1.msra.mxu0 %v2042
    %2093 = vmatprep.subr.mxu0 0.0
    %2094 = vmatpush1.msra.mxu0 %v2047
    %2095 = vmatprep.subr.mxu0 0.0
    %2096 = vmatpush1.msra.mxu0 0.0
    %2097 = vmatprep.subr.mxu0 0.0
    %2098 = vmatpush1.msra.mxu0 0.0
    %2099 = vmatprep.subr.mxu0 0.0
    %2100 = vmatpush1.msra.mxu0 0.0
    %2101 = vmatprep.subr.mxu0 0.0
    %2102 = vmatpush1.msra.mxu0 0.0
    %2103 = vmatprep.subr.mxu0 0.0
    %2104 = vmatpush1.msra.mxu0 0.0
    %2105 = vmatprep.subr.mxu0 0.0
    %2106 = vmatpush1.msra.mxu0 0.0
    %2107 = vmatprep.subr.mxu0 0.0
    %2108 = vmatpush1.msra.mxu0 0.0
    %2109 = vmatprep.subr.mxu0 0.0
    %2110 = vmatpush1.msra.mxu0 0.0
    %2111 = vmatprep.subr.mxu0 0.0
    %2112 = vmatpush1.msra.mxu0 0.0
    %2113 = vmatprep.subr.mxu0 0.0
    %2114 = vmatpush1.msra.mxu0 0.0
    %2115 = vmatprep.subr.mxu0 0.0
    %2116 = vmatpush1.msra.mxu0 0.0
    %2117 = vmatprep.subr.mxu0 0.0
    %2118 = vmatpush1.msra.mxu0 0.0
    %2119 = vmatprep.subr.mxu0 0.0
    %2120 = vmatpush1.msra.mxu0 0.0
    %2121 = vmatprep.subr.mxu0 0.0
    %2122 = vmatpush1.msra.mxu0 0.0
    %2123 = vmatprep.mubr.f32.mxu0 %v2057
    %2124 = vmatmul.mubr.f32.gmra.mrb[0].mxu0 %v372
    %v2125 = vpop.f32.mrb[0].mxu0
    %v2126 = vadd.f32 %v2053, %v2125
    %v2127 = vpop.f32.mrb[0].mxu0
    %2128 = vdwg.mxu0
    %2129 = vadd.xlane.f32.xlu0 %v2126
    %v2130 = vpop.xlane.xlu0 %2129
    %v2131 = vrcp.pop 128.0
    %v2132 = vmul.f32 %v2130, %v2131
    %v2133 = vsub.f32 %v2126, %v2132
    %v2134 = vmul.f32 %v2133, %v2133
    %2135 = vadd.xlane.f32.xlu0 %v2134
    %v2136 = vpop.xlane.xlu0 %2135
    %v2137 = vmul.f32 %v2136, %v2131
    %v2138 = vadd.f32 %v2137, 1e-05
    %v2139 = vrsqrt.pop %v2138
    %v2140 = vmul.f32 %v2133, %v2139
    %2141 = vset.pattern.permute.xlu0 1
    %2142 = vperm.xlu0 %2141, %v378
    %v2143 = vpop.permute.xlu0 %2142
    %v2145 = vmul.f32 %v2140, %v2143
    %2146 = vset.pattern.permute.xlu0 2
    %2147 = vperm.xlu0 %2146, %v378
    %v2148 = vpop.permute.xlu0 %2147
    %v2150 = vadd.f32 %v2145, %v2148
    %v2151 = vmax.f32 %v2150, 0.0
    %s2152 = smul.u32 4, 16
    %s2153 = smul.u32 %s2152, 3
    %s2154 = sshll.u32 %s2153, 4
    %2155 = dma.done [#allocation5], %s2154
    %v2156 = vld [vmem:[#allocation2] sm:$0xff]
    %v2157 = vld [vmem:[#allocation2 + $0x8] sm:$0xff]
    %v2158 = vld [vmem:[#allocation2 + $0x10] sm:$0xff]
    %v2159 = vld [vmem:[#allocation2 + $0x18] sm:$0xff]
    %v2160 = vld [vmem:[#allocation2 + $0x20] sm:$0xff]
    %v2161 = vld [vmem:[#allocation2 + $0x28] sm:$0xff]
    %v2162 = vld [vmem:[#allocation2 + $0x30] sm:$0xff]
    %v2163 = vld [vmem:[#allocation2 + $0x38] sm:$0xff]
    %v2164 = vld [vmem:[#allocation2 + $0x40] sm:$0xff]
    %v2165 = vld [vmem:[#allocation2 + $0x48] sm:$0xff]
    %v2166 = vld [vmem:[#allocation2 + $0x50] sm:$0xff]
    %v2167 = vld [vmem:[#allocation2 + $0x58] sm:$0xff]
    %v2168 = vld [vmem:[#allocation2 + $0x60] sm:$0xff]
    %v2169 = vld [vmem:[#allocation2 + $0x68] sm:$0xff]
    %v2170 = vld [vmem:[#allocation2 + $0x70] sm:$0xff]
    %v2171 = vld [vmem:[#allocation2 + $0x78] sm:$0xff]
    %v2172 = vld [vmem:[#allocation2 + $0x80] sm:$0xff]
    %v2173 = vld [vmem:[#allocation2 + $0x88] sm:$0xff]
    %v2174 = vld [vmem:[#allocation2 + $0x90] sm:$0xff]
    %v2175 = vld [vmem:[#allocation2 + $0x98] sm:$0xff]
    %v2176 = vld [vmem:[#allocation2 + $0xa0] sm:$0xff]
    %v2177 = vld [vmem:[#allocation2 + $0xa8] sm:$0xff]
    %v2178 = vld [vmem:[#allocation2 + $0xb0] sm:$0xff]
    %v2179 = vld [vmem:[#allocation2 + $0xb8] sm:$0xff]
    %v2180 = vunpack.c.l.bf16 %v2156
    %v2181 = vunpack.c.l.bf16 %v2157
    %v2182 = vunpack.c.l.bf16 %v2158
    %v2183 = vunpack.c.h.bf16 %v2156
    %v2184 = vunpack.c.h.bf16 %v2157
    %v2185 = vunpack.c.h.bf16 %v2158
    %v2186 = vunpack.c.l.bf16 %v2159
    %v2187 = vunpack.c.l.bf16 %v2160
    %v2188 = vunpack.c.l.bf16 %v2161
    %v2189 = vunpack.c.h.bf16 %v2159
    %v2190 = vunpack.c.h.bf16 %v2160
    %v2191 = vunpack.c.h.bf16 %v2161
    %v2192 = vunpack.c.l.bf16 %v2162
    %v2193 = vunpack.c.l.bf16 %v2163
    %v2194 = vunpack.c.l.bf16 %v2164
    %v2195 = vunpack.c.h.bf16 %v2162
    %v2196 = vunpack.c.h.bf16 %v2163
    %v2197 = vunpack.c.h.bf16 %v2164
    %v2198 = vunpack.c.l.bf16 %v2165
    %v2199 = vunpack.c.l.bf16 %v2166
    %v2200 = vunpack.c.l.bf16 %v2167
    %v2201 = vunpack.c.h.bf16 %v2165
    %v2202 = vunpack.c.h.bf16 %v2166
    %v2203 = vunpack.c.h.bf16 %v2167
    %v2204 = vunpack.c.l.bf16 %v2168
    %v2205 = vunpack.c.l.bf16 %v2169
    %v2206 = vunpack.c.l.bf16 %v2170
    %v2207 = vunpack.c.h.bf16 %v2168
    %v2208 = vunpack.c.h.bf16 %v2169
    %v2209 = vunpack.c.h.bf16 %v2170
    %v2210 = vunpack.c.l.bf16 %v2171
    %v2211 = vunpack.c.l.bf16 %v2172
    %v2212 = vunpack.c.l.bf16 %v2173
    %v2213 = vunpack.c.h.bf16 %v2171
    %v2214 = vunpack.c.h.bf16 %v2172
    %v2215 = vunpack.c.h.bf16 %v2173
    %v2216 = vunpack.c.l.bf16 %v2174
    %v2217 = vunpack.c.l.bf16 %v2175
    %v2218 = vunpack.c.l.bf16 %v2176
    %v2219 = vunpack.c.h.bf16 %v2174
    %v2220 = vunpack.c.h.bf16 %v2175
    %v2221 = vunpack.c.h.bf16 %v2176
    %v2222 = vunpack.c.l.bf16 %v2177
    %v2223 = vunpack.c.l.bf16 %v2178
    %v2224 = vunpack.c.l.bf16 %v2179
    %v2225 = vunpack.c.h.bf16 %v2177
    %v2226 = vunpack.c.h.bf16 %v2178
    %v2227 = vunpack.c.h.bf16 %v2179
    %2228 = vmatprep.subr.mxu0 %v2181
    %2229 = vmatpush1.msra.mxu0 %v2180
    %2230 = vmatprep.subr.mxu0 %v2184
    %2231 = vmatpush1.msra.mxu0 %v2183
    %2232 = vmatprep.subr.mxu0 %v2187
    %2233 = vmatpush1.msra.mxu0 %v2186
    %2234 = vmatprep.subr.mxu0 %v2190
    %2235 = vmatpush1.msra.mxu0 %v2189
    %2236 = vmatprep.subr.mxu0 %v2193
    %2237 = vmatpush1.msra.mxu0 %v2192
    %2238 = vmatprep.subr.mxu0 %v2196
    %2239 = vmatpush1.msra.mxu0 %v2195
    %2240 = vmatprep.subr.mxu0 %v2199
    %2241 = vmatpush1.msra.mxu0 %v2198
    %2242 = vmatprep.subr.mxu0 %v2202
    %2243 = vmatpush1.msra.mxu0 %v2201
    %2244 = vmatprep.subr.mxu0 %v2205
    %2245 = vmatpush1.msra.mxu0 %v2204
    %2246 = vmatprep.subr.mxu0 %v2208
    %2247 = vmatpush1.msra.mxu0 %v2207
    %2248 = vmatprep.subr.mxu0 %v2211
    %2249 = vmatpush1.msra.mxu0 %v2210
    %2250 = vmatprep.subr.mxu0 %v2214
    %2251 = vmatpush1.msra.mxu0 %v2213
    %2252 = vmatprep.subr.mxu0 %v2217
    %2253 = vmatpush1.msra.mxu0 %v2216
    %2254 = vmatprep.subr.mxu0 %v2220
    %2255 = vmatpush1.msra.mxu0 %v2219
    %2256 = vmatprep.subr.mxu0 %v2223
    %2257 = vmatpush1.msra.mxu0 %v2222
    %2258 = vmatprep.subr.mxu0 %v2226
    %2259 = vmatpush1.msra.mxu0 %v2225
    %2260 = vmatprep.subr.mxu0 0.0
    %2261 = vmatpush1.msra.mxu0 0.0
    %2262 = vmatprep.subr.mxu0 0.0
    %2263 = vmatpush1.msra.mxu0 0.0
    %2264 = vmatprep.subr.mxu0 0.0
    %2265 = vmatpush1.msra.mxu0 0.0
    %2266 = vmatprep.subr.mxu0 0.0
    %2267 = vmatpush1.msra.mxu0 0.0
    %2268 = vmatprep.subr.mxu0 0.0
    %2269 = vmatpush1.msra.mxu0 0.0
    %2270 = vmatprep.subr.mxu0 0.0
    %2271 = vmatpush1.msra.mxu0 0.0
    %2272 = vmatprep.subr.mxu0 0.0
    %2273 = vmatpush1.msra.mxu0 0.0
    %2274 = vmatprep.subr.mxu0 0.0
    %2275 = vmatpush1.msra.mxu0 0.0
    %2276 = vmatprep.subr.mxu0 0.0
    %2277 = vmatpush1.msra.mxu0 0.0
    %2278 = vmatprep.subr.mxu0 0.0
    %2279 = vmatpush1.msra.mxu0 0.0
    %2280 = vmatprep.subr.mxu0 0.0
    %2281 = vmatpush1.msra.mxu0 0.0
    %2282 = vmatprep.subr.mxu0 0.0
    %2283 = vmatpush1.msra.mxu0 0.0
    %2284 = vmatprep.subr.mxu0 0.0
    %2285 = vmatpush1.msra.mxu0 0.0
    %2286 = vmatprep.subr.mxu0 0.0
    %2287 = vmatpush1.msra.mxu0 0.0
    %2288 = vmatprep.subr.mxu0 0.0
    %2289 = vmatpush1.msra.mxu0 0.0
    %2290 = vmatprep.subr.mxu0 0.0
    %2291 = vmatpush1.msra.mxu0 0.0
    %2292 = vmatprep.mubr.f32.mxu0 0.0
    %2293 = vmatmul.mubr.f32.gmra.mrb[0].mxu0 %v2151
    %v2294 = vpop.f32.mrb[0].mxu0
    %v2295 = vadd.f32 0.0, %v2294
    %v2296 = vpop.f32.mrb[0].mxu0
    %v2297 = vadd.f32 0.0, %v2296
    %2298 = vdwg.mxu0
    %2299 = vmatprep.subr.mxu0 0.0
    %2300 = vmatpush1.msra.mxu0 %v2182
    %2301 = vmatprep.subr.mxu0 0.0
    %2302 = vmatpush1.msra.mxu0 %v2185
    %2303 = vmatprep.subr.mxu0 0.0
    %2304 = vmatpush1.msra.mxu0 %v2188
    %2305 = vmatprep.subr.mxu0 0.0
    %2306 = vmatpush1.msra.mxu0 %v2191
    %2307 = vmatprep.subr.mxu0 0.0
    %2308 = vmatpush1.msra.mxu0 %v2194
    %2309 = vmatprep.subr.mxu0 0.0
    %2310 = vmatpush1.msra.mxu0 %v2197
    %2311 = vmatprep.subr.mxu0 0.0
    %2312 = vmatpush1.msra.mxu0 %v2200
    %2313 = vmatprep.subr.mxu0 0.0
    %2314 = vmatpush1.msra.mxu0 %v2203
    %2315 = vmatprep.subr.mxu0 0.0
    %2316 = vmatpush1.msra.mxu0 %v2206
    %2317 = vmatprep.subr.mxu0 0.0
    %2318 = vmatpush1.msra.mxu0 %v2209
    %2319 = vmatprep.subr.mxu0 0.0
    %2320 = vmatpush1.msra.mxu0 %v2212
    %2321 = vmatprep.subr.mxu0 0.0
    %2322 = vmatpush1.msra.mxu0 %v2215
    %2323 = vmatprep.subr.mxu0 0.0
    %2324 = vmatpush1.msra.mxu0 %v2218
    %2325 = vmatprep.subr.mxu0 0.0
    %2326 = vmatpush1.msra.mxu0 %v2221
    %2327 = vmatprep.subr.mxu0 0.0
    %2328 = vmatpush1.msra.mxu0 %v2224
    %2329 = vmatprep.subr.mxu0 0.0
    %2330 = vmatpush1.msra.mxu0 %v2227
    %2331 = vmatprep.subr.mxu0 0.0
    %2332 = vmatpush1.msra.mxu0 0.0
    %2333 = vmatprep.subr.mxu0 0.0
    %2334 = vmatpush1.msra.mxu0 0.0
    %2335 = vmatprep.subr.mxu0 0.0
    %2336 = vmatpush1.msra.mxu0 0.0
    %2337 = vmatprep.subr.mxu0 0.0
    %2338 = vmatpush1.msra.mxu0 0.0
    %2339 = vmatprep.subr.mxu0 0.0
    %2340 = vmatpush1.msra.mxu0 0.0
    %2341 = vmatprep.subr.mxu0 0.0
    %2342 = vmatpush1.msra.mxu0 0.0
    %2343 = vmatprep.subr.mxu0 0.0
    %2344 = vmatpush1.msra.mxu0 0.0
    %2345 = vmatprep.subr.mxu0 0.0
    %2346 = vmatpush1.msra.mxu0 0.0
    %2347 = vmatprep.subr.mxu0 0.0
    %2348 = vmatpush1.msra.mxu0 0.0
    %2349 = vmatprep.subr.mxu0 0.0
    %2350 = vmatpush1.msra.mxu0 0.0
    %2351 = vmatprep.subr.mxu0 0.0
    %2352 = vmatpush1.msra.mxu0 0.0
    %2353 = vmatprep.subr.mxu0 0.0
    %2354 = vmatpush1.msra.mxu0 0.0
    %2355 = vmatprep.subr.mxu0 0.0
    %2356 = vmatpush1.msra.mxu0 0.0
    %2357 = vmatprep.subr.mxu0 0.0
    %2358 = vmatpush1.msra.mxu0 0.0
    %2359 = vmatprep.subr.mxu0 0.0
    %2360 = vmatpush1.msra.mxu0 0.0
    %2361 = vmatprep.subr.mxu0 0.0
    %2362 = vmatpush1.msra.mxu0 0.0
    %2363 = vmatprep.mubr.f32.mxu0 0.0
    %2364 = vmatmul.mubr.f32.gmra.mrb[0].mxu0 %v2151
    %v2365 = vpop.f32.mrb[0].mxu0
    %v2366 = vadd.f32 0.0, %v2365
    %v2367 = vpop.f32.mrb[0].mxu0
    %2368 = vdwg.mxu0
    %2370 = vrot.lane.b32.xlu0 %v2295, 96
    %v2371 = vpop.permute.xlu0 %2370
    %2373 = vrot.lane.b32.xlu0 %v2295, 64
    %v2374 = vpop.permute.xlu0 %2373
    %2376 = vrot.lane.b32.xlu0 %v2295, 32
    %v2377 = vpop.permute.xlu0 %2376
    %2380 = vrot.lane.b32.xlu0 %v2297, 96
    %v2381 = vpop.permute.xlu0 %2380
    %2383 = vrot.lane.b32.xlu0 %v2297, 64
    %v2384 = vpop.permute.xlu0 %2383
    %2386 = vrot.lane.b32.xlu0 %v2297, 32
    %v2387 = vpop.permute.xlu0 %2386
    %2389 = vset.pattern.permute.xlu0 3
    %2390 = vperm.xlu0 %2389, %v378
    %v2391 = vpop.permute.xlu0 %2390
    %vm2393 = vcmask 588800
    %v2395 = vsel %vm2393, %v374, 0
    %2397 = vmatprep.subr.mxu0 0.0
    %2398 = vmatpush1.msra.mxu0 %v2295
    %2399 = vmatprep.subr.mxu0 0.0
    %2400 = vmatpush1.msra.mxu0 %v2371
    %2401 = vmatprep.subr.mxu0 0.0
    %2402 = vmatpush1.msra.mxu0 %v2374
    %2403 = vmatprep.subr.mxu0 0.0
    %2404 = vmatpush1.msra.mxu0 %v2377
    %2405 = vmatprep.subr.mxu0 0.0
    %2406 = vmatpush1.msra.mxu0 %v2297
    %2407 = vmatprep.subr.mxu0 0.0
    %2408 = vmatpush1.msra.mxu0 %v2381
    %2409 = vmatprep.subr.mxu0 0.0
    %2410 = vmatpush1.msra.mxu0 %v2384
    %2411 = vmatprep.subr.mxu0 0.0
    %2412 = vmatpush1.msra.mxu0 %v2387
    %2413 = vmatprep.subr.mxu0 0.0
    %2414 = vmatpush1.msra.mxu0 %v2366
    %2415 = vmatprep.subr.mxu0 0.0
    %2416 = vmatpush1.msra.mxu0 0.0
    %2417 = vmatprep.subr.mxu0 0.0
    %2418 = vmatpush1.msra.mxu0 0.0
    %2419 = vmatprep.subr.mxu0 0.0
    %2420 = vmatpush1.msra.mxu0 0.0
    %2421 = vmatprep.subr.mxu0 0.0
    %2422 = vmatpush1.msra.mxu0 0.0
    %2423 = vmatprep.subr.mxu0 0.0
    %2424 = vmatpush1.msra.mxu0 0.0
    %2425 = vmatprep.subr.mxu0 0.0
    %2426 = vmatpush1.msra.mxu0 0.0
    %2427 = vmatprep.subr.mxu0 0.0
    %2428 = vmatpush1.msra.mxu0 0.0
    %2429 = vmatprep.subr.mxu0 0.0
    %2430 = vmatpush1.msra.mxu0 0.0
    %2431 = vmatprep.subr.mxu0 0.0
    %2432 = vmatpush1.msra.mxu0 0.0
    %2433 = vmatprep.subr.mxu0 0.0
    %2434 = vmatpush1.msra.mxu0 0.0
    %2435 = vmatprep.subr.mxu0 0.0
    %2436 = vmatpush1.msra.mxu0 0.0
    %2437 = vmatprep.subr.mxu0 0.0
    %2438 = vmatpush1.msra.mxu0 0.0
    %2439 = vmatprep.subr.mxu0 0.0
    %2440 = vmatpush1.msra.mxu0 0.0
    %2441 = vmatprep.subr.mxu0 0.0
    %2442 = vmatpush1.msra.mxu0 0.0
    %2443 = vmatprep.subr.mxu0 0.0
    %2444 = vmatpush1.msra.mxu0 0.0
    %2445 = vmatprep.subr.mxu0 0.0
    %2446 = vmatpush1.msra.mxu0 0.0
    %2447 = vmatprep.subr.mxu0 0.0
    %2448 = vmatpush1.msra.mxu0 0.0
    %2449 = vmatprep.subr.mxu0 0.0
    %2450 = vmatpush1.msra.mxu0 0.0
    %2451 = vmatprep.subr.mxu0 0.0
    %2452 = vmatpush1.msra.mxu0 0.0
    %2453 = vmatprep.subr.mxu0 0.0
    %2454 = vmatpush1.msra.mxu0 0.0
    %2455 = vmatprep.subr.mxu0 0.0
    %2456 = vmatpush1.msra.mxu0 0.0
    %2457 = vmatprep.subr.mxu0 0.0
    %2458 = vmatpush1.msra.mxu0 0.0
    %2459 = vmatprep.subr.mxu0 0.0
    %2460 = vmatpush1.msra.mxu0 0.0
    %2461 = vmatprep.mubr.f32.mxu0 0.0
    %2462 = vmatmul.mubr.f32.gmra.mrb[0].mxu0 %v2395
    %v2463 = vpop.f32.mrb[0].mxu0
    %v2464 = vadd.f32 %v2391, %v2463
    %v2465 = vpop.f32.mrb[0].mxu0
    %2466 = vdwg.mxu0
    %vm2467 = vcmask 261120
    %v2468 = vsel %vm2467, %v2464, 0.0
    %2469 = vadd.xlane.f32.xlu0 %v2468
    %v2470 = vpop.xlane.xlu0 %2469
    %v2471 = vrcp.pop 32.0
    %v2472 = vmul.f32 %v2470, %v2471
    %v2473 = vsub.f32 %v2464, %v2472
    %v2474 = vmul.f32 %v2473, %v2473
    %v2475 = vsel %vm2467, %v2474, 0.0
    %2476 = vadd.xlane.f32.xlu0 %v2475
    %v2477 = vpop.xlane.xlu0 %2476
    %v2478 = vmul.f32 %v2477, %v2471
    %v2479 = vadd.f32 %v2478, 1e-05
    %v2480 = vrsqrt.pop %v2479
    %v2481 = vmul.f32 %v2473, %v2480
    %2482 = vset.pattern.permute.xlu0 4
    %2483 = vperm.xlu0 %2482, %v378
    %v2484 = vpop.permute.xlu0 %2483
    %v2486 = vmul.f32 %v2481, %v2484
    %2487 = vset.pattern.permute.xlu0 5
    %2488 = vperm.xlu0 %2487, %v378
    %v2489 = vpop.permute.xlu0 %2488
    %v2491 = vadd.f32 %v2486, %v2489
    %v2492 = vmax.f32 %v2491, 0.0
    %s2493 = smul.u32 4, 4
    %s2494 = smul.u32 %s2493, 9
    %s2495 = sshll.u32 %s2494, 4
    %2496 = dma.done %s301, %s2495
    %v2497 = vld [vmem:[#allocation3] sm:$0xff]
    %v2498 = vld [vmem:[#allocation3 + $0x8] sm:$0xff]
    %v2499 = vld [vmem:[#allocation3 + $0x10] sm:$0xff]
    %v2500 = vld [vmem:[#allocation3 + $0x18] sm:$0xff]
    %v2501 = vld [vmem:[#allocation3 + $0x20] sm:$0xff]
    %v2502 = vld [vmem:[#allocation3 + $0x28] sm:$0xff]
    %v2503 = vld [vmem:[#allocation3 + $0x30] sm:$0xff]
    %v2504 = vld [vmem:[#allocation3 + $0x38] sm:$0xff]
    %v2505 = vld [vmem:[#allocation3 + $0x40] sm:$0xff]
    %v2506 = vld [vmem:[#allocation3 + $0x48] sm:$0xff]
    %v2507 = vld [vmem:[#allocation3 + $0x50] sm:$0xff]
    %v2508 = vld [vmem:[#allocation3 + $0x58] sm:$0xff]
    %v2509 = vld [vmem:[#allocation3 + $0x60] sm:$0xff]
    %v2510 = vld [vmem:[#allocation3 + $0x68] sm:$0xff]
    %v2511 = vld [vmem:[#allocation3 + $0x70] sm:$0xff]
    %v2512 = vld [vmem:[#allocation3 + $0x78] sm:$0xff]
    %v2513 = vld [vmem:[#allocation3 + $0x80] sm:$0xff]
    %v2514 = vld [vmem:[#allocation3 + $0x88] sm:$0xff]
    %v2515 = vunpack.c.l.bf16 %v2497
    %v2516 = vunpack.c.l.bf16 %v2498
    %v2517 = vunpack.c.l.bf16 %v2499
    %v2518 = vunpack.c.l.bf16 %v2500
    %v2519 = vunpack.c.l.bf16 %v2501
    %v2520 = vunpack.c.l.bf16 %v2502
    %v2521 = vunpack.c.l.bf16 %v2503
    %v2522 = vunpack.c.l.bf16 %v2504
    %v2523 = vunpack.c.l.bf16 %v2505
    %v2524 = vunpack.c.h.bf16 %v2497
    %v2525 = vunpack.c.h.bf16 %v2498
    %v2526 = vunpack.c.h.bf16 %v2499
    %v2527 = vunpack.c.h.bf16 %v2500
    %v2528 = vunpack.c.h.bf16 %v2501
    %v2529 = vunpack.c.h.bf16 %v2502
    %v2530 = vunpack.c.h.bf16 %v2503
    %v2531 = vunpack.c.h.bf16 %v2504
    %v2532 = vunpack.c.h.bf16 %v2505
    %v2533 = vunpack.c.l.bf16 %v2506
    %v2534 = vunpack.c.l.bf16 %v2507
    %v2535 = vunpack.c.l.bf16 %v2508
    %v2536 = vunpack.c.l.bf16 %v2509
    %v2537 = vunpack.c.l.bf16 %v2510
    %v2538 = vunpack.c.l.bf16 %v2511
    %v2539 = vunpack.c.l.bf16 %v2512
    %v2540 = vunpack.c.l.bf16 %v2513
    %v2541 = vunpack.c.l.bf16 %v2514
    %v2542 = vunpack.c.h.bf16 %v2506
    %v2543 = vunpack.c.h.bf16 %v2507
    %v2544 = vunpack.c.h.bf16 %v2508
    %v2545 = vunpack.c.h.bf16 %v2509
    %v2546 = vunpack.c.h.bf16 %v2510
    %v2547 = vunpack.c.h.bf16 %v2511
    %v2548 = vunpack.c.h.bf16 %v2512
    %v2549 = vunpack.c.h.bf16 %v2513
    %v2550 = vunpack.c.h.bf16 %v2514
    %v2552 = vsel %vm2467, %v2492, 0
    %2554 = vmatprep.subr.mxu0 %v2516
    %2555 = vmatpush1.msra.mxu0 %v2515
    %2556 = vmatprep.subr.mxu0 %v2525
    %2557 = vmatpush1.msra.mxu0 %v2524
    %2558 = vmatprep.subr.mxu0 %v2534
    %2559 = vmatpush1.msra.mxu0 %v2533
    %2560 = vmatprep.subr.mxu0 %v2543
    %2561 = vmatpush1.msra.mxu0 %v2542
    %2562 = vmatprep.subr.mxu0 0.0
    %2563 = vmatpush1.msra.mxu0 0.0
    %2564 = vmatprep.subr.mxu0 0.0
    %2565 = vmatpush1.msra.mxu0 0.0
    %2566 = vmatprep.subr.mxu0 0.0
    %2567 = vmatpush1.msra.mxu0 0.0
    %2568 = vmatprep.subr.mxu0 0.0
    %2569 = vmatpush1.msra.mxu0 0.0
    %2570 = vmatprep.subr.mxu0 0.0
    %2571 = vmatpush1.msra.mxu0 0.0
    %2572 = vmatprep.subr.mxu0 0.0
    %2573 = vmatpush1.msra.mxu0 0.0
    %2574 = vmatprep.subr.mxu0 0.0
    %2575 = vmatpush1.msra.mxu0 0.0
    %2576 = vmatprep.subr.mxu0 0.0
    %2577 = vmatpush1.msra.mxu0 0.0
    %2578 = vmatprep.subr.mxu0 0.0
    %2579 = vmatpush1.msra.mxu0 0.0
    %2580 = vmatprep.subr.mxu0 0.0
    %2581 = vmatpush1.msra.mxu0 0.0
    %2582 = vmatprep.subr.mxu0 0.0
    %2583 = vmatpush1.msra.mxu0 0.0
    %2584 = vmatprep.subr.mxu0 0.0
    %2585 = vmatpush1.msra.mxu0 0.0
    %2586 = vmatprep.subr.mxu0 0.0
    %2587 = vmatpush1.msra.mxu0 0.0
    %2588 = vmatprep.subr.mxu0 0.0
    %2589 = vmatpush1.msra.mxu0 0.0
    %2590 = vmatprep.subr.mxu0 0.0
    %2591 = vmatpush1.msra.mxu0 0.0
    %2592 = vmatprep.subr.mxu0 0.0
    %2593 = vmatpush1.msra.mxu0 0.0
    %2594 = vmatprep.subr.mxu0 0.0
    %2595 = vmatpush1.msra.mxu0 0.0
    %2596 = vmatprep.subr.mxu0 0.0
    %2597 = vmatpush1.msra.mxu0 0.0
    %2598 = vmatprep.subr.mxu0 0.0
    %2599 = vmatpush1.msra.mxu0 0.0
    %2600 = vmatprep.subr.mxu0 0.0
    %2601 = vmatpush1.msra.mxu0 0.0
    %2602 = vmatprep.subr.mxu0 0.0
    %2603 = vmatpush1.msra.mxu0 0.0
    %2604 = vmatprep.subr.mxu0 0.0
    %2605 = vmatpush1.msra.mxu0 0.0
    %2606 = vmatprep.subr.mxu0 0.0
    %2607 = vmatpush1.msra.mxu0 0.0
    %2608 = vmatprep.subr.mxu0 0.0
    %2609 = vmatpush1.msra.mxu0 0.0
    %2610 = vmatprep.subr.mxu0 0.0
    %2611 = vmatpush1.msra.mxu0 0.0
    %2612 = vmatprep.subr.mxu0 0.0
    %2613 = vmatpush1.msra.mxu0 0.0
    %2614 = vmatprep.subr.mxu0 0.0
    %2615 = vmatpush1.msra.mxu0 0.0
    %2616 = vmatprep.subr.mxu0 0.0
    %2617 = vmatpush1.msra.mxu0 0.0
    %2618 = vmatprep.mubr.f32.mxu0 0.0
    %2619 = vmatmul.mubr.f32.gmra.mrb[0].mxu0 %v2552
    %v2620 = vpop.f32.mrb[0].mxu0
    %v2621 = vadd.f32 0.0, %v2620
    %v2622 = vpop.f32.mrb[0].mxu0
    %v2623 = vadd.f32 0.0, %v2622
    %2624 = vdwg.mxu0
    %2625 = vmatprep.subr.mxu0 %v2518
    %2626 = vmatpush1.msra.mxu0 %v2517
    %2627 = vmatprep.subr.mxu0 %v2527
    %2628 = vmatpush1.msra.mxu0 %v2526
    %2629 = vmatprep.subr.mxu0 %v2536
    %2630 = vmatpush1.msra.mxu0 %v2535
    %2631 = vmatprep.subr.mxu0 %v2545
    %2632 = vmatpush1.msra.mxu0 %v2544
    %2633 = vmatprep.subr.mxu0 0.0
    %2634 = vmatpush1.msra.mxu0 0.0
    %2635 = vmatprep.subr.mxu0 0.0
    %2636 = vmatpush1.msra.mxu0 0.0
    %2637 = vmatprep.subr.mxu0 0.0
    %2638 = vmatpush1.msra.mxu0 0.0
    %2639 = vmatprep.subr.mxu0 0.0
    %2640 = vmatpush1.msra.mxu0 0.0
    %2641 = vmatprep.subr.mxu0 0.0
    %2642 = vmatpush1.msra.mxu0 0.0
    %2643 = vmatprep.subr.mxu0 0.0
    %2644 = vmatpush1.msra.mxu0 0.0
    %2645 = vmatprep.subr.mxu0 0.0
    %2646 = vmatpush1.msra.mxu0 0.0
    %2647 = vmatprep.subr.mxu0 0.0
    %2648 = vmatpush1.msra.mxu0 0.0
    %2649 = vmatprep.subr.mxu0 0.0
    %2650 = vmatpush1.msra.mxu0 0.0
    %2651 = vmatprep.subr.mxu0 0.0
    %2652 = vmatpush1.msra.mxu0 0.0
    %2653 = vmatprep.subr.mxu0 0.0
    %2654 = vmatpush1.msra.mxu0 0.0
    %2655 = vmatprep.subr.mxu0 0.0
    %2656 = vmatpush1.msra.mxu0 0.0
    %2657 = vmatprep.subr.mxu0 0.0
    %2658 = vmatpush1.msra.mxu0 0.0
    %2659 = vmatprep.subr.mxu0 0.0
    %2660 = vmatpush1.msra.mxu0 0.0
    %2661 = vmatprep.subr.mxu0 0.0
    %2662 = vmatpush1.msra.mxu0 0.0
    %2663 = vmatprep.subr.mxu0 0.0
    %2664 = vmatpush1.msra.mxu0 0.0
    %2665 = vmatprep.subr.mxu0 0.0
    %2666 = vmatpush1.msra.mxu0 0.0
    %2667 = vmatprep.subr.mxu0 0.0
    %2668 = vmatpush1.msra.mxu0 0.0
    %2669 = vmatprep.subr.mxu0 0.0
    %2670 = vmatpush1.msra.mxu0 0.0
    %2671 = vmatprep.subr.mxu0 0.0
    %2672 = vmatpush1.msra.mxu0 0.0
    %2673 = vmatprep.subr.mxu0 0.0
    %2674 = vmatpush1.msra.mxu0 0.0
    %2675 = vmatprep.subr.mxu0 0.0
    %2676 = vmatpush1.msra.mxu0 0.0
    %2677 = vmatprep.subr.mxu0 0.0
    %2678 = vmatpush1.msra.mxu0 0.0
    %2679 = vmatprep.subr.mxu0 0.0
    %2680 = vmatpush1.msra.mxu0 0.0
    %2681 = vmatprep.subr.mxu0 0.0
    %2682 = vmatpush1.msra.mxu0 0.0
    %2683 = vmatprep.subr.mxu0 0.0
    %2684 = vmatpush1.msra.mxu0 0.0
    %2685 = vmatprep.subr.mxu0 0.0
    %2686 = vmatpush1.msra.mxu0 0.0
    %2687 = vmatprep.subr.mxu0 0.0
    %2688 = vmatpush1.msra.mxu0 0.0
    %2689 = vmatprep.mubr.f32.mxu0 0.0
    %2690 = vmatmul.mubr.f32.gmra.mrb[0].mxu0 %v2552
    %v2691 = vpop.f32.mrb[0].mxu0
    %v2692 = vadd.f32 0.0, %v2691
    %v2693 = vpop.f32.mrb[0].mxu0
    %v2694 = vadd.f32 0.0, %v2693
    %2695 = vdwg.mxu0
    %2696 = vmatprep.subr.mxu0 %v2520
    %2697 = vmatpush1.msra.mxu0 %v2519
    %2698 = vmatprep.subr.mxu0 %v2529
    %2699 = vmatpush1.msra.mxu0 %v2528
    %2700 = vmatprep.subr.mxu0 %v2538
    %2701 = vmatpush1.msra.mxu0 %v2537
    %2702 = vmatprep.subr.mxu0 %v2547
    %2703 = vmatpush1.msra.mxu0 %v2546
    %2704 = vmatprep.subr.mxu0 0.0
    %2705 = vmatpush1.msra.mxu0 0.0
    %2706 = vmatprep.subr.mxu0 0.0
    %2707 = vmatpush1.msra.mxu0 0.0
    %2708 = vmatprep.subr.mxu0 0.0
    %2709 = vmatpush1.msra.mxu0 0.0
    %2710 = vmatprep.subr.mxu0 0.0
    %2711 = vmatpush1.msra.mxu0 0.0
    %2712 = vmatprep.subr.mxu0 0.0
    %2713 = vmatpush1.msra.mxu0 0.0
    %2714 = vmatprep.subr.mxu0 0.0
    %2715 = vmatpush1.msra.mxu0 0.0
    %2716 = vmatprep.subr.mxu0 0.0
    %2717 = vmatpush1.msra.mxu0 0.0
    %2718 = vmatprep.subr.mxu0 0.0
    %2719 = vmatpush1.msra.mxu0 0.0
    %2720 = vmatprep.subr.mxu0 0.0
    %2721 = vmatpush1.msra.mxu0 0.0
    %2722 = vmatprep.subr.mxu0 0.0
    %2723 = vmatpush1.msra.mxu0 0.0
    %2724 = vmatprep.subr.mxu0 0.0
    %2725 = vmatpush1.msra.mxu0 0.0
    %2726 = vmatprep.subr.mxu0 0.0
    %2727 = vmatpush1.msra.mxu0 0.0
    %2728 = vmatprep.subr.mxu0 0.0
    %2729 = vmatpush1.msra.mxu0 0.0
    %2730 = vmatprep.subr.mxu0 0.0
    %2731 = vmatpush1.msra.mxu0 0.0
    %2732 = vmatprep.subr.mxu0 0.0
    %2733 = vmatpush1.msra.mxu0 0.0
    %2734 = vmatprep.subr.mxu0 0.0
    %2735 = vmatpush1.msra.mxu0 0.0
    %2736 = vmatprep.subr.mxu0 0.0
    %2737 = vmatpush1.msra.mxu0 0.0
    %2738 = vmatprep.subr.mxu0 0.0
    %2739 = vmatpush1.msra.mxu0 0.0
    %2740 = vmatprep.subr.mxu0 0.0
    %2741 = vmatpush1.msra.mxu0 0.0
    %2742 = vmatprep.subr.mxu0 0.0
    %2743 = vmatpush1.msra.mxu0 0.0
    %2744 = vmatprep.subr.mxu0 0.0
    %2745 = vmatpush1.msra.mxu0 0.0
    %2746 = vmatprep.subr.mxu0 0.0
    %2747 = vmatpush1.msra.mxu0 0.0
    %2748 = vmatprep.subr.mxu0 0.0
    %2749 = vmatpush1.msra.mxu0 0.0
    %2750 = vmatprep.subr.mxu0 0.0
    %2751 = vmatpush1.msra.mxu0 0.0
    %2752 = vmatprep.subr.mxu0 0.0
    %2753 = vmatpush1.msra.mxu0 0.0
    %2754 = vmatprep.subr.mxu0 0.0
    %2755 = vmatpush1.msra.mxu0 0.0
    %2756 = vmatprep.subr.mxu0 0.0
    %2757 = vmatpush1.msra.mxu0 0.0
    %2758 = vmatprep.subr.mxu0 0.0
    %2759 = vmatpush1.msra.mxu0 0.0
    %2760 = vmatprep.mubr.f32.mxu0 0.0
    %2761 = vmatmul.mubr.f32.gmra.mrb[0].mxu0 %v2552
    %v2762 = vpop.f32.mrb[0].mxu0
    %v2763 = vadd.f32 0.0, %v2762
    %v2764 = vpop.f32.mrb[0].mxu0
    %v2765 = vadd.f32 0.0, %v2764
    %2766 = vdwg.mxu0
    %2767 = vmatprep.subr.mxu0 %v2522
    %2768 = vmatpush1.msra.mxu0 %v2521
    %2769 = vmatprep.subr.mxu0 %v2531
    %2770 = vmatpush1.msra.mxu0 %v2530
    %2771 = vmatprep.subr.mxu0 %v2540
    %2772 = vmatpush1.msra.mxu0 %v2539
    %2773 = vmatprep.subr.mxu0 %v2549
    %2774 = vmatpush1.msra.mxu0 %v2548
    %2775 = vmatprep.subr.mxu0 0.0
    %2776 = vmatpush1.msra.mxu0 0.0
    %2777 = vmatprep.subr.mxu0 0.0
    %2778 = vmatpush1.msra.mxu0 0.0
    %2779 = vmatprep.subr.mxu0 0.0
    %2780 = vmatpush1.msra.mxu0 0.0
    %2781 = vmatprep.subr.mxu0 0.0
    %2782 = vmatpush1.msra.mxu0 0.0
    %2783 = vmatprep.subr.mxu0 0.0
    %2784 = vmatpush1.msra.mxu0 0.0
    %2785 = vmatprep.subr.mxu0 0.0
    %2786 = vmatpush1.msra.mxu0 0.0
    %2787 = vmatprep.subr.mxu0 0.0
    %2788 = vmatpush1.msra.mxu0 0.0
    %2789 = vmatprep.subr.mxu0 0.0
    %2790 = vmatpush1.msra.mxu0 0.0
    %2791 = vmatprep.subr.mxu0 0.0
    %2792 = vmatpush1.msra.mxu0 0.0
    %2793 = vmatprep.subr.mxu0 0.0
    %2794 = vmatpush1.msra.mxu0 0.0
    %2795 = vmatprep.subr.mxu0 0.0
    %2796 = vmatpush1.msra.mxu0 0.0
    %2797 = vmatprep.subr.mxu0 0.0
    %2798 = vmatpush1.msra.mxu0 0.0
    %2799 = vmatprep.subr.mxu0 0.0
    %2800 = vmatpush1.msra.mxu0 0.0
    %2801 = vmatprep.subr.mxu0 0.0
    %2802 = vmatpush1.msra.mxu0 0.0
    %2803 = vmatprep.subr.mxu0 0.0
    %2804 = vmatpush1.msra.mxu0 0.0
    %2805 = vmatprep.subr.mxu0 0.0
    %2806 = vmatpush1.msra.mxu0 0.0
    %2807 = vmatprep.subr.mxu0 0.0
    %2808 = vmatpush1.msra.mxu0 0.0
    %2809 = vmatprep.subr.mxu0 0.0
    %2810 = vmatpush1.msra.mxu0 0.0
    %2811 = vmatprep.subr.mxu0 0.0
    %2812 = vmatpush1.msra.mxu0 0.0
    %2813 = vmatprep.subr.mxu0 0.0
    %2814 = vmatpush1.msra.mxu0 0.0
    %2815 = vmatprep.subr.mxu0 0.0
    %2816 = vmatpush1.msra.mxu0 0.0
    %2817 = vmatprep.subr.mxu0 0.0
    %2818 = vmatpush1.msra.mxu0 0.0
    %2819 = vmatprep.subr.mxu0 0.0
    %2820 = vmatpush1.msra.mxu0 0.0
    %2821 = vmatprep.subr.mxu0 0.0
    %2822 = vmatpush1.msra.mxu0 0.0
    %2823 = vmatprep.subr.mxu0 0.0
    %2824 = vmatpush1.msra.mxu0 0.0
    %2825 = vmatprep.subr.mxu0 0.0
    %2826 = vmatpush1.msra.mxu0 0.0
    %2827 = vmatprep.subr.mxu0 0.0
    %2828 = vmatpush1.msra.mxu0 0.0
    %2829 = vmatprep.subr.mxu0 0.0
    %2830 = vmatpush1.msra.mxu0 0.0
    %2831 = vmatprep.mubr.f32.mxu0 0.0
    %2832 = vmatmul.mubr.f32.gmra.mrb[0].mxu0 %v2552
    %v2833 = vpop.f32.mrb[0].mxu0
    %v2834 = vadd.f32 0.0, %v2833
    %v2835 = vpop.f32.mrb[0].mxu0
    %v2836 = vadd.f32 0.0, %v2835
    %2837 = vdwg.mxu0
    %2838 = vmatprep.subr.mxu0 0.0
    %2839 = vmatpush1.msra.mxu0 %v2523
    %2840 = vmatprep.subr.mxu0 0.0
    %2841 = vmatpush1.msra.mxu0 %v2532
    %2842 = vmatprep.subr.mxu0 0.0
    %2843 = vmatpush1.msra.mxu0 %v2541
    %2844 = vmatprep.subr.mxu0 0.0
    %2845 = vmatpush1.msra.mxu0 %v2550
    %2846 = vmatprep.subr.mxu0 0.0
    %2847 = vmatpush1.msra.mxu0 0.0
    %2848 = vmatprep.subr.mxu0 0.0
    %2849 = vmatpush1.msra.mxu0 0.0
    %2850 = vmatprep.subr.mxu0 0.0
    %2851 = vmatpush1.msra.mxu0 0.0
    %2852 = vmatprep.subr.mxu0 0.0
    %2853 = vmatpush1.msra.mxu0 0.0
    %2854 = vmatprep.subr.mxu0 0.0
    %2855 = vmatpush1.msra.mxu0 0.0
    %2856 = vmatprep.subr.mxu0 0.0
    %2857 = vmatpush1.msra.mxu0 0.0
    %2858 = vmatprep.subr.mxu0 0.0
    %2859 = vmatpush1.msra.mxu0 0.0
    %2860 = vmatprep.subr.mxu0 0.0
    %2861 = vmatpush1.msra.mxu0 0.0
    %2862 = vmatprep.subr.mxu0 0.0
    %2863 = vmatpush1.msra.mxu0 0.0
    %2864 = vmatprep.subr.mxu0 0.0
    %2865 = vmatpush1.msra.mxu0 0.0
    %2866 = vmatprep.subr.mxu0 0.0
    %2867 = vmatpush1.msra.mxu0 0.0
    %2868 = vmatprep.subr.mxu0 0.0
    %2869 = vmatpush1.msra.mxu0 0.0
    %2870 = vmatprep.subr.mxu0 0.0
    %2871 = vmatpush1.msra.mxu0 0.0
    %2872 = vmatprep.subr.mxu0 0.0
    %2873 = vmatpush1.msra.mxu0 0.0
    %2874 = vmatprep.subr.mxu0 0.0
    %2875 = vmatpush1.msra.mxu0 0.0
    %2876 = vmatprep.subr.mxu0 0.0
    %2877 = vmatpush1.msra.mxu0 0.0
    %2878 = vmatprep.subr.mxu0 0.0
    %2879 = vmatpush1.msra.mxu0 0.0
    %2880 = vmatprep.subr.mxu0 0.0
    %2881 = vmatpush1.msra.mxu0 0.0
    %2882 = vmatprep.subr.mxu0 0.0
    %2883 = vmatpush1.msra.mxu0 0.0
    %2884 = vmatprep.subr.mxu0 0.0
    %2885 = vmatpush1.msra.mxu0 0.0
    %2886 = vmatprep.subr.mxu0 0.0
    %2887 = vmatpush1.msra.mxu0 0.0
    %2888 = vmatprep.subr.mxu0 0.0
    %2889 = vmatpush1.msra.mxu0 0.0
    %2890 = vmatprep.subr.mxu0 0.0
    %2891 = vmatpush1.msra.mxu0 0.0
    %2892 = vmatprep.subr.mxu0 0.0
    %2893 = vmatpush1.msra.mxu0 0.0
    %2894 = vmatprep.subr.mxu0 0.0
    %2895 = vmatpush1.msra.mxu0 0.0
    %2896 = vmatprep.subr.mxu0 0.0
    %2897 = vmatpush1.msra.mxu0 0.0
    %2898 = vmatprep.subr.mxu0 0.0
    %2899 = vmatpush1.msra.mxu0 0.0
    %2900 = vmatprep.subr.mxu0 0.0
    %2901 = vmatpush1.msra.mxu0 0.0
    %2902 = vmatprep.mubr.f32.mxu0 0.0
    %2903 = vmatmul.mubr.f32.gmra.mrb[0].mxu0 %v2552
    %v2904 = vpop.f32.mrb[0].mxu0
    %v2905 = vadd.f32 0.0, %v2904
    %v2906 = vpop.f32.mrb[0].mxu0
    %2907 = vdwg.mxu0
    %2908 = vset.pattern.permute.xlu0 6
    %2909 = vperm.xlu0 %2908, %v378
    %v2910 = vpop.permute.xlu0 %2909
    %v2913 = vsel %vm2393, %v375, 0
    %2915 = vmatprep.subr.mxu0 0.0
    %2916 = vmatpush1.msra.mxu0 %v2621
    %2917 = vmatprep.subr.mxu0 0.0
    %2918 = vmatpush1.msra.mxu0 %v2623
    %2919 = vmatprep.subr.mxu0 0.0
    %2920 = vmatpush1.msra.mxu0 %v2692
    %2921 = vmatprep.subr.mxu0 0.0
    %2922 = vmatpush1.msra.mxu0 %v2694
    %2923 = vmatprep.subr.mxu0 0.0
    %2924 = vmatpush1.msra.mxu0 %v2763
    %2925 = vmatprep.subr.mxu0 0.0
    %2926 = vmatpush1.msra.mxu0 %v2765
    %2927 = vmatprep.subr.mxu0 0.0
    %2928 = vmatpush1.msra.mxu0 %v2834
    %2929 = vmatprep.subr.mxu0 0.0
    %2930 = vmatpush1.msra.mxu0 %v2836
    %2931 = vmatprep.subr.mxu0 0.0
    %2932 = vmatpush1.msra.mxu0 %v2905
    %2933 = vmatprep.subr.mxu0 0.0
    %2934 = vmatpush1.msra.mxu0 0.0
    %2935 = vmatprep.subr.mxu0 0.0
    %2936 = vmatpush1.msra.mxu0 0.0
    %2937 = vmatprep.subr.mxu0 0.0
    %2938 = vmatpush1.msra.mxu0 0.0
    %2939 = vmatprep.subr.mxu0 0.0
    %2940 = vmatpush1.msra.mxu0 0.0
    %2941 = vmatprep.subr.mxu0 0.0
    %2942 = vmatpush1.msra.mxu0 0.0
    %2943 = vmatprep.subr.mxu0 0.0
    %2944 = vmatpush1.msra.mxu0 0.0
    %2945 = vmatprep.subr.mxu0 0.0
    %2946 = vmatpush1.msra.mxu0 0.0
    %2947 = vmatprep.subr.mxu0 0.0
    %2948 = vmatpush1.msra.mxu0 0.0
    %2949 = vmatprep.subr.mxu0 0.0
    %2950 = vmatpush1.msra.mxu0 0.0
    %2951 = vmatprep.subr.mxu0 0.0
    %2952 = vmatpush1.msra.mxu0 0.0
    %2953 = vmatprep.subr.mxu0 0.0
    %2954 = vmatpush1.msra.mxu0 0.0
    %2955 = vmatprep.subr.mxu0 0.0
    %2956 = vmatpush1.msra.mxu0 0.0
    %2957 = vmatprep.subr.mxu0 0.0
    %2958 = vmatpush1.msra.mxu0 0.0
    %2959 = vmatprep.subr.mxu0 0.0
    %2960 = vmatpush1.msra.mxu0 0.0
    %2961 = vmatprep.subr.mxu0 0.0
    %2962 = vmatpush1.msra.mxu0 0.0
    %2963 = vmatprep.subr.mxu0 0.0
    %2964 = vmatpush1.msra.mxu0 0.0
    %2965 = vmatprep.subr.mxu0 0.0
    %2966 = vmatpush1.msra.mxu0 0.0
    %2967 = vmatprep.subr.mxu0 0.0
    %2968 = vmatpush1.msra.mxu0 0.0
    %2969 = vmatprep.subr.mxu0 0.0
    %2970 = vmatpush1.msra.mxu0 0.0
    %2971 = vmatprep.subr.mxu0 0.0
    %2972 = vmatpush1.msra.mxu0 0.0
    %2973 = vmatprep.subr.mxu0 0.0
    %2974 = vmatpush1.msra.mxu0 0.0
    %2975 = vmatprep.subr.mxu0 0.0
    %2976 = vmatpush1.msra.mxu0 0.0
    %2977 = vmatprep.subr.mxu0 0.0
    %2978 = vmatpush1.msra.mxu0 0.0
    %2979 = vmatprep.mubr.f32.mxu0 0.0
    %2980 = vmatmul.mubr.f32.gmra.mrb[0].mxu0 %v2913
    %v2981 = vpop.f32.mrb[0].mxu0
    %v2982 = vadd.f32 %v2910, %v2981
    %v2983 = vpop.f32.mrb[0].mxu0
    %2984 = vdwg.mxu0
    %2985 = vadd.xlane.f32.xlu0 %v2982
    %v2986 = vpop.xlane.xlu0 %2985
    %v2987 = vmul.f32 %v2986, %v2131
    %v2988 = vsub.f32 %v2982, %v2987
    %v2989 = vmul.f32 %v2988, %v2988
    %2990 = vadd.xlane.f32.xlu0 %v2989
    %v2991 = vpop.xlane.xlu0 %2990
    %v2992 = vmul.f32 %v2991, %v2131
    %v2993 = vadd.f32 %v2992, 1e-05
    %v2994 = vrsqrt.pop %v2993
    %v2995 = vmul.f32 %v2988, %v2994
    %2996 = vset.pattern.permute.xlu0 7
    %2997 = vperm.xlu0 %2996, %v378
    %v2998 = vpop.permute.xlu0 %2997
    %v3000 = vmul.f32 %v2995, %v2998
    %3001 = vset.pattern.permute.xlu0 8
    %3002 = vperm.xlu0 %3001, %v378
    %v3003 = vpop.permute.xlu0 %3002
    %v3005 = vadd.f32 %v3000, %v3003
    %v3006 = vmax.f32 %v3005, 0.0
    %s3007 = smul.u32 %s2152, 36
    %s3008 = sshll.u32 %s3007, 4
    %3009 = dma.done %s337, %s3008
    %v3010 = vld [vmem:[#allocation4] sm:$0xff]
    %v3011 = vld [vmem:[#allocation4 + $0x8] sm:$0xff]
    %v3012 = vld [vmem:[#allocation4 + $0x10] sm:$0xff]
    %v3013 = vld [vmem:[#allocation4 + $0x18] sm:$0xff]
    %v3014 = vld [vmem:[#allocation4 + $0x20] sm:$0xff]
    %v3015 = vld [vmem:[#allocation4 + $0x28] sm:$0xff]
    %v3016 = vld [vmem:[#allocation4 + $0x30] sm:$0xff]
    %v3017 = vld [vmem:[#allocation4 + $0x38] sm:$0xff]
    %v3018 = vld [vmem:[#allocation4 + $0x40] sm:$0xff]
    %v3019 = vld [vmem:[#allocation4 + $0x48] sm:$0xff]
    %v3020 = vld [vmem:[#allocation4 + $0x50] sm:$0xff]
    %v3021 = vld [vmem:[#allocation4 + $0x58] sm:$0xff]
    %v3022 = vld [vmem:[#allocation4 + $0x60] sm:$0xff]
    %v3023 = vld [vmem:[#allocation4 + $0x68] sm:$0xff]
    %v3024 = vld [vmem:[#allocation4 + $0x70] sm:$0xff]
    %v3025 = vld [vmem:[#allocation4 + $0x78] sm:$0xff]
    %v3026 = vld [vmem:[#allocation4 + $0x80] sm:$0xff]
    %v3027 = vld [vmem:[#allocation4 + $0x88] sm:$0xff]
    %v3028 = vld [vmem:[#allocation4 + $0x90] sm:$0xff]
    %v3029 = vld [vmem:[#allocation4 + $0x98] sm:$0xff]
    %v3030 = vld [vmem:[#allocation4 + $0xa0] sm:$0xff]
    %v3031 = vld [vmem:[#allocation4 + $0xa8] sm:$0xff]
    %v3032 = vld [vmem:[#allocation4 + $0xb0] sm:$0xff]
    %v3033 = vld [vmem:[#allocation4 + $0xb8] sm:$0xff]
    %v3034 = vld [vmem:[#allocation4 + $0xc0] sm:$0xff]
    %v3035 = vld [vmem:[#allocation4 + $0xc8] sm:$0xff]
    %v3036 = vld [vmem:[#allocation4 + $0xd0] sm:$0xff]
    %v3037 = vld [vmem:[#allocation4 + $0xd8] sm:$0xff]
    %v3038 = vld [vmem:[#allocation4 + $0xe0] sm:$0xff]
    %v3039 = vld [vmem:[#allocation4 + $0xe8] sm:$0xff]
    %v3040 = vld [vmem:[#allocation4 + $0xf0] sm:$0xff]
    %v3041 = vld [vmem:[#allocation4 + $0xf8] sm:$0xff]
    %v3042 = vld [vmem:[#allocation4 + $0x100] sm:$0xff]
    %v3043 = vld [vmem:[#allocation4 + $0x108] sm:$0xff]
    %v3044 = vld [vmem:[#allocation4 + $0x110] sm:$0xff]
    %v3045 = vld [vmem:[#allocation4 + $0x118] sm:$0xff]
    %v3046 = vld [vmem:[#allocation4 + $0x120] sm:$0xff]
    %v3047 = vld [vmem:[#allocation4 + $0x128] sm:$0xff]
    %v3048 = vld [vmem:[#allocation4 + $0x130] sm:$0xff]
    %v3049 = vld [vmem:[#allocation4 + $0x138] sm:$0xff]
    %v3050 = vld [vmem:[#allocation4 + $0x140] sm:$0xff]
    %v3051 = vld [vmem:[#allocation4 + $0x148] sm:$0xff]
    %v3052 = vld [vmem:[#allocation4 + $0x150] sm:$0xff]
    %v3053 = vld [vmem:[#allocation4 + $0x158] sm:$0xff]
    %v3054 = vld [vmem:[#allocation4 + $0x160] sm:$0xff]
    %v3055 = vld [vmem:[#allocation4 + $0x168] sm:$0xff]
    %v3056 = vld [vmem:[#allocation4 + $0x170] sm:$0xff]
    %v3057 = vld [vmem:[#allocation4 + $0x178] sm:$0xff]
    %v3058 = vld [vmem:[#allocation4 + $0x180] sm:$0xff]
    %v3059 = vld [vmem:[#allocation4 + $0x188] sm:$0xff]
    %v3060 = vld [vmem:[#allocation4 + $0x190] sm:$0xff]
    %v3061 = vld [vmem:[#allocation4 + $0x198] sm:$0xff]
    %v3062 = vld [vmem:[#allocation4 + $0x1a0] sm:$0xff]
    %v3063 = vld [vmem:[#allocation4 + $0x1a8] sm:$0xff]
    %v3064 = vld [vmem:[#allocation4 + $0x1b0] sm:$0xff]
    %v3065 = vld [vmem:[#allocation4 + $0x1b8] sm:$0xff]
    %v3066 = vld [vmem:[#allocation4 + $0x1c0] sm:$0xff]
    %v3067 = vld [vmem:[#allocation4 + $0x1c8] sm:$0xff]
    %v3068 = vld [vmem:[#allocation4 + $0x1d0] sm:$0xff]
    %v3069 = vld [vmem:[#allocation4 + $0x1d8] sm:$0xff]
    %v3070 = vld [vmem:[#allocation4 + $0x1e0] sm:$0xff]
    %v3071 = vld [vmem:[#allocation4 + $0x1e8] sm:$0xff]
    %v3072 = vld [vmem:[#allocation4 + $0x1f0] sm:$0xff]
    %v3073 = vld [vmem:[#allocation4 + $0x1f8] sm:$0xff]
    %v3074 = vld [vmem:[#allocation4 + $0x200] sm:$0xff]
    %v3075 = vld [vmem:[#allocation4 + $0x208] sm:$0xff]
    %v3076 = vld [vmem:[#allocation4 + $0x210] sm:$0xff]
    %v3077 = vld [vmem:[#allocation4 + $0x218] sm:$0xff]
    %v3078 = vld [vmem:[#allocation4 + $0x220] sm:$0xff]
    %v3079 = vld [vmem:[#allocation4 + $0x228] sm:$0xff]
    %v3080 = vld [vmem:[#allocation4 + $0x230] sm:$0xff]
    %v3081 = vld [vmem:[#allocation4 + $0x238] sm:$0xff]
    %v3082 = vld [vmem:[#allocation4 + $0x240] sm:$0xff]
    %v3083 = vld [vmem:[#allocation4 + $0x248] sm:$0xff]
    %v3084 = vld [vmem:[#allocation4 + $0x250] sm:$0xff]
    %v3085 = vld [vmem:[#allocation4 + $0x258] sm:$0xff]
    %v3086 = vld [vmem:[#allocation4 + $0x260] sm:$0xff]
    %v3087 = vld [vmem:[#allocation4 + $0x268] sm:$0xff]
    %v3088 = vld [vmem:[#allocation4 + $0x270] sm:$0xff]
    %v3089 = vld [vmem:[#allocation4 + $0x278] sm:$0xff]
    %v3090 = vld [vmem:[#allocation4 + $0x280] sm:$0xff]
    %v3091 = vld [vmem:[#allocation4 + $0x288] sm:$0xff]
    %v3092 = vld [vmem:[#allocation4 + $0x290] sm:$0xff]
    %v3093 = vld [vmem:[#allocation4 + $0x298] sm:$0xff]
    %v3094 = vld [vmem:[#allocation4 + $0x2a0] sm:$0xff]
    %v3095 = vld [vmem:[#allocation4 + $0x2a8] sm:$0xff]
    %v3096 = vld [vmem:[#allocation4 + $0x2b0] sm:$0xff]
    %v3097 = vld [vmem:[#allocation4 + $0x2b8] sm:$0xff]
    %v3098 = vld [vmem:[#allocation4 + $0x2c0] sm:$0xff]
    %v3099 = vld [vmem:[#allocation4 + $0x2c8] sm:$0xff]
    %v3100 = vld [vmem:[#allocation4 + $0x2d0] sm:$0xff]
    %v3101 = vld [vmem:[#allocation4 + $0x2d8] sm:$0xff]
    %v3102 = vld [vmem:[#allocation4 + $0x2e0] sm:$0xff]
    %v3103 = vld [vmem:[#allocation4 + $0x2e8] sm:$0xff]
    %v3104 = vld [vmem:[#allocation4 + $0x2f0] sm:$0xff]
    %v3105 = vld [vmem:[#allocation4 + $0x2f8] sm:$0xff]
    %v3106 = vld [vmem:[#allocation4 + $0x300] sm:$0xff]
    %v3107 = vld [vmem:[#allocation4 + $0x308] sm:$0xff]
    %v3108 = vld [vmem:[#allocation4 + $0x310] sm:$0xff]
    %v3109 = vld [vmem:[#allocation4 + $0x318] sm:$0xff]
    %v3110 = vld [vmem:[#allocation4 + $0x320] sm:$0xff]
    %v3111 = vld [vmem:[#allocation4 + $0x328] sm:$0xff]
    %v3112 = vld [vmem:[#allocation4 + $0x330] sm:$0xff]
    %v3113 = vld [vmem:[#allocation4 + $0x338] sm:$0xff]
    %v3114 = vld [vmem:[#allocation4 + $0x340] sm:$0xff]
    %v3115 = vld [vmem:[#allocation4 + $0x348] sm:$0xff]
    %v3116 = vld [vmem:[#allocation4 + $0x350] sm:$0xff]
    %v3117 = vld [vmem:[#allocation4 + $0x358] sm:$0xff]
    %v3118 = vld [vmem:[#allocation4 + $0x360] sm:$0xff]
    %v3119 = vld [vmem:[#allocation4 + $0x368] sm:$0xff]
    %v3120 = vld [vmem:[#allocation4 + $0x370] sm:$0xff]
    %v3121 = vld [vmem:[#allocation4 + $0x378] sm:$0xff]
    %v3122 = vld [vmem:[#allocation4 + $0x380] sm:$0xff]
    %v3123 = vld [vmem:[#allocation4 + $0x388] sm:$0xff]
    %v3124 = vld [vmem:[#allocation4 + $0x390] sm:$0xff]
    %v3125 = vld [vmem:[#allocation4 + $0x398] sm:$0xff]
    %v3126 = vld [vmem:[#allocation4 + $0x3a0] sm:$0xff]
    %v3127 = vld [vmem:[#allocation4 + $0x3a8] sm:$0xff]
    %v3128 = vld [vmem:[#allocation4 + $0x3b0] sm:$0xff]
    %v3129 = vld [vmem:[#allocation4 + $0x3b8] sm:$0xff]
    %v3130 = vld [vmem:[#allocation4 + $0x3c0] sm:$0xff]
    %v3131 = vld [vmem:[#allocation4 + $0x3c8] sm:$0xff]
    %v3132 = vld [vmem:[#allocation4 + $0x3d0] sm:$0xff]
    %v3133 = vld [vmem:[#allocation4 + $0x3d8] sm:$0xff]
    %v3134 = vld [vmem:[#allocation4 + $0x3e0] sm:$0xff]
    %v3135 = vld [vmem:[#allocation4 + $0x3e8] sm:$0xff]
    %v3136 = vld [vmem:[#allocation4 + $0x3f0] sm:$0xff]
    %v3137 = vld [vmem:[#allocation4 + $0x3f8] sm:$0xff]
    %v3138 = vld [vmem:[#allocation4 + $0x400] sm:$0xff]
    %v3139 = vld [vmem:[#allocation4 + $0x408] sm:$0xff]
    %v3140 = vld [vmem:[#allocation4 + $0x410] sm:$0xff]
    %v3141 = vld [vmem:[#allocation4 + $0x418] sm:$0xff]
    %v3142 = vld [vmem:[#allocation4 + $0x420] sm:$0xff]
    %v3143 = vld [vmem:[#allocation4 + $0x428] sm:$0xff]
    %v3144 = vld [vmem:[#allocation4 + $0x430] sm:$0xff]
    %v3145 = vld [vmem:[#allocation4 + $0x438] sm:$0xff]
    %v3146 = vld [vmem:[#allocation4 + $0x440] sm:$0xff]
    %v3147 = vld [vmem:[#allocation4 + $0x448] sm:$0xff]
    %v3148 = vld [vmem:[#allocation4 + $0x450] sm:$0xff]
    %v3149 = vld [vmem:[#allocation4 + $0x458] sm:$0xff]
    %v3150 = vld [vmem:[#allocation4 + $0x460] sm:$0xff]
    %v3151 = vld [vmem:[#allocation4 + $0x468] sm:$0xff]
    %v3152 = vld [vmem:[#allocation4 + $0x470] sm:$0xff]
    %v3153 = vld [vmem:[#allocation4 + $0x478] sm:$0xff]
    %v3154 = vld [vmem:[#allocation4 + $0x480] sm:$0xff]
    %v3155 = vld [vmem:[#allocation4 + $0x488] sm:$0xff]
    %v3156 = vld [vmem:[#allocation4 + $0x490] sm:$0xff]
    %v3157 = vld [vmem:[#allocation4 + $0x498] sm:$0xff]
    %v3158 = vld [vmem:[#allocation4 + $0x4a0] sm:$0xff]
    %v3159 = vld [vmem:[#allocation4 + $0x4a8] sm:$0xff]
    %v3160 = vld [vmem:[#allocation4 + $0x4b0] sm:$0xff]
    %v3161 = vld [vmem:[#allocation4 + $0x4b8] sm:$0xff]
    %v3162 = vld [vmem:[#allocation4 + $0x4c0] sm:$0xff]
    %v3163 = vld [vmem:[#allocation4 + $0x4c8] sm:$0xff]
    %v3164 = vld [vmem:[#allocation4 + $0x4d0] sm:$0xff]
    %v3165 = vld [vmem:[#allocation4 + $0x4d8] sm:$0xff]
    %v3166 = vld [vmem:[#allocation4 + $0x4e0] sm:$0xff]
    %v3167 = vld [vmem:[#allocation4 + $0x4e8] sm:$0xff]
    %v3168 = vld [vmem:[#allocation4 + $0x4f0] sm:$0xff]
    %v3169 = vld [vmem:[#allocation4 + $0x4f8] sm:$0xff]
    %v3170 = vld [vmem:[#allocation4 + $0x500] sm:$0xff]
    %v3171 = vld [vmem:[#allocation4 + $0x508] sm:$0xff]
    %v3172 = vld [vmem:[#allocation4 + $0x510] sm:$0xff]
    %v3173 = vld [vmem:[#allocation4 + $0x518] sm:$0xff]
    %v3174 = vld [vmem:[#allocation4 + $0x520] sm:$0xff]
    %v3175 = vld [vmem:[#allocation4 + $0x528] sm:$0xff]
    %v3176 = vld [vmem:[#allocation4 + $0x530] sm:$0xff]
    %v3177 = vld [vmem:[#allocation4 + $0x538] sm:$0xff]
    %v3178 = vld [vmem:[#allocation4 + $0x540] sm:$0xff]
    %v3179 = vld [vmem:[#allocation4 + $0x548] sm:$0xff]
    %v3180 = vld [vmem:[#allocation4 + $0x550] sm:$0xff]
    %v3181 = vld [vmem:[#allocation4 + $0x558] sm:$0xff]
    %v3182 = vld [vmem:[#allocation4 + $0x560] sm:$0xff]
    %v3183 = vld [vmem:[#allocation4 + $0x568] sm:$0xff]
    %v3184 = vld [vmem:[#allocation4 + $0x570] sm:$0xff]
    %v3185 = vld [vmem:[#allocation4 + $0x578] sm:$0xff]
    %v3186 = vld [vmem:[#allocation4 + $0x580] sm:$0xff]
    %v3187 = vld [vmem:[#allocation4 + $0x588] sm:$0xff]
    %v3188 = vld [vmem:[#allocation4 + $0x590] sm:$0xff]
    %v3189 = vld [vmem:[#allocation4 + $0x598] sm:$0xff]
    %v3190 = vld [vmem:[#allocation4 + $0x5a0] sm:$0xff]
    %v3191 = vld [vmem:[#allocation4 + $0x5a8] sm:$0xff]
    %v3192 = vld [vmem:[#allocation4 + $0x5b0] sm:$0xff]
    %v3193 = vld [vmem:[#allocation4 + $0x5b8] sm:$0xff]
    %v3194 = vld [vmem:[#allocation4 + $0x5c0] sm:$0xff]
    %v3195 = vld [vmem:[#allocation4 + $0x5c8] sm:$0xff]
    %v3196 = vld [vmem:[#allocation4 + $0x5d0] sm:$0xff]
    %v3197 = vld [vmem:[#allocation4 + $0x5d8] sm:$0xff]
    %v3198 = vld [vmem:[#allocation4 + $0x5e0] sm:$0xff]
    %v3199 = vld [vmem:[#allocation4 + $0x5e8] sm:$0xff]
    %v3200 = vld [vmem:[#allocation4 + $0x5f0] sm:$0xff]
    %v3201 = vld [vmem:[#allocation4 + $0x5f8] sm:$0xff]
    %v3202 = vld [vmem:[#allocation4 + $0x600] sm:$0xff]
    %v3203 = vld [vmem:[#allocation4 + $0x608] sm:$0xff]
    %v3204 = vld [vmem:[#allocation4 + $0x610] sm:$0xff]
    %v3205 = vld [vmem:[#allocation4 + $0x618] sm:$0xff]
    %v3206 = vld [vmem:[#allocation4 + $0x620] sm:$0xff]
    %v3207 = vld [vmem:[#allocation4 + $0x628] sm:$0xff]
    %v3208 = vld [vmem:[#allocation4 + $0x630] sm:$0xff]
    %v3209 = vld [vmem:[#allocation4 + $0x638] sm:$0xff]
    %v3210 = vld [vmem:[#allocation4 + $0x640] sm:$0xff]
    %v3211 = vld [vmem:[#allocation4 + $0x648] sm:$0xff]
    %v3212 = vld [vmem:[#allocation4 + $0x650] sm:$0xff]
    %v3213 = vld [vmem:[#allocation4 + $0x658] sm:$0xff]
    %v3214 = vld [vmem:[#allocation4 + $0x660] sm:$0xff]
    %v3215 = vld [vmem:[#allocation4 + $0x668] sm:$0xff]
    %v3216 = vld [vmem:[#allocation4 + $0x670] sm:$0xff]
    %v3217 = vld [vmem:[#allocation4 + $0x678] sm:$0xff]
    %v3218 = vld [vmem:[#allocation4 + $0x680] sm:$0xff]
    %v3219 = vld [vmem:[#allocation4 + $0x688] sm:$0xff]
    %v3220 = vld [vmem:[#allocation4 + $0x690] sm:$0xff]
    %v3221 = vld [vmem:[#allocation4 + $0x698] sm:$0xff]
    %v3222 = vld [vmem:[#allocation4 + $0x6a0] sm:$0xff]
    %v3223 = vld [vmem:[#allocation4 + $0x6a8] sm:$0xff]
    %v3224 = vld [vmem:[#allocation4 + $0x6b0] sm:$0xff]
    %v3225 = vld [vmem:[#allocation4 + $0x6b8] sm:$0xff]
    %v3226 = vld [vmem:[#allocation4 + $0x6c0] sm:$0xff]
    %v3227 = vld [vmem:[#allocation4 + $0x6c8] sm:$0xff]
    %v3228 = vld [vmem:[#allocation4 + $0x6d0] sm:$0xff]
    %v3229 = vld [vmem:[#allocation4 + $0x6d8] sm:$0xff]
    %v3230 = vld [vmem:[#allocation4 + $0x6e0] sm:$0xff]
    %v3231 = vld [vmem:[#allocation4 + $0x6e8] sm:$0xff]
    %v3232 = vld [vmem:[#allocation4 + $0x6f0] sm:$0xff]
    %v3233 = vld [vmem:[#allocation4 + $0x6f8] sm:$0xff]
    %v3234 = vld [vmem:[#allocation4 + $0x700] sm:$0xff]
    %v3235 = vld [vmem:[#allocation4 + $0x708] sm:$0xff]
    %v3236 = vld [vmem:[#allocation4 + $0x710] sm:$0xff]
    %v3237 = vld [vmem:[#allocation4 + $0x718] sm:$0xff]
    %v3238 = vld [vmem:[#allocation4 + $0x720] sm:$0xff]
    %v3239 = vld [vmem:[#allocation4 + $0x728] sm:$0xff]
    %v3240 = vld [vmem:[#allocation4 + $0x730] sm:$0xff]
    %v3241 = vld [vmem:[#allocation4 + $0x738] sm:$0xff]
    %v3242 = vld [vmem:[#allocation4 + $0x740] sm:$0xff]
    %v3243 = vld [vmem:[#allocation4 + $0x748] sm:$0xff]
    %v3244 = vld [vmem:[#allocation4 + $0x750] sm:$0xff]
    %v3245 = vld [vmem:[#allocation4 + $0x758] sm:$0xff]
    %v3246 = vld [vmem:[#allocation4 + $0x760] sm:$0xff]
    %v3247 = vld [vmem:[#allocation4 + $0x768] sm:$0xff]
    %v3248 = vld [vmem:[#allocation4 + $0x770] sm:$0xff]
    %v3249 = vld [vmem:[#allocation4 + $0x778] sm:$0xff]
    %v3250 = vld [vmem:[#allocation4 + $0x780] sm:$0xff]
    %v3251 = vld [vmem:[#allocation4 + $0x788] sm:$0xff]
    %v3252 = vld [vmem:[#allocation4 + $0x790] sm:$0xff]
    %v3253 = vld [vmem:[#allocation4 + $0x798] sm:$0xff]
    %v3254 = vld [vmem:[#allocation4 + $0x7a0] sm:$0xff]
    %v3255 = vld [vmem:[#allocation4 + $0x7a8] sm:$0xff]
    %v3256 = vld [vmem:[#allocation4 + $0x7b0] sm:$0xff]
    %v3257 = vld [vmem:[#allocation4 + $0x7b8] sm:$0xff]
    %v3258 = vld [vmem:[#allocation4 + $0x7c0] sm:$0xff]
    %v3259 = vld [vmem:[#allocation4 + $0x7c8] sm:$0xff]
    %v3260 = vld [vmem:[#allocation4 + $0x7d0] sm:$0xff]
    %v3261 = vld [vmem:[#allocation4 + $0x7d8] sm:$0xff]
    %v3262 = vld [vmem:[#allocation4 + $0x7e0] sm:$0xff]
    %v3263 = vld [vmem:[#allocation4 + $0x7e8] sm:$0xff]
    %v3264 = vld [vmem:[#allocation4 + $0x7f0] sm:$0xff]
    %v3265 = vld [vmem:[#allocation4 + $0x7f8] sm:$0xff]
    %v3266 = vld [vmem:[#allocation4 + $0x800] sm:$0xff]
    %v3267 = vld [vmem:[#allocation4 + $0x808] sm:$0xff]
    %v3268 = vld [vmem:[#allocation4 + $0x810] sm:$0xff]
    %v3269 = vld [vmem:[#allocation4 + $0x818] sm:$0xff]
    %v3270 = vld [vmem:[#allocation4 + $0x820] sm:$0xff]
    %v3271 = vld [vmem:[#allocation4 + $0x828] sm:$0xff]
    %v3272 = vld [vmem:[#allocation4 + $0x830] sm:$0xff]
    %v3273 = vld [vmem:[#allocation4 + $0x838] sm:$0xff]
    %v3274 = vld [vmem:[#allocation4 + $0x840] sm:$0xff]
    %v3275 = vld [vmem:[#allocation4 + $0x848] sm:$0xff]
    %v3276 = vld [vmem:[#allocation4 + $0x850] sm:$0xff]
    %v3277 = vld [vmem:[#allocation4 + $0x858] sm:$0xff]
    %v3278 = vld [vmem:[#allocation4 + $0x860] sm:$0xff]
    %v3279 = vld [vmem:[#allocation4 + $0x868] sm:$0xff]
    %v3280 = vld [vmem:[#allocation4 + $0x870] sm:$0xff]
    %v3281 = vld [vmem:[#allocation4 + $0x878] sm:$0xff]
    %v3282 = vld [vmem:[#allocation4 + $0x880] sm:$0xff]
    %v3283 = vld [vmem:[#allocation4 + $0x888] sm:$0xff]
    %v3284 = vld [vmem:[#allocation4 + $0x890] sm:$0xff]
    %v3285 = vld [vmem:[#allocation4 + $0x898] sm:$0xff]
    %v3286 = vld [vmem:[#allocation4 + $0x8a0] sm:$0xff]
    %v3287 = vld [vmem:[#allocation4 + $0x8a8] sm:$0xff]
    %v3288 = vld [vmem:[#allocation4 + $0x8b0] sm:$0xff]
    %v3289 = vld [vmem:[#allocation4 + $0x8b8] sm:$0xff]
    %v3290 = vld [vmem:[#allocation4 + $0x8c0] sm:$0xff]
    %v3291 = vld [vmem:[#allocation4 + $0x8c8] sm:$0xff]
    %v3292 = vld [vmem:[#allocation4 + $0x8d0] sm:$0xff]
    %v3293 = vld [vmem:[#allocation4 + $0x8d8] sm:$0xff]
    %v3294 = vld [vmem:[#allocation4 + $0x8e0] sm:$0xff]
    %v3295 = vld [vmem:[#allocation4 + $0x8e8] sm:$0xff]
    %v3296 = vld [vmem:[#allocation4 + $0x8f0] sm:$0xff]
    %v3297 = vld [vmem:[#allocation4 + $0x8f8] sm:$0xff]
    %v3298 = vunpack.c.l.bf16 %v3010
    %v3299 = vunpack.c.l.bf16 %v3011
    %v3300 = vunpack.c.l.bf16 %v3012
    %v3301 = vunpack.c.l.bf16 %v3013
    %v3302 = vunpack.c.l.bf16 %v3014
    %v3303 = vunpack.c.l.bf16 %v3015
    %v3304 = vunpack.c.l.bf16 %v3016
    %v3305 = vunpack.c.l.bf16 %v3017
    %v3306 = vunpack.c.l.bf16 %v3018
    %v3307 = vunpack.c.l.bf16 %v3019
    %v3308 = vunpack.c.l.bf16 %v3020
    %v3309 = vunpack.c.l.bf16 %v3021
    %v3310 = vunpack.c.l.bf16 %v3022
    %v3311 = vunpack.c.l.bf16 %v3023
    %v3312 = vunpack.c.l.bf16 %v3024
    %v3313 = vunpack.c.l.bf16 %v3025
    %v3314 = vunpack.c.l.bf16 %v3026
    %v3315 = vunpack.c.l.bf16 %v3027
    %v3316 = vunpack.c.l.bf16 %v3028
    %v3317 = vunpack.c.l.bf16 %v3029
    %v3318 = vunpack.c.l.bf16 %v3030
    %v3319 = vunpack.c.l.bf16 %v3031
    %v3320 = vunpack.c.l.bf16 %v3032
    %v3321 = vunpack.c.l.bf16 %v3033
    %v3322 = vunpack.c.l.bf16 %v3034
    %v3323 = vunpack.c.l.bf16 %v3035
    %v3324 = vunpack.c.l.bf16 %v3036
    %v3325 = vunpack.c.l.bf16 %v3037
    %v3326 = vunpack.c.l.bf16 %v3038
    %v3327 = vunpack.c.l.bf16 %v3039
    %v3328 = vunpack.c.l.bf16 %v3040
    %v3329 = vunpack.c.l.bf16 %v3041
    %v3330 = vunpack.c.l.bf16 %v3042
    %v3331 = vunpack.c.l.bf16 %v3043
    %v3332 = vunpack.c.l.bf16 %v3044
    %v3333 = vunpack.c.l.bf16 %v3045
    %v3334 = vunpack.c.h.bf16 %v3010
    %v3335 = vunpack.c.h.bf16 %v3011
    %v3336 = vunpack.c.h.bf16 %v3012
    %v3337 = vunpack.c.h.bf16 %v3013
    %v3338 = vunpack.c.h.bf16 %v3014
    %v3339 = vunpack.c.h.bf16 %v3015
    %v3340 = vunpack.c.h.bf16 %v3016
    %v3341 = vunpack.c.h.bf16 %v3017
    %v3342 = vunpack.c.h.bf16 %v3018
    %v3343 = vunpack.c.h.bf16 %v3019
    %v3344 = vunpack.c.h.bf16 %v3020
    %v3345 = vunpack.c.h.bf16 %v3021
    %v3346 = vunpack.c.h.bf16 %v3022
    %v3347 = vunpack.c.h.bf16 %v3023
    %v3348 = vunpack.c.h.bf16 %v3024
    %v3349 = vunpack.c.h.bf16 %v3025
    %v3350 = vunpack.c.h.bf16 %v3026
    %v3351 = vunpack.c.h.bf16 %v3027
    %v3352 = vunpack.c.h.bf16 %v3028
    %v3353 = vunpack.c.h.bf16 %v3029
    %v3354 = vunpack.c.h.bf16 %v3030
    %v3355 = vunpack.c.h.bf16 %v3031
    %v3356 = vunpack.c.h.bf16 %v3032
    %v3357 = vunpack.c.h.bf16 %v3033
    %v3358 = vunpack.c.h.bf16 %v3034
    %v3359 = vunpack.c.h.bf16 %v3035
    %v3360 = vunpack.c.h.bf16 %v3036
    %v3361 = vunpack.c.h.bf16 %v3037
    %v3362 = vunpack.c.h.bf16 %v3038
    %v3363 = vunpack.c.h.bf16 %v3039
    %v3364 = vunpack.c.h.bf16 %v3040
    %v3365 = vunpack.c.h.bf16 %v3041
    %v3366 = vunpack.c.h.bf16 %v3042
    %v3367 = vunpack.c.h.bf16 %v3043
    %v3368 = vunpack.c.h.bf16 %v3044
    %v3369 = vunpack.c.h.bf16 %v3045
    %v3370 = vunpack.c.l.bf16 %v3046
    %v3371 = vunpack.c.l.bf16 %v3047
    %v3372 = vunpack.c.l.bf16 %v3048
    %v3373 = vunpack.c.l.bf16 %v3049
    %v3374 = vunpack.c.l.bf16 %v3050
    %v3375 = vunpack.c.l.bf16 %v3051
    %v3376 = vunpack.c.l.bf16 %v3052
    %v3377 = vunpack.c.l.bf16 %v3053
    %v3378 = vunpack.c.l.bf16 %v3054
    %v3379 = vunpack.c.l.bf16 %v3055
    %v3380 = vunpack.c.l.bf16 %v3056
    %v3381 = vunpack.c.l.bf16 %v3057
    %v3382 = vunpack.c.l.bf16 %v3058
    %v3383 = vunpack.c.l.bf16 %v3059
    %v3384 = vunpack.c.l.bf16 %v3060
    %v3385 = vunpack.c.l.bf16 %v3061
    %v3386 = vunpack.c.l.bf16 %v3062
    %v3387 = vunpack.c.l.bf16 %v3063
    %v3388 = vunpack.c.l.bf16 %v3064
    %v3389 = vunpack.c.l.bf16 %v3065
    %v3390 = vunpack.c.l.bf16 %v3066
    %v3391 = vunpack.c.l.bf16 %v3067
    %v3392 = vunpack.c.l.bf16 %v3068
    %v3393 = vunpack.c.l.bf16 %v3069
    %v3394 = vunpack.c.l.bf16 %v3070
    %v3395 = vunpack.c.l.bf16 %v3071
    %v3396 = vunpack.c.l.bf16 %v3072
    %v3397 = vunpack.c.l.bf16 %v3073
    %v3398 = vunpack.c.l.bf16 %v3074
    %v3399 = vunpack.c.l.bf16 %v3075
    %v3400 = vunpack.c.l.bf16 %v3076
    %v3401 = vunpack.c.l.bf16 %v3077
    %v3402 = vunpack.c.l.bf16 %v3078
    %v3403 = vunpack.c.l.bf16 %v3079
    %v3404 = vunpack.c.l.bf16 %v3080
    %v3405 = vunpack.c.l.bf16 %v3081
    %v3406 = vunpack.c.h.bf16 %v3046
    %v3407 = vunpack.c.h.bf16 %v3047
    %v3408 = vunpack.c.h.bf16 %v3048
    %v3409 = vunpack.c.h.bf16 %v3049
    %v3410 = vunpack.c.h.bf16 %v3050
    %v3411 = vunpack.c.h.bf16 %v3051
    %v3412 = vunpack.c.h.bf16 %v3052
    %v3413 = vunpack.c.h.bf16 %v3053
    %v3414 = vunpack.c.h.bf16 %v3054
    %v3415 = vunpack.c.h.bf16 %v3055
    %v3416 = vunpack.c.h.bf16 %v3056
    %v3417 = vunpack.c.h.bf16 %v3057
    %v3418 = vunpack.c.h.bf16 %v3058
    %v3419 = vunpack.c.h.bf16 %v3059
    %v3420 = vunpack.c.h.bf16 %v3060
    %v3421 = vunpack.c.h.bf16 %v3061
    %v3422 = vunpack.c.h.bf16 %v3062
    %v3423 = vunpack.c.h.bf16 %v3063
    %v3424 = vunpack.c.h.bf16 %v3064
    %v3425 = vunpack.c.h.bf16 %v3065
    %v3426 = vunpack.c.h.bf16 %v3066
    %v3427 = vunpack.c.h.bf16 %v3067
    %v3428 = vunpack.c.h.bf16 %v3068
    %v3429 = vunpack.c.h.bf16 %v3069
    %v3430 = vunpack.c.h.bf16 %v3070
    %v3431 = vunpack.c.h.bf16 %v3071
    %v3432 = vunpack.c.h.bf16 %v3072
    %v3433 = vunpack.c.h.bf16 %v3073
    %v3434 = vunpack.c.h.bf16 %v3074
    %v3435 = vunpack.c.h.bf16 %v3075
    %v3436 = vunpack.c.h.bf16 %v3076
    %v3437 = vunpack.c.h.bf16 %v3077
    %v3438 = vunpack.c.h.bf16 %v3078
    %v3439 = vunpack.c.h.bf16 %v3079
    %v3440 = vunpack.c.h.bf16 %v3080
    %v3441 = vunpack.c.h.bf16 %v3081
    %v3442 = vunpack.c.l.bf16 %v3082
    %v3443 = vunpack.c.l.bf16 %v3083
    %v3444 = vunpack.c.l.bf16 %v3084
    %v3445 = vunpack.c.l.bf16 %v3085
    %v3446 = vunpack.c.l.bf16 %v3086
    %v3447 = vunpack.c.l.bf16 %v3087
    %v3448 = vunpack.c.l.bf16 %v3088
    %v3449 = vunpack.c.l.bf16 %v3089
    %v3450 = vunpack.c.l.bf16 %v3090
    %v3451 = vunpack.c.l.bf16 %v3091
    %v3452 = vunpack.c.l.bf16 %v3092
    %v3453 = vunpack.c.l.bf16 %v3093
    %v3454 = vunpack.c.l.bf16 %v3094
    %v3455 = vunpack.c.l.bf16 %v3095
    %v3456 = vunpack.c.l.bf16 %v3096
    %v3457 = vunpack.c.l.bf16 %v3097
    %v3458 = vunpack.c.l.bf16 %v3098
    %v3459 = vunpack.c.l.bf16 %v3099
    %v3460 = vunpack.c.l.bf16 %v3100
    %v3461 = vunpack.c.l.bf16 %v3101
    %v3462 = vunpack.c.l.bf16 %v3102
    %v3463 = vunpack.c.l.bf16 %v3103
    %v3464 = vunpack.c.l.bf16 %v3104
    %v3465 = vunpack.c.l.bf16 %v3105
    %v3466 = vunpack.c.l.bf16 %v3106
    %v3467 = vunpack.c.l.bf16 %v3107
    %v3468 = vunpack.c.l.bf16 %v3108
    %v3469 = vunpack.c.l.bf16 %v3109
    %v3470 = vunpack.c.l.bf16 %v3110
    %v3471 = vunpack.c.l.bf16 %v3111
    %v3472 = vunpack.c.l.bf16 %v3112
    %v3473 = vunpack.c.l.bf16 %v3113
    %v3474 = vunpack.c.l.bf16 %v3114
    %v3475 = vunpack.c.l.bf16 %v3115
    %v3476 = vunpack.c.l.bf16 %v3116
    %v3477 = vunpack.c.l.bf16 %v3117
    %v3478 = vunpack.c.h.bf16 %v3082
    %v3479 = vunpack.c.h.bf16 %v3083
    %v3480 = vunpack.c.h.bf16 %v3084
    %v3481 = vunpack.c.h.bf16 %v3085
    %v3482 = vunpack.c.h.bf16 %v3086
    %v3483 = vunpack.c.h.bf16 %v3087
    %v3484 = vunpack.c.h.bf16 %v3088
    %v3485 = vunpack.c.h.bf16 %v3089
    %v3486 = vunpack.c.h.bf16 %v3090
    %v3487 = vunpack.c.h.bf16 %v3091
    %v3488 = vunpack.c.h.bf16 %v3092
    %v3489 = vunpack.c.h.bf16 %v3093
    %v3490 = vunpack.c.h.bf16 %v3094
    %v3491 = vunpack.c.h.bf16 %v3095
    %v3492 = vunpack.c.h.bf16 %v3096
    %v3493 = vunpack.c.h.bf16 %v3097
    %v3494 = vunpack.c.h.bf16 %v3098
    %v3495 = vunpack.c.h.bf16 %v3099
    %v3496 = vunpack.c.h.bf16 %v3100
    %v3497 = vunpack.c.h.bf16 %v3101
    %v3498 = vunpack.c.h.bf16 %v3102
    %v3499 = vunpack.c.h.bf16 %v3103
    %v3500 = vunpack.c.h.bf16 %v3104
    %v3501 = vunpack.c.h.bf16 %v3105
    %v3502 = vunpack.c.h.bf16 %v3106
    %v3503 = vunpack.c.h.bf16 %v3107
    %v3504 = vunpack.c.h.bf16 %v3108
    %v3505 = vunpack.c.h.bf16 %v3109
    %v3506 = vunpack.c.h.bf16 %v3110
    %v3507 = vunpack.c.h.bf16 %v3111
    %v3508 = vunpack.c.h.bf16 %v3112
    %v3509 = vunpack.c.h.bf16 %v3113
    %v3510 = vunpack.c.h.bf16 %v3114
    %v3511 = vunpack.c.h.bf16 %v3115
    %v3512 = vunpack.c.h.bf16 %v3116
    %v3513 = vunpack.c.h.bf16 %v3117
    %v3514 = vunpack.c.l.bf16 %v3118
    %v3515 = vunpack.c.l.bf16 %v3119
    %v3516 = vunpack.c.l.bf16 %v3120
    %v3517 = vunpack.c.l.bf16 %v3121
    %v3518 = vunpack.c.l.bf16 %v3122
    %v3519 = vunpack.c.l.bf16 %v3123
    %v3520 = vunpack.c.l.bf16 %v3124
    %v3521 = vunpack.c.l.bf16 %v3125
    %v3522 = vunpack.c.l.bf16 %v3126
    %v3523 = vunpack.c.l.bf16 %v3127
    %v3524 = vunpack.c.l.bf16 %v3128
    %v3525 = vunpack.c.l.bf16 %v3129
    %v3526 = vunpack.c.l.bf16 %v3130
    %v3527 = vunpack.c.l.bf16 %v3131
    %v3528 = vunpack.c.l.bf16 %v3132
    %v3529 = vunpack.c.l.bf16 %v3133
    %v3530 = vunpack.c.l.bf16 %v3134
    %v3531 = vunpack.c.l.bf16 %v3135
    %v3532 = vunpack.c.l.bf16 %v3136
    %v3533 = vunpack.c.l.bf16 %v3137
    %v3534 = vunpack.c.l.bf16 %v3138
    %v3535 = vunpack.c.l.bf16 %v3139
    %v3536 = vunpack.c.l.bf16 %v3140
    %v3537 = vunpack.c.l.bf16 %v3141
    %v3538 = vunpack.c.l.bf16 %v3142
    %v3539 = vunpack.c.l.bf16 %v3143
    %v3540 = vunpack.c.l.bf16 %v3144
    %v3541 = vunpack.c.l.bf16 %v3145
    %v3542 = vunpack.c.l.bf16 %v3146
    %v3543 = vunpack.c.l.bf16 %v3147
    %v3544 = vunpack.c.l.bf16 %v3148
    %v3545 = vunpack.c.l.bf16 %v3149
    %v3546 = vunpack.c.l.bf16 %v3150
    %v3547 = vunpack.c.l.bf16 %v3151
    %v3548 = vunpack.c.l.bf16 %v3152
    %v3549 = vunpack.c.l.bf16 %v3153
    %v3550 = vunpack.c.h.bf16 %v3118
    %v3551 = vunpack.c.h.bf16 %v3119
    %v3552 = vunpack.c.h.bf16 %v3120
    %v3553 = vunpack.c.h.bf16 %v3121
    %v3554 = vunpack.c.h.bf16 %v3122
    %v3555 = vunpack.c.h.bf16 %v3123
    %v3556 = vunpack.c.h.bf16 %v3124
    %v3557 = vunpack.c.h.bf16 %v3125
    %v3558 = vunpack.c.h.bf16 %v3126
    %v3559 = vunpack.c.h.bf16 %v3127
    %v3560 = vunpack.c.h.bf16 %v3128
    %v3561 = vunpack.c.h.bf16 %v3129
    %v3562 = vunpack.c.h.bf16 %v3130
    %v3563 = vunpack.c.h.bf16 %v3131
    %v3564 = vunpack.c.h.bf16 %v3132
    %v3565 = vunpack.c.h.bf16 %v3133
    %v3566 = vunpack.c.h.bf16 %v3134
    %v3567 = vunpack.c.h.bf16 %v3135
    %v3568 = vunpack.c.h.bf16 %v3136
    %v3569 = vunpack.c.h.bf16 %v3137
    %v3570 = vunpack.c.h.bf16 %v3138
    %v3571 = vunpack.c.h.bf16 %v3139
    %v3572 = vunpack.c.h.bf16 %v3140
    %v3573 = vunpack.c.h.bf16 %v3141
    %v3574 = vunpack.c.h.bf16 %v3142
    %v3575 = vunpack.c.h.bf16 %v3143
    %v3576 = vunpack.c.h.bf16 %v3144
    %v3577 = vunpack.c.h.bf16 %v3145
    %v3578 = vunpack.c.h.bf16 %v3146
    %v3579 = vunpack.c.h.bf16 %v3147
    %v3580 = vunpack.c.h.bf16 %v3148
    %v3581 = vunpack.c.h.bf16 %v3149
    %v3582 = vunpack.c.h.bf16 %v3150
    %v3583 = vunpack.c.h.bf16 %v3151
    %v3584 = vunpack.c.h.bf16 %v3152
    %v3585 = vunpack.c.h.bf16 %v3153
    %v3586 = vunpack.c.l.bf16 %v3154
    %v3587 = vunpack.c.l.bf16 %v3155
    %v3588 = vunpack.c.l.bf16 %v3156
    %v3589 = vunpack.c.l.bf16 %v3157
    %v3590 = vunpack.c.l.bf16 %v3158
    %v3591 = vunpack.c.l.bf16 %v3159
    %v3592 = vunpack.c.l.bf16 %v3160
    %v3593 = vunpack.c.l.bf16 %v3161
    %v3594 = vunpack.c.l.bf16 %v3162
    %v3595 = vunpack.c.l.bf16 %v3163
    %v3596 = vunpack.c.l.bf16 %v3164
    %v3597 = vunpack.c.l.bf16 %v3165
    %v3598 = vunpack.c.l.bf16 %v3166
    %v3599 = vunpack.c.l.bf16 %v3167
    %v3600 = vunpack.c.l.bf16 %v3168
    %v3601 = vunpack.c.l.bf16 %v3169
    %v3602 = vunpack.c.l.bf16 %v3170
    %v3603 = vunpack.c.l.bf16 %v3171
    %v3604 = vunpack.c.l.bf16 %v3172
    %v3605 = vunpack.c.l.bf16 %v3173
    %v3606 = vunpack.c.l.bf16 %v3174
    %v3607 = vunpack.c.l.bf16 %v3175
    %v3608 = vunpack.c.l.bf16 %v3176
    %v3609 = vunpack.c.l.bf16 %v3177
    %v3610 = vunpack.c.l.bf16 %v3178
    %v3611 = vunpack.c.l.bf16 %v3179
    %v3612 = vunpack.c.l.bf16 %v3180
    %v3613 = vunpack.c.l.bf16 %v3181
    %v3614 = vunpack.c.l.bf16 %v3182
    %v3615 = vunpack.c.l.bf16 %v3183
    %v3616 = vunpack.c.l.bf16 %v3184
    %v3617 = vunpack.c.l.bf16 %v3185
    %v3618 = vunpack.c.l.bf16 %v3186
    %v3619 = vunpack.c.l.bf16 %v3187
    %v3620 = vunpack.c.l.bf16 %v3188
    %v3621 = vunpack.c.l.bf16 %v3189
    %v3622 = vunpack.c.h.bf16 %v3154
    %v3623 = vunpack.c.h.bf16 %v3155
    %v3624 = vunpack.c.h.bf16 %v3156
    %v3625 = vunpack.c.h.bf16 %v3157
    %v3626 = vunpack.c.h.bf16 %v3158
    %v3627 = vunpack.c.h.bf16 %v3159
    %v3628 = vunpack.c.h.bf16 %v3160
    %v3629 = vunpack.c.h.bf16 %v3161
    %v3630 = vunpack.c.h.bf16 %v3162
    %v3631 = vunpack.c.h.bf16 %v3163
    %v3632 = vunpack.c.h.bf16 %v3164
    %v3633 = vunpack.c.h.bf16 %v3165
    %v3634 = vunpack.c.h.bf16 %v3166
    %v3635 = vunpack.c.h.bf16 %v3167
    %v3636 = vunpack.c.h.bf16 %v3168
    %v3637 = vunpack.c.h.bf16 %v3169
    %v3638 = vunpack.c.h.bf16 %v3170
    %v3639 = vunpack.c.h.bf16 %v3171
    %v3640 = vunpack.c.h.bf16 %v3172
    %v3641 = vunpack.c.h.bf16 %v3173
    %v3642 = vunpack.c.h.bf16 %v3174
    %v3643 = vunpack.c.h.bf16 %v3175
    %v3644 = vunpack.c.h.bf16 %v3176
    %v3645 = vunpack.c.h.bf16 %v3177
    %v3646 = vunpack.c.h.bf16 %v3178
    %v3647 = vunpack.c.h.bf16 %v3179
    %v3648 = vunpack.c.h.bf16 %v3180
    %v3649 = vunpack.c.h.bf16 %v3181
    %v3650 = vunpack.c.h.bf16 %v3182
    %v3651 = vunpack.c.h.bf16 %v3183
    %v3652 = vunpack.c.h.bf16 %v3184
    %v3653 = vunpack.c.h.bf16 %v3185
    %v3654 = vunpack.c.h.bf16 %v3186
    %v3655 = vunpack.c.h.bf16 %v3187
    %v3656 = vunpack.c.h.bf16 %v3188
    %v3657 = vunpack.c.h.bf16 %v3189
    %v3658 = vunpack.c.l.bf16 %v3190
    %v3659 = vunpack.c.l.bf16 %v3191
    %v3660 = vunpack.c.l.bf16 %v3192
    %v3661 = vunpack.c.l.bf16 %v3193
    %v3662 = vunpack.c.l.bf16 %v3194
    %v3663 = vunpack.c.l.bf16 %v3195
    %v3664 = vunpack.c.l.bf16 %v3196
    %v3665 = vunpack.c.l.bf16 %v3197
    %v3666 = vunpack.c.l.bf16 %v3198
    %v3667 = vunpack.c.l.bf16 %v3199
    %v3668 = vunpack.c.l.bf16 %v3200
    %v3669 = vunpack.c.l.bf16 %v3201
    %v3670 = vunpack.c.l.bf16 %v3202
    %v3671 = vunpack.c.l.bf16 %v3203
    %v3672 = vunpack.c.l.bf16 %v3204
    %v3673 = vunpack.c.l.bf16 %v3205
    %v3674 = vunpack.c.l.bf16 %v3206
    %v3675 = vunpack.c.l.bf16 %v3207
    %v3676 = vunpack.c.l.bf16 %v3208
    %v3677 = vunpack.c.l.bf16 %v3209
    %v3678 = vunpack.c.l.bf16 %v3210
    %v3679 = vunpack.c.l.bf16 %v3211
    %v3680 = vunpack.c.l.bf16 %v3212
    %v3681 = vunpack.c.l.bf16 %v3213
    %v3682 = vunpack.c.l.bf16 %v3214
    %v3683 = vunpack.c.l.bf16 %v3215
    %v3684 = vunpack.c.l.bf16 %v3216
    %v3685 = vunpack.c.l.bf16 %v3217
    %v3686 = vunpack.c.l.bf16 %v3218
    %v3687 = vunpack.c.l.bf16 %v3219
    %v3688 = vunpack.c.l.bf16 %v3220
    %v3689 = vunpack.c.l.bf16 %v3221
    %v3690 = vunpack.c.l.bf16 %v3222
    %v3691 = vunpack.c.l.bf16 %v3223
    %v3692 = vunpack.c.l.bf16 %v3224
    %v3693 = vunpack.c.l.bf16 %v3225
    %v3694 = vunpack.c.h.bf16 %v3190
    %v3695 = vunpack.c.h.bf16 %v3191
    %v3696 = vunpack.c.h.bf16 %v3192
    %v3697 = vunpack.c.h.bf16 %v3193
    %v3698 = vunpack.c.h.bf16 %v3194
    %v3699 = vunpack.c.h.bf16 %v3195
    %v3700 = vunpack.c.h.bf16 %v3196
    %v3701 = vunpack.c.h.bf16 %v3197
    %v3702 = vunpack.c.h.bf16 %v3198
    %v3703 = vunpack.c.h.bf16 %v3199
    %v3704 = vunpack.c.h.bf16 %v3200
    %v3705 = vunpack.c.h.bf16 %v3201
    %v3706 = vunpack.c.h.bf16 %v3202
    %v3707 = vunpack.c.h.bf16 %v3203
    %v3708 = vunpack.c.h.bf16 %v3204
    %v3709 = vunpack.c.h.bf16 %v3205
    %v3710 = vunpack.c.h.bf16 %v3206
    %v3711 = vunpack.c.h.bf16 %v3207
    %v3712 = vunpack.c.h.bf16 %v3208
    %v3713 = vunpack.c.h.bf16 %v3209
    %v3714 = vunpack.c.h.bf16 %v3210
    %v3715 = vunpack.c.h.bf16 %v3211
    %v3716 = vunpack.c.h.bf16 %v3212
    %v3717 = vunpack.c.h.bf16 %v3213
    %v3718 = vunpack.c.h.bf16 %v3214
    %v3719 = vunpack.c.h.bf16 %v3215
    %v3720 = vunpack.c.h.bf16 %v3216
    %v3721 = vunpack.c.h.bf16 %v3217
    %v3722 = vunpack.c.h.bf16 %v3218
    %v3723 = vunpack.c.h.bf16 %v3219
    %v3724 = vunpack.c.h.bf16 %v3220
    %v3725 = vunpack.c.h.bf16 %v3221
    %v3726 = vunpack.c.h.bf16 %v3222
    %v3727 = vunpack.c.h.bf16 %v3223
    %v3728 = vunpack.c.h.bf16 %v3224
    %v3729 = vunpack.c.h.bf16 %v3225
    %v3730 = vunpack.c.l.bf16 %v3226
    %v3731 = vunpack.c.l.bf16 %v3227
    %v3732 = vunpack.c.l.bf16 %v3228
    %v3733 = vunpack.c.l.bf16 %v3229
    %v3734 = vunpack.c.l.bf16 %v3230
    %v3735 = vunpack.c.l.bf16 %v3231
    %v3736 = vunpack.c.l.bf16 %v3232
    %v3737 = vunpack.c.l.bf16 %v3233
    %v3738 = vunpack.c.l.bf16 %v3234
    %v3739 = vunpack.c.l.bf16 %v3235
    %v3740 = vunpack.c.l.bf16 %v3236
    %v3741 = vunpack.c.l.bf16 %v3237
    %v3742 = vunpack.c.l.bf16 %v3238
    %v3743 = vunpack.c.l.bf16 %v3239
    %v3744 = vunpack.c.l.bf16 %v3240
    %v3745 = vunpack.c.l.bf16 %v3241
    %v3746 = vunpack.c.l.bf16 %v3242
    %v3747 = vunpack.c.l.bf16 %v3243
    %v3748 = vunpack.c.l.bf16 %v3244
    %v3749 = vunpack.c.l.bf16 %v3245
    %v3750 = vunpack.c.l.bf16 %v3246
    %v3751 = vunpack.c.l.bf16 %v3247
    %v3752 = vunpack.c.l.bf16 %v3248
    %v3753 = vunpack.c.l.bf16 %v3249
    %v3754 = vunpack.c.l.bf16 %v3250
    %v3755 = vunpack.c.l.bf16 %v3251
    %v3756 = vunpack.c.l.bf16 %v3252
    %v3757 = vunpack.c.l.bf16 %v3253
    %v3758 = vunpack.c.l.bf16 %v3254
    %v3759 = vunpack.c.l.bf16 %v3255
    %v3760 = vunpack.c.l.bf16 %v3256
    %v3761 = vunpack.c.l.bf16 %v3257
    %v3762 = vunpack.c.l.bf16 %v3258
    %v3763 = vunpack.c.l.bf16 %v3259
    %v3764 = vunpack.c.l.bf16 %v3260
    %v3765 = vunpack.c.l.bf16 %v3261
    %v3766 = vunpack.c.h.bf16 %v3226
    %v3767 = vunpack.c.h.bf16 %v3227
    %v3768 = vunpack.c.h.bf16 %v3228
    %v3769 = vunpack.c.h.bf16 %v3229
    %v3770 = vunpack.c.h.bf16 %v3230
    %v3771 = vunpack.c.h.bf16 %v3231
    %v3772 = vunpack.c.h.bf16 %v3232
    %v3773 = vunpack.c.h.bf16 %v3233
    %v3774 = vunpack.c.h.bf16 %v3234
    %v3775 = vunpack.c.h.bf16 %v3235
    %v3776 = vunpack.c.h.bf16 %v3236
    %v3777 = vunpack.c.h.bf16 %v3237
    %v3778 = vunpack.c.h.bf16 %v3238
    %v3779 = vunpack.c.h.bf16 %v3239
    %v3780 = vunpack.c.h.bf16 %v3240
    %v3781 = vunpack.c.h.bf16 %v3241
    %v3782 = vunpack.c.h.bf16 %v3242
    %v3783 = vunpack.c.h.bf16 %v3243
    %v3784 = vunpack.c.h.bf16 %v3244
    %v3785 = vunpack.c.h.bf16 %v3245
    %v3786 = vunpack.c.h.bf16 %v3246
    %v3787 = vunpack.c.h.bf16 %v3247
    %v3788 = vunpack.c.h.bf16 %v3248
    %v3789 = vunpack.c.h.bf16 %v3249
    %v3790 = vunpack.c.h.bf16 %v3250
    %v3791 = vunpack.c.h.bf16 %v3251
    %v3792 = vunpack.c.h.bf16 %v3252
    %v3793 = vunpack.c.h.bf16 %v3253
    %v3794 = vunpack.c.h.bf16 %v3254
    %v3795 = vunpack.c.h.bf16 %v3255
    %v3796 = vunpack.c.h.bf16 %v3256
    %v3797 = vunpack.c.h.bf16 %v3257
    %v3798 = vunpack.c.h.bf16 %v3258
    %v3799 = vunpack.c.h.bf16 %v3259
    %v3800 = vunpack.c.h.bf16 %v3260
    %v3801 = vunpack.c.h.bf16 %v3261
    %v3802 = vunpack.c.l.bf16 %v3262
    %v3803 = vunpack.c.l.bf16 %v3263
    %v3804 = vunpack.c.l.bf16 %v3264
    %v3805 = vunpack.c.l.bf16 %v3265
    %v3806 = vunpack.c.l.bf16 %v3266
    %v3807 = vunpack.c.l.bf16 %v3267
    %v3808 = vunpack.c.l.bf16 %v3268
    %v3809 = vunpack.c.l.bf16 %v3269
    %v3810 = vunpack.c.l.bf16 %v3270
    %v3811 = vunpack.c.l.bf16 %v3271
    %v3812 = vunpack.c.l.bf16 %v3272
    %v3813 = vunpack.c.l.bf16 %v3273
    %v3814 = vunpack.c.l.bf16 %v3274
    %v3815 = vunpack.c.l.bf16 %v3275
    %v3816 = vunpack.c.l.bf16 %v3276
    %v3817 = vunpack.c.l.bf16 %v3277
    %v3818 = vunpack.c.l.bf16 %v3278
    %v3819 = vunpack.c.l.bf16 %v3279
    %v3820 = vunpack.c.l.bf16 %v3280
    %v3821 = vunpack.c.l.bf16 %v3281
    %v3822 = vunpack.c.l.bf16 %v3282
    %v3823 = vunpack.c.l.bf16 %v3283
    %v3824 = vunpack.c.l.bf16 %v3284
    %v3825 = vunpack.c.l.bf16 %v3285
    %v3826 = vunpack.c.l.bf16 %v3286
    %v3827 = vunpack.c.l.bf16 %v3287
    %v3828 = vunpack.c.l.bf16 %v3288
    %v3829 = vunpack.c.l.bf16 %v3289
    %v3830 = vunpack.c.l.bf16 %v3290
    %v3831 = vunpack.c.l.bf16 %v3291
    %v3832 = vunpack.c.l.bf16 %v3292
    %v3833 = vunpack.c.l.bf16 %v3293
    %v3834 = vunpack.c.l.bf16 %v3294
    %v3835 = vunpack.c.l.bf16 %v3295
    %v3836 = vunpack.c.l.bf16 %v3296
    %v3837 = vunpack.c.l.bf16 %v3297
    %v3838 = vunpack.c.h.bf16 %v3262
    %v3839 = vunpack.c.h.bf16 %v3263
    %v3840 = vunpack.c.h.bf16 %v3264
    %v3841 = vunpack.c.h.bf16 %v3265
    %v3842 = vunpack.c.h.bf16 %v3266
    %v3843 = vunpack.c.h.bf16 %v3267
    %v3844 = vunpack.c.h.bf16 %v3268
    %v3845 = vunpack.c.h.bf16 %v3269
    %v3846 = vunpack.c.h.bf16 %v3270
    %v3847 = vunpack.c.h.bf16 %v3271
    %v3848 = vunpack.c.h.bf16 %v3272
    %v3849 = vunpack.c.h.bf16 %v3273
    %v3850 = vunpack.c.h.bf16 %v3274
    %v3851 = vunpack.c.h.bf16 %v3275
    %v3852 = vunpack.c.h.bf16 %v3276
    %v3853 = vunpack.c.h.bf16 %v3277
    %v3854 = vunpack.c.h.bf16 %v3278
    %v3855 = vunpack.c.h.bf16 %v3279
    %v3856 = vunpack.c.h.bf16 %v3280
    %v3857 = vunpack.c.h.bf16 %v3281
    %v3858 = vunpack.c.h.bf16 %v3282
    %v3859 = vunpack.c.h.bf16 %v3283
    %v3860 = vunpack.c.h.bf16 %v3284
    %v3861 = vunpack.c.h.bf16 %v3285
    %v3862 = vunpack.c.h.bf16 %v3286
    %v3863 = vunpack.c.h.bf16 %v3287
    %v3864 = vunpack.c.h.bf16 %v3288
    %v3865 = vunpack.c.h.bf16 %v3289
    %v3866 = vunpack.c.h.bf16 %v3290
    %v3867 = vunpack.c.h.bf16 %v3291
    %v3868 = vunpack.c.h.bf16 %v3292
    %v3869 = vunpack.c.h.bf16 %v3293
    %v3870 = vunpack.c.h.bf16 %v3294
    %v3871 = vunpack.c.h.bf16 %v3295
    %v3872 = vunpack.c.h.bf16 %v3296
    %v3873 = vunpack.c.h.bf16 %v3297
    %3874 = vmatprep.subr.mxu0 %v3299
    %3875 = vmatpush1.msra.mxu0 %v3298
    %3876 = vmatprep.subr.mxu0 %v3335
    %3877 = vmatpush1.msra.mxu0 %v3334
    %3878 = vmatprep.subr.mxu0 %v3371
    %3879 = vmatpush1.msra.mxu0 %v3370
    %3880 = vmatprep.subr.mxu0 %v3407
    %3881 = vmatpush1.msra.mxu0 %v3406
    %3882 = vmatprep.subr.mxu0 %v3443
    %3883 = vmatpush1.msra.mxu0 %v3442
    %3884 = vmatprep.subr.mxu0 %v3479
    %3885 = vmatpush1.msra.mxu0 %v3478
    %3886 = vmatprep.subr.mxu0 %v3515
    %3887 = vmatpush1.msra.mxu0 %v3514
    %3888 = vmatprep.subr.mxu0 %v3551
    %3889 = vmatpush1.msra.mxu0 %v3550
    %3890 = vmatprep.subr.mxu0 %v3587
    %3891 = vmatpush1.msra.mxu0 %v3586
    %3892 = vmatprep.subr.mxu0 %v3623
    %3893 = vmatpush1.msra.mxu0 %v3622
    %3894 = vmatprep.subr.mxu0 %v3659
    %3895 = vmatpush1.msra.mxu0 %v3658
    %3896 = vmatprep.subr.mxu0 %v3695
    %3897 = vmatpush1.msra.mxu0 %v3694
    %3898 = vmatprep.subr.mxu0 %v3731
    %3899 = vmatpush1.msra.mxu0 %v3730
    %3900 = vmatprep.subr.mxu0 %v3767
    %3901 = vmatpush1.msra.mxu0 %v3766
    %3902 = vmatprep.subr.mxu0 %v3803
    %3903 = vmatpush1.msra.mxu0 %v3802
    %3904 = vmatprep.subr.mxu0 %v3839
    %3905 = vmatpush1.msra.mxu0 %v3838
    %3906 = vmatprep.subr.mxu0 0.0
    %3907 = vmatpush1.msra.mxu0 0.0
    %3908 = vmatprep.subr.mxu0 0.0
    %3909 = vmatpush1.msra.mxu0 0.0
    %3910 = vmatprep.subr.mxu0 0.0
    %3911 = vmatpush1.msra.mxu0 0.0
    %3912 = vmatprep.subr.mxu0 0.0
    %3913 = vmatpush1.msra.mxu0 0.0
    %3914 = vmatprep.subr.mxu0 0.0
    %3915 = vmatpush1.msra.mxu0 0.0
    %3916 = vmatprep.subr.mxu0 0.0
    %3917 = vmatpush1.msra.mxu0 0.0
    %3918 = vmatprep.subr.mxu0 0.0
    %3919 = vmatpush1.msra.mxu0 0.0
    %3920 = vmatprep.subr.mxu0 0.0
    %3921 = vmatpush1.msra.mxu0 0.0
    %3922 = vmatprep.subr.mxu0 0.0
    %3923 = vmatpush1.msra.mxu0 0.0
    %3924 = vmatprep.subr.mxu0 0.0
    %3925 = vmatpush1.msra.mxu0 0.0
    %3926 = vmatprep.subr.mxu0 0.0
    %3927 = vmatpush1.msra.mxu0 0.0
    %3928 = vmatprep.subr.mxu0 0.0
    %3929 = vmatpush1.msra.mxu0 0.0
    %3930 = vmatprep.subr.mxu0 0.0
    %3931 = vmatpush1.msra.mxu0 0.0
    %3932 = vmatprep.subr.mxu0 0.0
    %3933 = vmatpush1.msra.mxu0 0.0
    %3934 = vmatprep.subr.mxu0 0.0
    %3935 = vmatpush1.msra.mxu0 0.0
    %3936 = vmatprep.subr.mxu0 0.0
    %3937 = vmatpush1.msra.mxu0 0.0
    %3938 = vmatprep.mubr.f32.mxu0 0.0
    %3939 = vmatmul.mubr.f32.gmra.mrb[0].mxu0 %v3006
    %v3940 = vpop.f32.mrb[0].mxu0
    %v3941 = vadd.f32 0.0, %v3940
    %v3942 = vpop.f32.mrb[0].mxu0
    %v3943 = vadd.f32 0.0, %v3942
    %3944 = vdwg.mxu0
    %3945 = vmatprep.subr.mxu0 %v3301
    %3946 = vmatpush1.msra.mxu0 %v3300
    %3947 = vmatprep.subr.mxu0 %v3337
    %3948 = vmatpush1.msra.mxu0 %v3336
    %3949 = vmatprep.subr.mxu0 %v3373
    %3950 = vmatpush1.msra.mxu0 %v3372
    %3951 = vmatprep.subr.mxu0 %v3409
    %3952 = vmatpush1.msra.mxu0 %v3408
    %3953 = vmatprep.subr.mxu0 %v3445
    %3954 = vmatpush1.msra.mxu0 %v3444
    %3955 = vmatprep.subr.mxu0 %v3481
    %3956 = vmatpush1.msra.mxu0 %v3480
    %3957 = vmatprep.subr.mxu0 %v3517
    %3958 = vmatpush1.msra.mxu0 %v3516
    %3959 = vmatprep.subr.mxu0 %v3553
    %3960 = vmatpush1.msra.mxu0 %v3552
    %3961 = vmatprep.subr.mxu0 %v3589
    %3962 = vmatpush1.msra.mxu0 %v3588
    %3963 = vmatprep.subr.mxu0 %v3625
    %3964 = vmatpush1.msra.mxu0 %v3624
    %3965 = vmatprep.subr.mxu0 %v3661
    %3966 = vmatpush1.msra.mxu0 %v3660
    %3967 = vmatprep.subr.mxu0 %v3697
    %3968 = vmatpush1.msra.mxu0 %v3696
    %3969 = vmatprep.subr.mxu0 %v3733
    %3970 = vmatpush1.msra.mxu0 %v3732
    %3971 = vmatprep.subr.mxu0 %v3769
    %3972 = vmatpush1.msra.mxu0 %v3768
    %3973 = vmatprep.subr.mxu0 %v3805
    %3974 = vmatpush1.msra.mxu0 %v3804
    %3975 = vmatprep.subr.mxu0 %v3841
    %3976 = vmatpush1.msra.mxu0 %v3840
    %3977 = vmatprep.subr.mxu0 0.0
    %3978 = vmatpush1.msra.mxu0 0.0
    %3979 = vmatprep.subr.mxu0 0.0
    %3980 = vmatpush1.msra.mxu0 0.0
    %3981 = vmatprep.subr.mxu0 0.0
    %3982 = vmatpush1.msra.mxu0 0.0
    %3983 = vmatprep.subr.mxu0 0.0
    %3984 = vmatpush1.msra.mxu0 0.0
    %3985 = vmatprep.subr.mxu0 0.0
    %3986 = vmatpush1.msra.mxu0 0.0
    %3987 = vmatprep.subr.mxu0 0.0
    %3988 = vmatpush1.msra.mxu0 0.0
    %3989 = vmatprep.subr.mxu0 0.0
    %3990 = vmatpush1.msra.mxu0 0.0
    %3991 = vmatprep.subr.mxu0 0.0
    %3992 = vmatpush1.msra.mxu0 0.0
    %3993 = vmatprep.subr.mxu0 0.0
    %3994 = vmatpush1.msra.mxu0 0.0
    %3995 = vmatprep.subr.mxu0 0.0
    %3996 = vmatpush1.msra.mxu0 0.0
    %3997 = vmatprep.subr.mxu0 0.0
    %3998 = vmatpush1.msra.mxu0 0.0
    %3999 = vmatprep.subr.mxu0 0.0
    %4000 = vmatpush1.msra.mxu0 0.0
    %4001 = vmatprep.subr.mxu0 0.0
    %4002 = vmatpush1.msra.mxu0 0.0
    %4003 = vmatprep.subr.mxu0 0.0
    %4004 = vmatpush1.msra.mxu0 0.0
    %4005 = vmatprep.subr.mxu0 0.0
    %4006 = vmatpush1.msra.mxu0 0.0
    %4007 = vmatprep.subr.mxu0 0.0
    %4008 = vmatpush1.msra.mxu0 0.0
    %4009 = vmatprep.mubr.f32.mxu0 0.0
    %4010 = vmatmul.mubr.f32.gmra.mrb[0].mxu0 %v3006
    %v4011 = vpop.f32.mrb[0].mxu0
    %v4012 = vadd.f32 0.0, %v4011
    %v4013 = vpop.f32.mrb[0].mxu0
    %v4014 = vadd.f32 0.0, %v4013
    %4015 = vdwg.mxu0
    %4016 = vmatprep.subr.mxu0 %v3303
    %4017 = vmatpush1.msra.mxu0 %v3302
    %4018 = vmatprep.subr.mxu0 %v3339
    %4019 = vmatpush1.msra.mxu0 %v3338
    %4020 = vmatprep.subr.mxu0 %v3375
    %4021 = vmatpush1.msra.mxu0 %v3374
    %4022 = vmatprep.subr.mxu0 %v3411
    %4023 = vmatpush1.msra.mxu0 %v3410
    %4024 = vmatprep.subr.mxu0 %v3447
    %4025 = vmatpush1.msra.mxu0 %v3446
    %4026 = vmatprep.subr.mxu0 %v3483
    %4027 = vmatpush1.msra.mxu0 %v3482
    %4028 = vmatprep.subr.mxu0 %v3519
    %4029 = vmatpush1.msra.mxu0 %v3518
    %4030 = vmatprep.subr.mxu0 %v3555
    %4031 = vmatpush1.msra.mxu0 %v3554
    %4032 = vmatprep.subr.mxu0 %v3591
    %4033 = vmatpush1.msra.mxu0 %v3590
    %4034 = vmatprep.subr.mxu0 %v3627
    %4035 = vmatpush1.msra.mxu0 %v3626
    %4036 = vmatprep.subr.mxu0 %v3663
    %4037 = vmatpush1.msra.mxu0 %v3662
    %4038 = vmatprep.subr.mxu0 %v3699
    %4039 = vmatpush1.msra.mxu0 %v3698
    %4040 = vmatprep.subr.mxu0 %v3735
    %4041 = vmatpush1.msra.mxu0 %v3734
    %4042 = vmatprep.subr.mxu0 %v3771
    %4043 = vmatpush1.msra.mxu0 %v3770
    %4044 = vmatprep.subr.mxu0 %v3807
    %4045 = vmatpush1.msra.mxu0 %v3806
    %4046 = vmatprep.subr.mxu0 %v3843
    %4047 = vmatpush1.msra.mxu0 %v3842
    %4048 = vmatprep.subr.mxu0 0.0
    %4049 = vmatpush1.msra.mxu0 0.0
    %4050 = vmatprep.subr.mxu0 0.0
    %4051 = vmatpush1.msra.mxu0 0.0
    %4052 = vmatprep.subr.mxu0 0.0
    %4053 = vmatpush1.msra.mxu0 0.0
    %4054 = vmatprep.subr.mxu0 0.0
    %4055 = vmatpush1.msra.mxu0 0.0
    %4056 = vmatprep.subr.mxu0 0.0
    %4057 = vmatpush1.msra.mxu0 0.0
    %4058 = vmatprep.subr.mxu0 0.0
    %4059 = vmatpush1.msra.mxu0 0.0
    %4060 = vmatprep.subr.mxu0 0.0
    %4061 = vmatpush1.msra.mxu0 0.0
    %4062 = vmatprep.subr.mxu0 0.0
    %4063 = vmatpush1.msra.mxu0 0.0
    %4064 = vmatprep.subr.mxu0 0.0
    %4065 = vmatpush1.msra.mxu0 0.0
    %4066 = vmatprep.subr.mxu0 0.0
    %4067 = vmatpush1.msra.mxu0 0.0
    %4068 = vmatprep.subr.mxu0 0.0
    %4069 = vmatpush1.msra.mxu0 0.0
    %4070 = vmatprep.subr.mxu0 0.0
    %4071 = vmatpush1.msra.mxu0 0.0
    %4072 = vmatprep.subr.mxu0 0.0
    %4073 = vmatpush1.msra.mxu0 0.0
    %4074 = vmatprep.subr.mxu0 0.0
    %4075 = vmatpush1.msra.mxu0 0.0
    %4076 = vmatprep.subr.mxu0 0.0
    %4077 = vmatpush1.msra.mxu0 0.0
    %4078 = vmatprep.subr.mxu0 0.0
    %4079 = vmatpush1.msra.mxu0 0.0
    %4080 = vmatprep.mubr.f32.mxu0 0.0
    %4081 = vmatmul.mubr.f32.gmra.mrb[0].mxu0 %v3006
    %v4082 = vpop.f32.mrb[0].mxu0
    %v4083 = vadd.f32 0.0, %v4082
    %v4084 = vpop.f32.mrb[0].mxu0
    %v4085 = vadd.f32 0.0, %v4084
    %4086 = vdwg.mxu0
    %4087 = vmatprep.subr.mxu0 %v3305
    %4088 = vmatpush1.msra.mxu0 %v3304
    %4089 = vmatprep.subr.mxu0 %v3341
    %4090 = vmatpush1.msra.mxu0 %v3340
    %4091 = vmatprep.subr.mxu0 %v3377
    %4092 = vmatpush1.msra.mxu0 %v3376
    %4093 = vmatprep.subr.mxu0 %v3413
    %4094 = vmatpush1.msra.mxu0 %v3412
    %4095 = vmatprep.subr.mxu0 %v3449
    %4096 = vmatpush1.msra.mxu0 %v3448
    %4097 = vmatprep.subr.mxu0 %v3485
    %4098 = vmatpush1.msra.mxu0 %v3484
    %4099 = vmatprep.subr.mxu0 %v3521
    %4100 = vmatpush1.msra.mxu0 %v3520
    %4101 = vmatprep.subr.mxu0 %v3557
    %4102 = vmatpush1.msra.mxu0 %v3556
    %4103 = vmatprep.subr.mxu0 %v3593
    %4104 = vmatpush1.msra.mxu0 %v3592
    %4105 = vmatprep.subr.mxu0 %v3629
    %4106 = vmatpush1.msra.mxu0 %v3628
    %4107 = vmatprep.subr.mxu0 %v3665
    %4108 = vmatpush1.msra.mxu0 %v3664
    %4109 = vmatprep.subr.mxu0 %v3701
    %4110 = vmatpush1.msra.mxu0 %v3700
    %4111 = vmatprep.subr.mxu0 %v3737
    %4112 = vmatpush1.msra.mxu0 %v3736
    %4113 = vmatprep.subr.mxu0 %v3773
    %4114 = vmatpush1.msra.mxu0 %v3772
    %4115 = vmatprep.subr.mxu0 %v3809
    %4116 = vmatpush1.msra.mxu0 %v3808
    %4117 = vmatprep.subr.mxu0 %v3845
    %4118 = vmatpush1.msra.mxu0 %v3844
    %4119 = vmatprep.subr.mxu0 0.0
    %4120 = vmatpush1.msra.mxu0 0.0
    %4121 = vmatprep.subr.mxu0 0.0
    %4122 = vmatpush1.msra.mxu0 0.0
    %4123 = vmatprep.subr.mxu0 0.0
    %4124 = vmatpush1.msra.mxu0 0.0
    %4125 = vmatprep.subr.mxu0 0.0
    %4126 = vmatpush1.msra.mxu0 0.0
    %4127 = vmatprep.subr.mxu0 0.0
    %4128 = vmatpush1.msra.mxu0 0.0
    %4129 = vmatprep.subr.mxu0 0.0
    %4130 = vmatpush1.msra.mxu0 0.0
    %4131 = vmatprep.subr.mxu0 0.0
    %4132 = vmatpush1.msra.mxu0 0.0
    %4133 = vmatprep.subr.mxu0 0.0
    %4134 = vmatpush1.msra.mxu0 0.0
    %4135 = vmatprep.subr.mxu0 0.0
    %4136 = vmatpush1.msra.mxu0 0.0
    %4137 = vmatprep.subr.mxu0 0.0
    %4138 = vmatpush1.msra.mxu0 0.0
    %4139 = vmatprep.subr.mxu0 0.0
    %4140 = vmatpush1.msra.mxu0 0.0
    %4141 = vmatprep.subr.mxu0 0.0
    %4142 = vmatpush1.msra.mxu0 0.0
    %4143 = vmatprep.subr.mxu0 0.0
    %4144 = vmatpush1.msra.mxu0 0.0
    %4145 = vmatprep.subr.mxu0 0.0
    %4146 = vmatpush1.msra.mxu0 0.0
    %4147 = vmatprep.subr.mxu0 0.0
    %4148 = vmatpush1.msra.mxu0 0.0
    %4149 = vmatprep.subr.mxu0 0.0
    %4150 = vmatpush1.msra.mxu0 0.0
    %4151 = vmatprep.mubr.f32.mxu0 0.0
    %4152 = vmatmul.mubr.f32.gmra.mrb[0].mxu0 %v3006
    %v4153 = vpop.f32.mrb[0].mxu0
    %v4154 = vadd.f32 0.0, %v4153
    %v4155 = vpop.f32.mrb[0].mxu0
    %v4156 = vadd.f32 0.0, %v4155
    %4157 = vdwg.mxu0
    %4158 = vmatprep.subr.mxu0 %v3307
    %4159 = vmatpush1.msra.mxu0 %v3306
    %4160 = vmatprep.subr.mxu0 %v3343
    %4161 = vmatpush1.msra.mxu0 %v3342
    %4162 = vmatprep.subr.mxu0 %v3379
    %4163 = vmatpush1.msra.mxu0 %v3378
    %4164 = vmatprep.subr.mxu0 %v3415
    %4165 = vmatpush1.msra.mxu0 %v3414
    %4166 = vmatprep.subr.mxu0 %v3451
    %4167 = vmatpush1.msra.mxu0 %v3450
    %4168 = vmatprep.subr.mxu0 %v3487
    %4169 = vmatpush1.msra.mxu0 %v3486
    %4170 = vmatprep.subr.mxu0 %v3523
    %4171 = vmatpush1.msra.mxu0 %v3522
    %4172 = vmatprep.subr.mxu0 %v3559
    %4173 = vmatpush1.msra.mxu0 %v3558
    %4174 = vmatprep.subr.mxu0 %v3595
    %4175 = vmatpush1.msra.mxu0 %v3594
    %4176 = vmatprep.subr.mxu0 %v3631
    %4177 = vmatpush1.msra.mxu0 %v3630
    %4178 = vmatprep.subr.mxu0 %v3667
    %4179 = vmatpush1.msra.mxu0 %v3666
    %4180 = vmatprep.subr.mxu0 %v3703
    %4181 = vmatpush1.msra.mxu0 %v3702
    %4182 = vmatprep.subr.mxu0 %v3739
    %4183 = vmatpush1.msra.mxu0 %v3738
    %4184 = vmatprep.subr.mxu0 %v3775
    %4185 = vmatpush1.msra.mxu0 %v3774
    %4186 = vmatprep.subr.mxu0 %v3811
    %4187 = vmatpush1.msra.mxu0 %v3810
    %4188 = vmatprep.subr.mxu0 %v3847
    %4189 = vmatpush1.msra.mxu0 %v3846
    %4190 = vmatprep.subr.mxu0 0.0
    %4191 = vmatpush1.msra.mxu0 0.0
    %4192 = vmatprep.subr.mxu0 0.0
    %4193 = vmatpush1.msra.mxu0 0.0
    %4194 = vmatprep.subr.mxu0 0.0
    %4195 = vmatpush1.msra.mxu0 0.0
    %4196 = vmatprep.subr.mxu0 0.0
    %4197 = vmatpush1.msra.mxu0 0.0
    %4198 = vmatprep.subr.mxu0 0.0
    %4199 = vmatpush1.msra.mxu0 0.0
    %4200 = vmatprep.subr.mxu0 0.0
    %4201 = vmatpush1.msra.mxu0 0.0
    %4202 = vmatprep.subr.mxu0 0.0
    %4203 = vmatpush1.msra.mxu0 0.0
    %4204 = vmatprep.subr.mxu0 0.0
    %4205 = vmatpush1.msra.mxu0 0.0
    %4206 = vmatprep.subr.mxu0 0.0
    %4207 = vmatpush1.msra.mxu0 0.0
    %4208 = vmatprep.subr.mxu0 0.0
    %4209 = vmatpush1.msra.mxu0 0.0
    %4210 = vmatprep.subr.mxu0 0.0
    %4211 = vmatpush1.msra.mxu0 0.0
    %4212 = vmatprep.subr.mxu0 0.0
    %4213 = vmatpush1.msra.mxu0 0.0
    %4214 = vmatprep.subr.mxu0 0.0
    %4215 = vmatpush1.msra.mxu0 0.0
    %4216 = vmatprep.subr.mxu0 0.0
    %4217 = vmatpush1.msra.mxu0 0.0
    %4218 = vmatprep.subr.mxu0 0.0
    %4219 = vmatpush1.msra.mxu0 0.0
    %4220 = vmatprep.subr.mxu0 0.0
    %4221 = vmatpush1.msra.mxu0 0.0
    %4222 = vmatprep.mubr.f32.mxu0 0.0
    %4223 = vmatmul.mubr.f32.gmra.mrb[0].mxu0 %v3006
    %v4224 = vpop.f32.mrb[0].mxu0
    %v4225 = vadd.f32 0.0, %v4224
    %v4226 = vpop.f32.mrb[0].mxu0
    %v4227 = vadd.f32 0.0, %v4226
    %4228 = vdwg.mxu0
    %4229 = vmatprep.subr.mxu0 %v3309
    %4230 = vmatpush1.msra.mxu0 %v3308
    %4231 = vmatprep.subr.mxu0 %v3345
    %4232 = vmatpush1.msra.mxu0 %v3344
    %4233 = vmatprep.subr.mxu0 %v3381
    %4234 = vmatpush1.msra.mxu0 %v3380
    %4235 = vmatprep.subr.mxu0 %v3417
    %4236 = vmatpush1.msra.mxu0 %v3416
    %4237 = vmatprep.subr.mxu0 %v3453
    %4238 = vmatpush1.msra.mxu0 %v3452
    %4239 = vmatprep.subr.mxu0 %v3489
    %4240 = vmatpush1.msra.mxu0 %v3488
    %4241 = vmatprep.subr.mxu0 %v3525
    %4242 = vmatpush1.msra.mxu0 %v3524
    %4243 = vmatprep.subr.mxu0 %v3561
    %4244 = vmatpush1.msra.mxu0 %v3560
    %4245 = vmatprep.subr.mxu0 %v3597
    %4246 = vmatpush1.msra.mxu0 %v3596
    %4247 = vmatprep.subr.mxu0 %v3633
    %4248 = vmatpush1.msra.mxu0 %v3632
    %4249 = vmatprep.subr.mxu0 %v3669
    %4250 = vmatpush1.msra.mxu0 %v3668
    %4251 = vmatprep.subr.mxu0 %v3705
    %4252 = vmatpush1.msra.mxu0 %v3704
    %4253 = vmatprep.subr.mxu0 %v3741
    %4254 = vmatpush1.msra.mxu0 %v3740
    %4255 = vmatprep.subr.mxu0 %v3777
    %4256 = vmatpush1.msra.mxu0 %v3776
    %4257 = vmatprep.subr.mxu0 %v3813
    %4258 = vmatpush1.msra.mxu0 %v3812
    %4259 = vmatprep.subr.mxu0 %v3849
    %4260 = vmatpush1.msra.mxu0 %v3848
    %4261 = vmatprep.subr.mxu0 0.0
    %4262 = vmatpush1.msra.mxu0 0.0
    %4263 = vmatprep.subr.mxu0 0.0
    %4264 = vmatpush1.msra.mxu0 0.0
    %4265 = vmatprep.subr.mxu0 0.0
    %4266 = vmatpush1.msra.mxu0 0.0
    %4267 = vmatprep.subr.mxu0 0.0
    %4268 = vmatpush1.msra.mxu0 0.0
    %4269 = vmatprep.subr.mxu0 0.0
    %4270 = vmatpush1.msra.mxu0 0.0
    %4271 = vmatprep.subr.mxu0 0.0
    %4272 = vmatpush1.msra.mxu0 0.0
    %4273 = vmatprep.subr.mxu0 0.0
    %4274 = vmatpush1.msra.mxu0 0.0
    %4275 = vmatprep.subr.mxu0 0.0
    %4276 = vmatpush1.msra.mxu0 0.0
    %4277 = vmatprep.subr.mxu0 0.0
    %4278 = vmatpush1.msra.mxu0 0.0
    %4279 = vmatprep.subr.mxu0 0.0
    %4280 = vmatpush1.msra.mxu0 0.0
    %4281 = vmatprep.subr.mxu0 0.0
    %4282 = vmatpush1.msra.mxu0 0.0
    %4283 = vmatprep.subr.mxu0 0.0
    %4284 = vmatpush1.msra.mxu0 0.0
    %4285 = vmatprep.subr.mxu0 0.0
    %4286 = vmatpush1.msra.mxu0 0.0
    %4287 = vmatprep.subr.mxu0 0.0
    %4288 = vmatpush1.msra.mxu0 0.0
    %4289 = vmatprep.subr.mxu0 0.0
    %4290 = vmatpush1.msra.mxu0 0.0
    %4291 = vmatprep.subr.mxu0 0.0
    %4292 = vmatpush1.msra.mxu0 0.0
    %4293 = vmatprep.mubr.f32.mxu0 0.0
    %4294 = vmatmul.mubr.f32.gmra.mrb[0].mxu0 %v3006
    %v4295 = vpop.f32.mrb[0].mxu0
    %v4296 = vadd.f32 0.0, %v4295
    %v4297 = vpop.f32.mrb[0].mxu0
    %v4298 = vadd.f32 0.0, %v4297
    %4299 = vdwg.mxu0
    %4300 = vmatprep.subr.mxu0 %v3311
    %4301 = vmatpush1.msra.mxu0 %v3310
    %4302 = vmatprep.subr.mxu0 %v3347
    %4303 = vmatpush1.msra.mxu0 %v3346
    %4304 = vmatprep.subr.mxu0 %v3383
    %4305 = vmatpush1.msra.mxu0 %v3382
    %4306 = vmatprep.subr.mxu0 %v3419
    %4307 = vmatpush1.msra.mxu0 %v3418
    %4308 = vmatprep.subr.mxu0 %v3455
    %4309 = vmatpush1.msra.mxu0 %v3454
    %4310 = vmatprep.subr.mxu0 %v3491
    %4311 = vmatpush1.msra.mxu0 %v3490
    %4312 = vmatprep.subr.mxu0 %v3527
    %4313 = vmatpush1.msra.mxu0 %v3526
    %4314 = vmatprep.subr.mxu0 %v3563
    %4315 = vmatpush1.msra.mxu0 %v3562
    %4316 = vmatprep.subr.mxu0 %v3599
    %4317 = vmatpush1.msra.mxu0 %v3598
    %4318 = vmatprep.subr.mxu0 %v3635
    %4319 = vmatpush1.msra.mxu0 %v3634
    %4320 = vmatprep.subr.mxu0 %v3671
    %4321 = vmatpush1.msra.mxu0 %v3670
    %4322 = vmatprep.subr.mxu0 %v3707
    %4323 = vmatpush1.msra.mxu0 %v3706
    %4324 = vmatprep.subr.mxu0 %v3743
    %4325 = vmatpush1.msra.mxu0 %v3742
    %4326 = vmatprep.subr.mxu0 %v3779
    %4327 = vmatpush1.msra.mxu0 %v3778
    %4328 = vmatprep.subr.mxu0 %v3815
    %4329 = vmatpush1.msra.mxu0 %v3814
    %4330 = vmatprep.subr.mxu0 %v3851
    %4331 = vmatpush1.msra.mxu0 %v3850
    %4332 = vmatprep.subr.mxu0 0.0
    %4333 = vmatpush1.msra.mxu0 0.0
    %4334 = vmatprep.subr.mxu0 0.0
    %4335 = vmatpush1.msra.mxu0 0.0
    %4336 = vmatprep.subr.mxu0 0.0
    %4337 = vmatpush1.msra.mxu0 0.0
    %4338 = vmatprep.subr.mxu0 0.0
    %4339 = vmatpush1.msra.mxu0 0.0
    %4340 = vmatprep.subr.mxu0 0.0
    %4341 = vmatpush1.msra.mxu0 0.0
    %4342 = vmatprep.subr.mxu0 0.0
    %4343 = vmatpush1.msra.mxu0 0.0
    %4344 = vmatprep.subr.mxu0 0.0
    %4345 = vmatpush1.msra.mxu0 0.0
    %4346 = vmatprep.subr.mxu0 0.0
    %4347 = vmatpush1.msra.mxu0 0.0
    %4348 = vmatprep.subr.mxu0 0.0
    %4349 = vmatpush1.msra.mxu0 0.0
    %4350 = vmatprep.subr.mxu0 0.0
    %4351 = vmatpush1.msra.mxu0 0.0
    %4352 = vmatprep.subr.mxu0 0.0
    %4353 = vmatpush1.msra.mxu0 0.0
    %4354 = vmatprep.subr.mxu0 0.0
    %4355 = vmatpush1.msra.mxu0 0.0
    %4356 = vmatprep.subr.mxu0 0.0
    %4357 = vmatpush1.msra.mxu0 0.0
    %4358 = vmatprep.subr.mxu0 0.0
    %4359 = vmatpush1.msra.mxu0 0.0
    %4360 = vmatprep.subr.mxu0 0.0
    %4361 = vmatpush1.msra.mxu0 0.0
    %4362 = vmatprep.subr.mxu0 0.0
    %4363 = vmatpush1.msra.mxu0 0.0
    %4364 = vmatprep.mubr.f32.mxu0 0.0
    %4365 = vmatmul.mubr.f32.gmra.mrb[0].mxu0 %v3006
    %v4366 = vpop.f32.mrb[0].mxu0
    %v4367 = vadd.f32 0.0, %v4366
    %v4368 = vpop.f32.mrb[0].mxu0
    %v4369 = vadd.f32 0.0, %v4368
    %4370 = vdwg.mxu0
    %4371 = vmatprep.subr.mxu0 %v3313
    %4372 = vmatpush1.msra.mxu0 %v3312
    %4373 = vmatprep.subr.mxu0 %v3349
    %4374 = vmatpush1.msra.mxu0 %v3348
    %4375 = vmatprep.subr.mxu0 %v3385
    %4376 = vmatpush1.msra.mxu0 %v3384
    %4377 = vmatprep.subr.mxu0 %v3421
    %4378 = vmatpush1.msra.mxu0 %v3420
    %4379 = vmatprep.subr.mxu0 %v3457
    %4380 = vmatpush1.msra.mxu0 %v3456
    %4381 = vmatprep.subr.mxu0 %v3493
    %4382 = vmatpush1.msra.mxu0 %v3492
    %4383 = vmatprep.subr.mxu0 %v3529
    %4384 = vmatpush1.msra.mxu0 %v3528
    %4385 = vmatprep.subr.mxu0 %v3565
    %4386 = vmatpush1.msra.mxu0 %v3564
    %4387 = vmatprep.subr.mxu0 %v3601
    %4388 = vmatpush1.msra.mxu0 %v3600
    %4389 = vmatprep.subr.mxu0 %v3637
    %4390 = vmatpush1.msra.mxu0 %v3636
    %4391 = vmatprep.subr.mxu0 %v3673
    %4392 = vmatpush1.msra.mxu0 %v3672
    %4393 = vmatprep.subr.mxu0 %v3709
    %4394 = vmatpush1.msra.mxu0 %v3708
    %4395 = vmatprep.subr.mxu0 %v3745
    %4396 = vmatpush1.msra.mxu0 %v3744
    %4397 = vmatprep.subr.mxu0 %v3781
    %4398 = vmatpush1.msra.mxu0 %v3780
    %4399 = vmatprep.subr.mxu0 %v3817
    %4400 = vmatpush1.msra.mxu0 %v3816
    %4401 = vmatprep.subr.mxu0 %v3853
    %4402 = vmatpush1.msra.mxu0 %v3852
    %4403 = vmatprep.subr.mxu0 0.0
    %4404 = vmatpush1.msra.mxu0 0.0
    %4405 = vmatprep.subr.mxu0 0.0
    %4406 = vmatpush1.msra.mxu0 0.0
    %4407 = vmatprep.subr.mxu0 0.0
    %4408 = vmatpush1.msra.mxu0 0.0
    %4409 = vmatprep.subr.mxu0 0.0
    %4410 = vmatpush1.msra.mxu0 0.0
    %4411 = vmatprep.subr.mxu0 0.0
    %4412 = vmatpush1.msra.mxu0 0.0
    %4413 = vmatprep.subr.mxu0 0.0
    %4414 = vmatpush1.msra.mxu0 0.0
    %4415 = vmatprep.subr.mxu0 0.0
    %4416 = vmatpush1.msra.mxu0 0.0
    %4417 = vmatprep.subr.mxu0 0.0
    %4418 = vmatpush1.msra.mxu0 0.0
    %4419 = vmatprep.subr.mxu0 0.0
    %4420 = vmatpush1.msra.mxu0 0.0
    %4421 = vmatprep.subr.mxu0 0.0
    %4422 = vmatpush1.msra.mxu0 0.0
    %4423 = vmatprep.subr.mxu0 0.0
    %4424 = vmatpush1.msra.mxu0 0.0
    %4425 = vmatprep.subr.mxu0 0.0
    %4426 = vmatpush1.msra.mxu0 0.0
    %4427 = vmatprep.subr.mxu0 0.0
    %4428 = vmatpush1.msra.mxu0 0.0
    %4429 = vmatprep.subr.mxu0 0.0
    %4430 = vmatpush1.msra.mxu0 0.0
    %4431 = vmatprep.subr.mxu0 0.0
    %4432 = vmatpush1.msra.mxu0 0.0
    %4433 = vmatprep.subr.mxu0 0.0
    %4434 = vmatpush1.msra.mxu0 0.0
    %4435 = vmatprep.mubr.f32.mxu0 0.0
    %4436 = vmatmul.mubr.f32.gmra.mrb[0].mxu0 %v3006
    %v4437 = vpop.f32.mrb[0].mxu0
    %v4438 = vadd.f32 0.0, %v4437
    %v4439 = vpop.f32.mrb[0].mxu0
    %v4440 = vadd.f32 0.0, %v4439
    %4441 = vdwg.mxu0
    %4442 = vmatprep.subr.mxu0 %v3315
    %4443 = vmatpush1.msra.mxu0 %v3314
    %4444 = vmatprep.subr.mxu0 %v3351
    %4445 = vmatpush1.msra.mxu0 %v3350
    %4446 = vmatprep.subr.mxu0 %v3387
    %4447 = vmatpush1.msra.mxu0 %v3386
    %4448 = vmatprep.subr.mxu0 %v3423
    %4449 = vmatpush1.msra.mxu0 %v3422
    %4450 = vmatprep.subr.mxu0 %v3459
    %4451 = vmatpush1.msra.mxu0 %v3458
    %4452 = vmatprep.subr.mxu0 %v3495
    %4453 = vmatpush1.msra.mxu0 %v3494
    %4454 = vmatprep.subr.mxu0 %v3531
    %4455 = vmatpush1.msra.mxu0 %v3530
    %4456 = vmatprep.subr.mxu0 %v3567
    %4457 = vmatpush1.msra.mxu0 %v3566
    %4458 = vmatprep.subr.mxu0 %v3603
    %4459 = vmatpush1.msra.mxu0 %v3602
    %4460 = vmatprep.subr.mxu0 %v3639
    %4461 = vmatpush1.msra.mxu0 %v3638
    %4462 = vmatprep.subr.mxu0 %v3675
    %4463 = vmatpush1.msra.mxu0 %v3674
    %4464 = vmatprep.subr.mxu0 %v3711
    %4465 = vmatpush1.msra.mxu0 %v3710
    %4466 = vmatprep.subr.mxu0 %v3747
    %4467 = vmatpush1.msra.mxu0 %v3746
    %4468 = vmatprep.subr.mxu0 %v3783
    %4469 = vmatpush1.msra.mxu0 %v3782
    %4470 = vmatprep.subr.mxu0 %v3819
    %4471 = vmatpush1.msra.mxu0 %v3818
    %4472 = vmatprep.subr.mxu0 %v3855
    %4473 = vmatpush1.msra.mxu0 %v3854
    %4474 = vmatprep.subr.mxu0 0.0
    %4475 = vmatpush1.msra.mxu0 0.0
    %4476 = vmatprep.subr.mxu0 0.0
    %4477 = vmatpush1.msra.mxu0 0.0
    %4478 = vmatprep.subr.mxu0 0.0
    %4479 = vmatpush1.msra.mxu0 0.0
    %4480 = vmatprep.subr.mxu0 0.0
    %4481 = vmatpush1.msra.mxu0 0.0
    %4482 = vmatprep.subr.mxu0 0.0
    %4483 = vmatpush1.msra.mxu0 0.0
    %4484 = vmatprep.subr.mxu0 0.0
    %4485 = vmatpush1.msra.mxu0 0.0
    %4486 = vmatprep.subr.mxu0 0.0
    %4487 = vmatpush1.msra.mxu0 0.0
    %4488 = vmatprep.subr.mxu0 0.0
    %4489 = vmatpush1.msra.mxu0 0.0
    %4490 = vmatprep.subr.mxu0 0.0
    %4491 = vmatpush1.msra.mxu0 0.0
    %4492 = vmatprep.subr.mxu0 0.0
    %4493 = vmatpush1.msra.mxu0 0.0
    %4494 = vmatprep.subr.mxu0 0.0
    %4495 = vmatpush1.msra.mxu0 0.0
    %4496 = vmatprep.subr.mxu0 0.0
    %4497 = vmatpush1.msra.mxu0 0.0
    %4498 = vmatprep.subr.mxu0 0.0
    %4499 = vmatpush1.msra.mxu0 0.0
    %4500 = vmatprep.subr.mxu0 0.0
    %4501 = vmatpush1.msra.mxu0 0.0
    %4502 = vmatprep.subr.mxu0 0.0
    %4503 = vmatpush1.msra.mxu0 0.0
    %4504 = vmatprep.subr.mxu0 0.0
    %4505 = vmatpush1.msra.mxu0 0.0
    %4506 = vmatprep.mubr.f32.mxu0 0.0
    %4507 = vmatmul.mubr.f32.gmra.mrb[0].mxu0 %v3006
    %v4508 = vpop.f32.mrb[0].mxu0
    %v4509 = vadd.f32 0.0, %v4508
    %v4510 = vpop.f32.mrb[0].mxu0
    %v4511 = vadd.f32 0.0, %v4510
    %4512 = vdwg.mxu0
    %4513 = vmatprep.subr.mxu0 %v3317
    %4514 = vmatpush1.msra.mxu0 %v3316
    %4515 = vmatprep.subr.mxu0 %v3353
    %4516 = vmatpush1.msra.mxu0 %v3352
    %4517 = vmatprep.subr.mxu0 %v3389
    %4518 = vmatpush1.msra.mxu0 %v3388
    %4519 = vmatprep.subr.mxu0 %v3425
    %4520 = vmatpush1.msra.mxu0 %v3424
    %4521 = vmatprep.subr.mxu0 %v3461
    %4522 = vmatpush1.msra.mxu0 %v3460
    %4523 = vmatprep.subr.mxu0 %v3497
    %4524 = vmatpush1.msra.mxu0 %v3496
    %4525 = vmatprep.subr.mxu0 %v3533
    %4526 = vmatpush1.msra.mxu0 %v3532
    %4527 = vmatprep.subr.mxu0 %v3569
    %4528 = vmatpush1.msra.mxu0 %v3568
    %4529 = vmatprep.subr.mxu0 %v3605
    %4530 = vmatpush1.msra.mxu0 %v3604
    %4531 = vmatprep.subr.mxu0 %v3641
    %4532 = vmatpush1.msra.mxu0 %v3640
    %4533 = vmatprep.subr.mxu0 %v3677
    %4534 = vmatpush1.msra.mxu0 %v3676
    %4535 = vmatprep.subr.mxu0 %v3713
    %4536 = vmatpush1.msra.mxu0 %v3712
    %4537 = vmatprep.subr.mxu0 %v3749
    %4538 = vmatpush1.msra.mxu0 %v3748
    %4539 = vmatprep.subr.mxu0 %v3785
    %4540 = vmatpush1.msra.mxu0 %v3784
    %4541 = vmatprep.subr.mxu0 %v3821
    %4542 = vmatpush1.msra.mxu0 %v3820
    %4543 = vmatprep.subr.mxu0 %v3857
    %4544 = vmatpush1.msra.mxu0 %v3856
    %4545 = vmatprep.subr.mxu0 0.0
    %4546 = vmatpush1.msra.mxu0 0.0
    %4547 = vmatprep.subr.mxu0 0.0
    %4548 = vmatpush1.msra.mxu0 0.0
    %4549 = vmatprep.subr.mxu0 0.0
    %4550 = vmatpush1.msra.mxu0 0.0
    %4551 = vmatprep.subr.mxu0 0.0
    %4552 = vmatpush1.msra.mxu0 0.0
    %4553 = vmatprep.subr.mxu0 0.0
    %4554 = vmatpush1.msra.mxu0 0.0
    %4555 = vmatprep.subr.mxu0 0.0
    %4556 = vmatpush1.msra.mxu0 0.0
    %4557 = vmatprep.subr.mxu0 0.0
    %4558 = vmatpush1.msra.mxu0 0.0
    %4559 = vmatprep.subr.mxu0 0.0
    %4560 = vmatpush1.msra.mxu0 0.0
    %4561 = vmatprep.subr.mxu0 0.0
    %4562 = vmatpush1.msra.mxu0 0.0
    %4563 = vmatprep.subr.mxu0 0.0
    %4564 = vmatpush1.msra.mxu0 0.0
    %4565 = vmatprep.subr.mxu0 0.0
    %4566 = vmatpush1.msra.mxu0 0.0
    %4567 = vmatprep.subr.mxu0 0.0
    %4568 = vmatpush1.msra.mxu0 0.0
    %4569 = vmatprep.subr.mxu0 0.0
    %4570 = vmatpush1.msra.mxu0 0.0
    %4571 = vmatprep.subr.mxu0 0.0
    %4572 = vmatpush1.msra.mxu0 0.0
    %4573 = vmatprep.subr.mxu0 0.0
    %4574 = vmatpush1.msra.mxu0 0.0
    %4575 = vmatprep.subr.mxu0 0.0
    %4576 = vmatpush1.msra.mxu0 0.0
    %4577 = vmatprep.mubr.f32.mxu0 0.0
    %4578 = vmatmul.mubr.f32.gmra.mrb[0].mxu0 %v3006
    %v4579 = vpop.f32.mrb[0].mxu0
    %v4580 = vadd.f32 0.0, %v4579
    %v4581 = vpop.f32.mrb[0].mxu0
    %v4582 = vadd.f32 0.0, %v4581
    %4583 = vdwg.mxu0
    %4584 = vmatprep.subr.mxu0 %v3319
    %4585 = vmatpush1.msra.mxu0 %v3318
    %4586 = vmatprep.subr.mxu0 %v3355
    %4587 = vmatpush1.msra.mxu0 %v3354
    %4588 = vmatprep.subr.mxu0 %v3391
    %4589 = vmatpush1.msra.mxu0 %v3390
    %4590 = vmatprep.subr.mxu0 %v3427
    %4591 = vmatpush1.msra.mxu0 %v3426
    %4592 = vmatprep.subr.mxu0 %v3463
    %4593 = vmatpush1.msra.mxu0 %v3462
    %4594 = vmatprep.subr.mxu0 %v3499
    %4595 = vmatpush1.msra.mxu0 %v3498
    %4596 = vmatprep.subr.mxu0 %v3535
    %4597 = vmatpush1.msra.mxu0 %v3534
    %4598 = vmatprep.subr.mxu0 %v3571
    %4599 = vmatpush1.msra.mxu0 %v3570
    %4600 = vmatprep.subr.mxu0 %v3607
    %4601 = vmatpush1.msra.mxu0 %v3606
    %4602 = vmatprep.subr.mxu0 %v3643
    %4603 = vmatpush1.msra.mxu0 %v3642
    %4604 = vmatprep.subr.mxu0 %v3679
    %4605 = vmatpush1.msra.mxu0 %v3678
    %4606 = vmatprep.subr.mxu0 %v3715
    %4607 = vmatpush1.msra.mxu0 %v3714
    %4608 = vmatprep.subr.mxu0 %v3751
    %4609 = vmatpush1.msra.mxu0 %v3750
    %4610 = vmatprep.subr.mxu0 %v3787
    %4611 = vmatpush1.msra.mxu0 %v3786
    %4612 = vmatprep.subr.mxu0 %v3823
    %4613 = vmatpush1.msra.mxu0 %v3822
    %4614 = vmatprep.subr.mxu0 %v3859
    %4615 = vmatpush1.msra.mxu0 %v3858
    %4616 = vmatprep.subr.mxu0 0.0
    %4617 = vmatpush1.msra.mxu0 0.0
    %4618 = vmatprep.subr.mxu0 0.0
    %4619 = vmatpush1.msra.mxu0 0.0
    %4620 = vmatprep.subr.mxu0 0.0
    %4621 = vmatpush1.msra.mxu0 0.0
    %4622 = vmatprep.subr.mxu0 0.0
    %4623 = vmatpush1.msra.mxu0 0.0
    %4624 = vmatprep.subr.mxu0 0.0
    %4625 = vmatpush1.msra.mxu0 0.0
    %4626 = vmatprep.subr.mxu0 0.0
    %4627 = vmatpush1.msra.mxu0 0.0
    %4628 = vmatprep.subr.mxu0 0.0
    %4629 = vmatpush1.msra.mxu0 0.0
    %4630 = vmatprep.subr.mxu0 0.0
    %4631 = vmatpush1.msra.mxu0 0.0
    %4632 = vmatprep.subr.mxu0 0.0
    %4633 = vmatpush1.msra.mxu0 0.0
    %4634 = vmatprep.subr.mxu0 0.0
    %4635 = vmatpush1.msra.mxu0 0.0
    %4636 = vmatprep.subr.mxu0 0.0
    %4637 = vmatpush1.msra.mxu0 0.0
    %4638 = vmatprep.subr.mxu0 0.0
    %4639 = vmatpush1.msra.mxu0 0.0
    %4640 = vmatprep.subr.mxu0 0.0
    %4641 = vmatpush1.msra.mxu0 0.0
    %4642 = vmatprep.subr.mxu0 0.0
    %4643 = vmatpush1.msra.mxu0 0.0
    %4644 = vmatprep.subr.mxu0 0.0
    %4645 = vmatpush1.msra.mxu0 0.0
    %4646 = vmatprep.subr.mxu0 0.0
    %4647 = vmatpush1.msra.mxu0 0.0
    %4648 = vmatprep.mubr.f32.mxu0 0.0
    %4649 = vmatmul.mubr.f32.gmra.mrb[0].mxu0 %v3006
    %v4650 = vpop.f32.mrb[0].mxu0
    %v4651 = vadd.f32 0.0, %v4650
    %v4652 = vpop.f32.mrb[0].mxu0
    %v4653 = vadd.f32 0.0, %v4652
    %4654 = vdwg.mxu0
    %4655 = vmatprep.subr.mxu0 %v3321
    %4656 = vmatpush1.msra.mxu0 %v3320
    %4657 = vmatprep.subr.mxu0 %v3357
    %4658 = vmatpush1.msra.mxu0 %v3356
    %4659 = vmatprep.subr.mxu0 %v3393
    %4660 = vmatpush1.msra.mxu0 %v3392
    %4661 = vmatprep.subr.mxu0 %v3429
    %4662 = vmatpush1.msra.mxu0 %v3428
    %4663 = vmatprep.subr.mxu0 %v3465
    %4664 = vmatpush1.msra.mxu0 %v3464
    %4665 = vmatprep.subr.mxu0 %v3501
    %4666 = vmatpush1.msra.mxu0 %v3500
    %4667 = vmatprep.subr.mxu0 %v3537
    %4668 = vmatpush1.msra.mxu0 %v3536
    %4669 = vmatprep.subr.mxu0 %v3573
    %4670 = vmatpush1.msra.mxu0 %v3572
    %4671 = vmatprep.subr.mxu0 %v3609
    %4672 = vmatpush1.msra.mxu0 %v3608
    %4673 = vmatprep.subr.mxu0 %v3645
    %4674 = vmatpush1.msra.mxu0 %v3644
    %4675 = vmatprep.subr.mxu0 %v3681
    %4676 = vmatpush1.msra.mxu0 %v3680
    %4677 = vmatprep.subr.mxu0 %v3717
    %4678 = vmatpush1.msra.mxu0 %v3716
    %4679 = vmatprep.subr.mxu0 %v3753
    %4680 = vmatpush1.msra.mxu0 %v3752
    %4681 = vmatprep.subr.mxu0 %v3789
    %4682 = vmatpush1.msra.mxu0 %v3788
    %4683 = vmatprep.subr.mxu0 %v3825
    %4684 = vmatpush1.msra.mxu0 %v3824
    %4685 = vmatprep.subr.mxu0 %v3861
    %4686 = vmatpush1.msra.mxu0 %v3860
    %4687 = vmatprep.subr.mxu0 0.0
    %4688 = vmatpush1.msra.mxu0 0.0
    %4689 = vmatprep.subr.mxu0 0.0
    %4690 = vmatpush1.msra.mxu0 0.0
    %4691 = vmatprep.subr.mxu0 0.0
    %4692 = vmatpush1.msra.mxu0 0.0
    %4693 = vmatprep.subr.mxu0 0.0
    %4694 = vmatpush1.msra.mxu0 0.0
    %4695 = vmatprep.subr.mxu0 0.0
    %4696 = vmatpush1.msra.mxu0 0.0
    %4697 = vmatprep.subr.mxu0 0.0
    %4698 = vmatpush1.msra.mxu0 0.0
    %4699 = vmatprep.subr.mxu0 0.0
    %4700 = vmatpush1.msra.mxu0 0.0
    %4701 = vmatprep.subr.mxu0 0.0
    %4702 = vmatpush1.msra.mxu0 0.0
    %4703 = vmatprep.subr.mxu0 0.0
    %4704 = vmatpush1.msra.mxu0 0.0
    %4705 = vmatprep.subr.mxu0 0.0
    %4706 = vmatpush1.msra.mxu0 0.0
    %4707 = vmatprep.subr.mxu0 0.0
    %4708 = vmatpush1.msra.mxu0 0.0
    %4709 = vmatprep.subr.mxu0 0.0
    %4710 = vmatpush1.msra.mxu0 0.0
    %4711 = vmatprep.subr.mxu0 0.0
    %4712 = vmatpush1.msra.mxu0 0.0
    %4713 = vmatprep.subr.mxu0 0.0
    %4714 = vmatpush1.msra.mxu0 0.0
    %4715 = vmatprep.subr.mxu0 0.0
    %4716 = vmatpush1.msra.mxu0 0.0
    %4717 = vmatprep.subr.mxu0 0.0
    %4718 = vmatpush1.msra.mxu0 0.0
    %4719 = vmatprep.mubr.f32.mxu0 0.0
    %4720 = vmatmul.mubr.f32.gmra.mrb[0].mxu0 %v3006
    %v4721 = vpop.f32.mrb[0].mxu0
    %v4722 = vadd.f32 0.0, %v4721
    %v4723 = vpop.f32.mrb[0].mxu0
    %v4724 = vadd.f32 0.0, %v4723
    %4725 = vdwg.mxu0
    %4726 = vmatprep.subr.mxu0 %v3323
    %4727 = vmatpush1.msra.mxu0 %v3322
    %4728 = vmatprep.subr.mxu0 %v3359
    %4729 = vmatpush1.msra.mxu0 %v3358
    %4730 = vmatprep.subr.mxu0 %v3395
    %4731 = vmatpush1.msra.mxu0 %v3394
    %4732 = vmatprep.subr.mxu0 %v3431
    %4733 = vmatpush1.msra.mxu0 %v3430
    %4734 = vmatprep.subr.mxu0 %v3467
    %4735 = vmatpush1.msra.mxu0 %v3466
    %4736 = vmatprep.subr.mxu0 %v3503
    %4737 = vmatpush1.msra.mxu0 %v3502
    %4738 = vmatprep.subr.mxu0 %v3539
    %4739 = vmatpush1.msra.mxu0 %v3538
    %4740 = vmatprep.subr.mxu0 %v3575
    %4741 = vmatpush1.msra.mxu0 %v3574
    %4742 = vmatprep.subr.mxu0 %v3611
    %4743 = vmatpush1.msra.mxu0 %v3610
    %4744 = vmatprep.subr.mxu0 %v3647
    %4745 = vmatpush1.msra.mxu0 %v3646
    %4746 = vmatprep.subr.mxu0 %v3683
    %4747 = vmatpush1.msra.mxu0 %v3682
    %4748 = vmatprep.subr.mxu0 %v3719
    %4749 = vmatpush1.msra.mxu0 %v3718
    %4750 = vmatprep.subr.mxu0 %v3755
    %4751 = vmatpush1.msra.mxu0 %v3754
    %4752 = vmatprep.subr.mxu0 %v3791
    %4753 = vmatpush1.msra.mxu0 %v3790
    %4754 = vmatprep.subr.mxu0 %v3827
    %4755 = vmatpush1.msra.mxu0 %v3826
    %4756 = vmatprep.subr.mxu0 %v3863
    %4757 = vmatpush1.msra.mxu0 %v3862
    %4758 = vmatprep.subr.mxu0 0.0
    %4759 = vmatpush1.msra.mxu0 0.0
    %4760 = vmatprep.subr.mxu0 0.0
    %4761 = vmatpush1.msra.mxu0 0.0
    %4762 = vmatprep.subr.mxu0 0.0
    %4763 = vmatpush1.msra.mxu0 0.0
    %4764 = vmatprep.subr.mxu0 0.0
    %4765 = vmatpush1.msra.mxu0 0.0
    %4766 = vmatprep.subr.mxu0 0.0
    %4767 = vmatpush1.msra.mxu0 0.0
    %4768 = vmatprep.subr.mxu0 0.0
    %4769 = vmatpush1.msra.mxu0 0.0
    %4770 = vmatprep.subr.mxu0 0.0
    %4771 = vmatpush1.msra.mxu0 0.0
    %4772 = vmatprep.subr.mxu0 0.0
    %4773 = vmatpush1.msra.mxu0 0.0
    %4774 = vmatprep.subr.mxu0 0.0
    %4775 = vmatpush1.msra.mxu0 0.0
    %4776 = vmatprep.subr.mxu0 0.0
    %4777 = vmatpush1.msra.mxu0 0.0
    %4778 = vmatprep.subr.mxu0 0.0
    %4779 = vmatpush1.msra.mxu0 0.0
    %4780 = vmatprep.subr.mxu0 0.0
    %4781 = vmatpush1.msra.mxu0 0.0
    %4782 = vmatprep.subr.mxu0 0.0
    %4783 = vmatpush1.msra.mxu0 0.0
    %4784 = vmatprep.subr.mxu0 0.0
    %4785 = vmatpush1.msra.mxu0 0.0
    %4786 = vmatprep.subr.mxu0 0.0
    %4787 = vmatpush1.msra.mxu0 0.0
    %4788 = vmatprep.subr.mxu0 0.0
    %4789 = vmatpush1.msra.mxu0 0.0
    %4790 = vmatprep.mubr.f32.mxu0 0.0
    %4791 = vmatmul.mubr.f32.gmra.mrb[0].mxu0 %v3006
    %v4792 = vpop.f32.mrb[0].mxu0
    %v4793 = vadd.f32 0.0, %v4792
    %v4794 = vpop.f32.mrb[0].mxu0
    %v4795 = vadd.f32 0.0, %v4794
    %4796 = vdwg.mxu0
    %4797 = vmatprep.subr.mxu0 %v3325
    %4798 = vmatpush1.msra.mxu0 %v3324
    %4799 = vmatprep.subr.mxu0 %v3361
    %4800 = vmatpush1.msra.mxu0 %v3360
    %4801 = vmatprep.subr.mxu0 %v3397
    %4802 = vmatpush1.msra.mxu0 %v3396
    %4803 = vmatprep.subr.mxu0 %v3433
    %4804 = vmatpush1.msra.mxu0 %v3432
    %4805 = vmatprep.subr.mxu0 %v3469
    %4806 = vmatpush1.msra.mxu0 %v3468
    %4807 = vmatprep.subr.mxu0 %v3505
    %4808 = vmatpush1.msra.mxu0 %v3504
    %4809 = vmatprep.subr.mxu0 %v3541
    %4810 = vmatpush1.msra.mxu0 %v3540
    %4811 = vmatprep.subr.mxu0 %v3577
    %4812 = vmatpush1.msra.mxu0 %v3576
    %4813 = vmatprep.subr.mxu0 %v3613
    %4814 = vmatpush1.msra.mxu0 %v3612
    %4815 = vmatprep.subr.mxu0 %v3649
    %4816 = vmatpush1.msra.mxu0 %v3648
    %4817 = vmatprep.subr.mxu0 %v3685
    %4818 = vmatpush1.msra.mxu0 %v3684
    %4819 = vmatprep.subr.mxu0 %v3721
    %4820 = vmatpush1.msra.mxu0 %v3720
    %4821 = vmatprep.subr.mxu0 %v3757
    %4822 = vmatpush1.msra.mxu0 %v3756
    %4823 = vmatprep.subr.mxu0 %v3793
    %4824 = vmatpush1.msra.mxu0 %v3792
    %4825 = vmatprep.subr.mxu0 %v3829
    %4826 = vmatpush1.msra.mxu0 %v3828
    %4827 = vmatprep.subr.mxu0 %v3865
    %4828 = vmatpush1.msra.mxu0 %v3864
    %4829 = vmatprep.subr.mxu0 0.0
    %4830 = vmatpush1.msra.mxu0 0.0
    %4831 = vmatprep.subr.mxu0 0.0
    %4832 = vmatpush1.msra.mxu0 0.0
    %4833 = vmatprep.subr.mxu0 0.0
    %4834 = vmatpush1.msra.mxu0 0.0
    %4835 = vmatprep.subr.mxu0 0.0
    %4836 = vmatpush1.msra.mxu0 0.0
    %4837 = vmatprep.subr.mxu0 0.0
    %4838 = vmatpush1.msra.mxu0 0.0
    %4839 = vmatprep.subr.mxu0 0.0
    %4840 = vmatpush1.msra.mxu0 0.0
    %4841 = vmatprep.subr.mxu0 0.0
    %4842 = vmatpush1.msra.mxu0 0.0
    %4843 = vmatprep.subr.mxu0 0.0
    %4844 = vmatpush1.msra.mxu0 0.0
    %4845 = vmatprep.subr.mxu0 0.0
    %4846 = vmatpush1.msra.mxu0 0.0
    %4847 = vmatprep.subr.mxu0 0.0
    %4848 = vmatpush1.msra.mxu0 0.0
    %4849 = vmatprep.subr.mxu0 0.0
    %4850 = vmatpush1.msra.mxu0 0.0
    %4851 = vmatprep.subr.mxu0 0.0
    %4852 = vmatpush1.msra.mxu0 0.0
    %4853 = vmatprep.subr.mxu0 0.0
    %4854 = vmatpush1.msra.mxu0 0.0
    %4855 = vmatprep.subr.mxu0 0.0
    %4856 = vmatpush1.msra.mxu0 0.0
    %4857 = vmatprep.subr.mxu0 0.0
    %4858 = vmatpush1.msra.mxu0 0.0
    %4859 = vmatprep.subr.mxu0 0.0
    %4860 = vmatpush1.msra.mxu0 0.0
    %4861 = vmatprep.mubr.f32.mxu0 0.0
    %4862 = vmatmul.mubr.f32.gmra.mrb[0].mxu0 %v3006
    %v4863 = vpop.f32.mrb[0].mxu0
    %v4864 = vadd.f32 0.0, %v4863
    %v4865 = vpop.f32.mrb[0].mxu0
    %v4866 = vadd.f32 0.0, %v4865
    %4867 = vdwg.mxu0
    %4868 = vmatprep.subr.mxu0 %v3327
    %4869 = vmatpush1.msra.mxu0 %v3326
    %4870 = vmatprep.subr.mxu0 %v3363
    %4871 = vmatpush1.msra.mxu0 %v3362
    %4872 = vmatprep.subr.mxu0 %v3399
    %4873 = vmatpush1.msra.mxu0 %v3398
    %4874 = vmatprep.subr.mxu0 %v3435
    %4875 = vmatpush1.msra.mxu0 %v3434
    %4876 = vmatprep.subr.mxu0 %v3471
    %4877 = vmatpush1.msra.mxu0 %v3470
    %4878 = vmatprep.subr.mxu0 %v3507
    %4879 = vmatpush1.msra.mxu0 %v3506
    %4880 = vmatprep.subr.mxu0 %v3543
    %4881 = vmatpush1.msra.mxu0 %v3542
    %4882 = vmatprep.subr.mxu0 %v3579
    %4883 = vmatpush1.msra.mxu0 %v3578
    %4884 = vmatprep.subr.mxu0 %v3615
    %4885 = vmatpush1.msra.mxu0 %v3614
    %4886 = vmatprep.subr.mxu0 %v3651
    %4887 = vmatpush1.msra.mxu0 %v3650
    %4888 = vmatprep.subr.mxu0 %v3687
    %4889 = vmatpush1.msra.mxu0 %v3686
    %4890 = vmatprep.subr.mxu0 %v3723
    %4891 = vmatpush1.msra.mxu0 %v3722
    %4892 = vmatprep.subr.mxu0 %v3759
    %4893 = vmatpush1.msra.mxu0 %v3758
    %4894 = vmatprep.subr.mxu0 %v3795
    %4895 = vmatpush1.msra.mxu0 %v3794
    %4896 = vmatprep.subr.mxu0 %v3831
    %4897 = vmatpush1.msra.mxu0 %v3830
    %4898 = vmatprep.subr.mxu0 %v3867
    %4899 = vmatpush1.msra.mxu0 %v3866
    %4900 = vmatprep.subr.mxu0 0.0
    %4901 = vmatpush1.msra.mxu0 0.0
    %4902 = vmatprep.subr.mxu0 0.0
    %4903 = vmatpush1.msra.mxu0 0.0
    %4904 = vmatprep.subr.mxu0 0.0
    %4905 = vmatpush1.msra.mxu0 0.0
    %4906 = vmatprep.subr.mxu0 0.0
    %4907 = vmatpush1.msra.mxu0 0.0
    %4908 = vmatprep.subr.mxu0 0.0
    %4909 = vmatpush1.msra.mxu0 0.0
    %4910 = vmatprep.subr.mxu0 0.0
    %4911 = vmatpush1.msra.mxu0 0.0
    %4912 = vmatprep.subr.mxu0 0.0
    %4913 = vmatpush1.msra.mxu0 0.0
    %4914 = vmatprep.subr.mxu0 0.0
    %4915 = vmatpush1.msra.mxu0 0.0
    %4916 = vmatprep.subr.mxu0 0.0
    %4917 = vmatpush1.msra.mxu0 0.0
    %4918 = vmatprep.subr.mxu0 0.0
    %4919 = vmatpush1.msra.mxu0 0.0
    %4920 = vmatprep.subr.mxu0 0.0
    %4921 = vmatpush1.msra.mxu0 0.0
    %4922 = vmatprep.subr.mxu0 0.0
    %4923 = vmatpush1.msra.mxu0 0.0
    %4924 = vmatprep.subr.mxu0 0.0
    %4925 = vmatpush1.msra.mxu0 0.0
    %4926 = vmatprep.subr.mxu0 0.0
    %4927 = vmatpush1.msra.mxu0 0.0
    %4928 = vmatprep.subr.mxu0 0.0
    %4929 = vmatpush1.msra.mxu0 0.0
    %4930 = vmatprep.subr.mxu0 0.0
    %4931 = vmatpush1.msra.mxu0 0.0
    %4932 = vmatprep.mubr.f32.mxu0 0.0
    %4933 = vmatmul.mubr.f32.gmra.mrb[0].mxu0 %v3006
    %v4934 = vpop.f32.mrb[0].mxu0
    %v4935 = vadd.f32 0.0, %v4934
    %v4936 = vpop.f32.mrb[0].mxu0
    %v4937 = vadd.f32 0.0, %v4936
    %4938 = vdwg.mxu0
    %4939 = vmatprep.subr.mxu0 %v3329
    %4940 = vmatpush1.msra.mxu0 %v3328
    %4941 = vmatprep.subr.mxu0 %v3365
    %4942 = vmatpush1.msra.mxu0 %v3364
    %4943 = vmatprep.subr.mxu0 %v3401
    %4944 = vmatpush1.msra.mxu0 %v3400
    %4945 = vmatprep.subr.mxu0 %v3437
    %4946 = vmatpush1.msra.mxu0 %v3436
    %4947 = vmatprep.subr.mxu0 %v3473
    %4948 = vmatpush1.msra.mxu0 %v3472
    %4949 = vmatprep.subr.mxu0 %v3509
    %4950 = vmatpush1.msra.mxu0 %v3508
    %4951 = vmatprep.subr.mxu0 %v3545
    %4952 = vmatpush1.msra.mxu0 %v3544
    %4953 = vmatprep.subr.mxu0 %v3581
    %4954 = vmatpush1.msra.mxu0 %v3580
    %4955 = vmatprep.subr.mxu0 %v3617
    %4956 = vmatpush1.msra.mxu0 %v3616
    %4957 = vmatprep.subr.mxu0 %v3653
    %4958 = vmatpush1.msra.mxu0 %v3652
    %4959 = vmatprep.subr.mxu0 %v3689
    %4960 = vmatpush1.msra.mxu0 %v3688
    %4961 = vmatprep.subr.mxu0 %v3725
    %4962 = vmatpush1.msra.mxu0 %v3724
    %4963 = vmatprep.subr.mxu0 %v3761
    %4964 = vmatpush1.msra.mxu0 %v3760
    %4965 = vmatprep.subr.mxu0 %v3797
    %4966 = vmatpush1.msra.mxu0 %v3796
    %4967 = vmatprep.subr.mxu0 %v3833
    %4968 = vmatpush1.msra.mxu0 %v3832
    %4969 = vmatprep.subr.mxu0 %v3869
    %4970 = vmatpush1.msra.mxu0 %v3868
    %4971 = vmatprep.subr.mxu0 0.0
    %4972 = vmatpush1.msra.mxu0 0.0
    %4973 = vmatprep.subr.mxu0 0.0
    %4974 = vmatpush1.msra.mxu0 0.0
    %4975 = vmatprep.subr.mxu0 0.0
    %4976 = vmatpush1.msra.mxu0 0.0
    %4977 = vmatprep.subr.mxu0 0.0
    %4978 = vmatpush1.msra.mxu0 0.0
    %4979 = vmatprep.subr.mxu0 0.0
    %4980 = vmatpush1.msra.mxu0 0.0
    %4981 = vmatprep.subr.mxu0 0.0
    %4982 = vmatpush1.msra.mxu0 0.0
    %4983 = vmatprep.subr.mxu0 0.0
    %4984 = vmatpush1.msra.mxu0 0.0
    %4985 = vmatprep.subr.mxu0 0.0
    %4986 = vmatpush1.msra.mxu0 0.0
    %4987 = vmatprep.subr.mxu0 0.0
    %4988 = vmatpush1.msra.mxu0 0.0
    %4989 = vmatprep.subr.mxu0 0.0
    %4990 = vmatpush1.msra.mxu0 0.0
    %4991 = vmatprep.subr.mxu0 0.0
    %4992 = vmatpush1.msra.mxu0 0.0
    %4993 = vmatprep.subr.mxu0 0.0
    %4994 = vmatpush1.msra.mxu0 0.0
    %4995 = vmatprep.subr.mxu0 0.0
    %4996 = vmatpush1.msra.mxu0 0.0
    %4997 = vmatprep.subr.mxu0 0.0
    %4998 = vmatpush1.msra.mxu0 0.0
    %4999 = vmatprep.subr.mxu0 0.0
    %5000 = vmatpush1.msra.mxu0 0.0
    %5001 = vmatprep.subr.mxu0 0.0
    %5002 = vmatpush1.msra.mxu0 0.0
    %5003 = vmatprep.mubr.f32.mxu0 0.0
    %5004 = vmatmul.mubr.f32.gmra.mrb[0].mxu0 %v3006
    %v5005 = vpop.f32.mrb[0].mxu0
    %v5006 = vadd.f32 0.0, %v5005
    %v5007 = vpop.f32.mrb[0].mxu0
    %v5008 = vadd.f32 0.0, %v5007
    %5009 = vdwg.mxu0
    %5010 = vmatprep.subr.mxu0 %v3331
    %5011 = vmatpush1.msra.mxu0 %v3330
    %5012 = vmatprep.subr.mxu0 %v3367
    %5013 = vmatpush1.msra.mxu0 %v3366
    %5014 = vmatprep.subr.mxu0 %v3403
    %5015 = vmatpush1.msra.mxu0 %v3402
    %5016 = vmatprep.subr.mxu0 %v3439
    %5017 = vmatpush1.msra.mxu0 %v3438
    %5018 = vmatprep.subr.mxu0 %v3475
    %5019 = vmatpush1.msra.mxu0 %v3474
    %5020 = vmatprep.subr.mxu0 %v3511
    %5021 = vmatpush1.msra.mxu0 %v3510
    %5022 = vmatprep.subr.mxu0 %v3547
    %5023 = vmatpush1.msra.mxu0 %v3546
    %5024 = vmatprep.subr.mxu0 %v3583
    %5025 = vmatpush1.msra.mxu0 %v3582
    %5026 = vmatprep.subr.mxu0 %v3619
    %5027 = vmatpush1.msra.mxu0 %v3618
    %5028 = vmatprep.subr.mxu0 %v3655
    %5029 = vmatpush1.msra.mxu0 %v3654
    %5030 = vmatprep.subr.mxu0 %v3691
    %5031 = vmatpush1.msra.mxu0 %v3690
    %5032 = vmatprep.subr.mxu0 %v3727
    %5033 = vmatpush1.msra.mxu0 %v3726
    %5034 = vmatprep.subr.mxu0 %v3763
    %5035 = vmatpush1.msra.mxu0 %v3762
    %5036 = vmatprep.subr.mxu0 %v3799
    %5037 = vmatpush1.msra.mxu0 %v3798
    %5038 = vmatprep.subr.mxu0 %v3835
    %5039 = vmatpush1.msra.mxu0 %v3834
    %5040 = vmatprep.subr.mxu0 %v3871
    %5041 = vmatpush1.msra.mxu0 %v3870
    %5042 = vmatprep.subr.mxu0 0.0
    %5043 = vmatpush1.msra.mxu0 0.0
    %5044 = vmatprep.subr.mxu0 0.0
    %5045 = vmatpush1.msra.mxu0 0.0
    %5046 = vmatprep.subr.mxu0 0.0
    %5047 = vmatpush1.msra.mxu0 0.0
    %5048 = vmatprep.subr.mxu0 0.0
    %5049 = vmatpush1.msra.mxu0 0.0
    %5050 = vmatprep.subr.mxu0 0.0
    %5051 = vmatpush1.msra.mxu0 0.0
    %5052 = vmatprep.subr.mxu0 0.0
    %5053 = vmatpush1.msra.mxu0 0.0
    %5054 = vmatprep.subr.mxu0 0.0
    %5055 = vmatpush1.msra.mxu0 0.0
    %5056 = vmatprep.subr.mxu0 0.0
    %5057 = vmatpush1.msra.mxu0 0.0
    %5058 = vmatprep.subr.mxu0 0.0
    %5059 = vmatpush1.msra.mxu0 0.0
    %5060 = vmatprep.subr.mxu0 0.0
    %5061 = vmatpush1.msra.mxu0 0.0
    %5062 = vmatprep.subr.mxu0 0.0
    %5063 = vmatpush1.msra.mxu0 0.0
    %5064 = vmatprep.subr.mxu0 0.0
    %5065 = vmatpush1.msra.mxu0 0.0
    %5066 = vmatprep.subr.mxu0 0.0
    %5067 = vmatpush1.msra.mxu0 0.0
    %5068 = vmatprep.subr.mxu0 0.0
    %5069 = vmatpush1.msra.mxu0 0.0
    %5070 = vmatprep.subr.mxu0 0.0
    %5071 = vmatpush1.msra.mxu0 0.0
    %5072 = vmatprep.subr.mxu0 0.0
    %5073 = vmatpush1.msra.mxu0 0.0
    %5074 = vmatprep.mubr.f32.mxu0 0.0
    %5075 = vmatmul.mubr.f32.gmra.mrb[0].mxu0 %v3006
    %v5076 = vpop.f32.mrb[0].mxu0
    %v5077 = vadd.f32 0.0, %v5076
    %v5078 = vpop.f32.mrb[0].mxu0
    %v5079 = vadd.f32 0.0, %v5078
    %5080 = vdwg.mxu0
    %5081 = vmatprep.subr.mxu0 %v3333
    %5082 = vmatpush1.msra.mxu0 %v3332
    %5083 = vmatprep.subr.mxu0 %v3369
    %5084 = vmatpush1.msra.mxu0 %v3368
    %5085 = vmatprep.subr.mxu0 %v3405
    %5086 = vmatpush1.msra.mxu0 %v3404
    %5087 = vmatprep.subr.mxu0 %v3441
    %5088 = vmatpush1.msra.mxu0 %v3440
    %5089 = vmatprep.subr.mxu0 %v3477
    %5090 = vmatpush1.msra.mxu0 %v3476
    %5091 = vmatprep.subr.mxu0 %v3513
    %5092 = vmatpush1.msra.mxu0 %v3512
    %5093 = vmatprep.subr.mxu0 %v3549
    %5094 = vmatpush1.msra.mxu0 %v3548
    %5095 = vmatprep.subr.mxu0 %v3585
    %5096 = vmatpush1.msra.mxu0 %v3584
    %5097 = vmatprep.subr.mxu0 %v3621
    %5098 = vmatpush1.msra.mxu0 %v3620
    %5099 = vmatprep.subr.mxu0 %v3657
    %5100 = vmatpush1.msra.mxu0 %v3656
    %5101 = vmatprep.subr.mxu0 %v3693
    %5102 = vmatpush1.msra.mxu0 %v3692
    %5103 = vmatprep.subr.mxu0 %v3729
    %5104 = vmatpush1.msra.mxu0 %v3728
    %5105 = vmatprep.subr.mxu0 %v3765
    %5106 = vmatpush1.msra.mxu0 %v3764
    %5107 = vmatprep.subr.mxu0 %v3801
    %5108 = vmatpush1.msra.mxu0 %v3800
    %5109 = vmatprep.subr.mxu0 %v3837
    %5110 = vmatpush1.msra.mxu0 %v3836
    %5111 = vmatprep.subr.mxu0 %v3873
    %5112 = vmatpush1.msra.mxu0 %v3872
    %5113 = vmatprep.subr.mxu0 0.0
    %5114 = vmatpush1.msra.mxu0 0.0
    %5115 = vmatprep.subr.mxu0 0.0
    %5116 = vmatpush1.msra.mxu0 0.0
    %5117 = vmatprep.subr.mxu0 0.0
    %5118 = vmatpush1.msra.mxu0 0.0
    %5119 = vmatprep.subr.mxu0 0.0
    %5120 = vmatpush1.msra.mxu0 0.0
    %5121 = vmatprep.subr.mxu0 0.0
    %5122 = vmatpush1.msra.mxu0 0.0
    %5123 = vmatprep.subr.mxu0 0.0
    %5124 = vmatpush1.msra.mxu0 0.0
    %5125 = vmatprep.subr.mxu0 0.0
    %5126 = vmatpush1.msra.mxu0 0.0
    %5127 = vmatprep.subr.mxu0 0.0
    %5128 = vmatpush1.msra.mxu0 0.0
    %5129 = vmatprep.subr.mxu0 0.0
    %5130 = vmatpush1.msra.mxu0 0.0
    %5131 = vmatprep.subr.mxu0 0.0
    %5132 = vmatpush1.msra.mxu0 0.0
    %5133 = vmatprep.subr.mxu0 0.0
    %5134 = vmatpush1.msra.mxu0 0.0
    %5135 = vmatprep.subr.mxu0 0.0
    %5136 = vmatpush1.msra.mxu0 0.0
    %5137 = vmatprep.subr.mxu0 0.0
    %5138 = vmatpush1.msra.mxu0 0.0
    %5139 = vmatprep.subr.mxu0 0.0
    %5140 = vmatpush1.msra.mxu0 0.0
    %5141 = vmatprep.subr.mxu0 0.0
    %5142 = vmatpush1.msra.mxu0 0.0
    %5143 = vmatprep.subr.mxu0 0.0
    %5144 = vmatpush1.msra.mxu0 0.0
    %5145 = vmatprep.mubr.f32.mxu0 0.0
    %5146 = vmatmul.mubr.f32.gmra.mrb[0].mxu0 %v3006
    %v5147 = vpop.f32.mrb[0].mxu0
    %v5148 = vadd.f32 0.0, %v5147
    %v5149 = vpop.f32.mrb[0].mxu0
    %v5150 = vadd.f32 0.0, %v5149
    %5151 = vdwg.mxu0
    %5152 = vset.pattern.permute.xlu0 9
    %5153 = vperm.xlu0 %5152, %v378
    %v5154 = vpop.permute.xlu0 %5153
    %5157 = vset.pattern.permute.xlu0 9
    %5158 = vperm.xlu0 %5157, %v379
    %v5159 = vpop.permute.xlu0 %5158
    %v5162 = vsel %vm2393, %v376, 0
    %v5165 = vsel %vm2393, %v377, 0
    %5167 = vmatprep.subr.mxu0 %v3943
    %5168 = vmatpush1.msra.mxu0 %v3941
    %5169 = vmatprep.subr.mxu0 %v4085
    %5170 = vmatpush1.msra.mxu0 %v4083
    %5171 = vmatprep.subr.mxu0 %v4227
    %5172 = vmatpush1.msra.mxu0 %v4225
    %5173 = vmatprep.subr.mxu0 %v4369
    %5174 = vmatpush1.msra.mxu0 %v4367
    %5175 = vmatprep.subr.mxu0 %v4511
    %5176 = vmatpush1.msra.mxu0 %v4509
    %5177 = vmatprep.subr.mxu0 %v4653
    %5178 = vmatpush1.msra.mxu0 %v4651
    %5179 = vmatprep.subr.mxu0 %v4795
    %5180 = vmatpush1.msra.mxu0 %v4793
    %5181 = vmatprep.subr.mxu0 %v4937
    %5182 = vmatpush1.msra.mxu0 %v4935
    %5183 = vmatprep.subr.mxu0 %v5079
    %5184 = vmatpush1.msra.mxu0 %v5077
    %5185 = vmatprep.subr.mxu0 0.0
    %5186 = vmatpush1.msra.mxu0 0.0
    %5187 = vmatprep.subr.mxu0 0.0
    %5188 = vmatpush1.msra.mxu0 0.0
    %5189 = vmatprep.subr.mxu0 0.0
    %5190 = vmatpush1.msra.mxu0 0.0
    %5191 = vmatprep.subr.mxu0 0.0
    %5192 = vmatpush1.msra.mxu0 0.0
    %5193 = vmatprep.subr.mxu0 0.0
    %5194 = vmatpush1.msra.mxu0 0.0
    %5195 = vmatprep.subr.mxu0 0.0
    %5196 = vmatpush1.msra.mxu0 0.0
    %5197 = vmatprep.subr.mxu0 0.0
    %5198 = vmatpush1.msra.mxu0 0.0
    %5199 = vmatprep.subr.mxu0 0.0
    %5200 = vmatpush1.msra.mxu0 0.0
    %5201 = vmatprep.subr.mxu0 0.0
    %5202 = vmatpush1.msra.mxu0 0.0
    %5203 = vmatprep.subr.mxu0 0.0
    %5204 = vmatpush1.msra.mxu0 0.0
    %5205 = vmatprep.subr.mxu0 0.0
    %5206 = vmatpush1.msra.mxu0 0.0
    %5207 = vmatprep.subr.mxu0 0.0
    %5208 = vmatpush1.msra.mxu0 0.0
    %5209 = vmatprep.subr.mxu0 0.0
    %5210 = vmatpush1.msra.mxu0 0.0
    %5211 = vmatprep.subr.mxu0 0.0
    %5212 = vmatpush1.msra.mxu0 0.0
    %5213 = vmatprep.subr.mxu0 0.0
    %5214 = vmatpush1.msra.mxu0 0.0
    %5215 = vmatprep.subr.mxu0 0.0
    %5216 = vmatpush1.msra.mxu0 0.0
    %5217 = vmatprep.subr.mxu0 0.0
    %5218 = vmatpush1.msra.mxu0 0.0
    %5219 = vmatprep.subr.mxu0 0.0
    %5220 = vmatpush1.msra.mxu0 0.0
    %5221 = vmatprep.subr.mxu0 0.0
    %5222 = vmatpush1.msra.mxu0 0.0
    %5223 = vmatprep.subr.mxu0 0.0
    %5224 = vmatpush1.msra.mxu0 0.0
    %5225 = vmatprep.subr.mxu0 0.0
    %5226 = vmatpush1.msra.mxu0 0.0
    %5227 = vmatprep.subr.mxu0 0.0
    %5228 = vmatpush1.msra.mxu0 0.0
    %5229 = vmatprep.subr.mxu0 0.0
    %5230 = vmatpush1.msra.mxu0 0.0
    %5231 = vmatprep.mubr.f32.mxu0 0.0
    %5232 = vmatmul.mubr.f32.gmra.mrb[0].mxu0 %v5162
    %v5233 = vpop.f32.mrb[0].mxu0
    %v5234 = vadd.f32 %v5154, %v5233
    %v5235 = vpop.f32.mrb[0].mxu0
    %v5236 = vadd.f32 %v5154, %v5235
    %5237 = vmatprep.mubr.f32.mxu0 0.0
    %5238 = vmatmul.mubr.f32.gmra.mrb[0].mxu0 %v5165
    %v5239 = vpop.f32.mrb[0].mxu0
    %v5240 = vadd.f32 %v5159, %v5239
    %v5241 = vpop.f32.mrb[0].mxu0
    %v5242 = vadd.f32 %v5159, %v5241
    %5243 = vdwg.mxu0
    %5244 = vmatprep.subr.mxu0 %v4014
    %5245 = vmatpush1.msra.mxu0 %v4012
    %5246 = vmatprep.subr.mxu0 %v4156
    %5247 = vmatpush1.msra.mxu0 %v4154
    %5248 = vmatprep.subr.mxu0 %v4298
    %5249 = vmatpush1.msra.mxu0 %v4296
    %5250 = vmatprep.subr.mxu0 %v4440
    %5251 = vmatpush1.msra.mxu0 %v4438
    %5252 = vmatprep.subr.mxu0 %v4582
    %5253 = vmatpush1.msra.mxu0 %v4580
    %5254 = vmatprep.subr.mxu0 %v4724
    %5255 = vmatpush1.msra.mxu0 %v4722
    %5256 = vmatprep.subr.mxu0 %v4866
    %5257 = vmatpush1.msra.mxu0 %v4864
    %5258 = vmatprep.subr.mxu0 %v5008
    %5259 = vmatpush1.msra.mxu0 %v5006
    %5260 = vmatprep.subr.mxu0 %v5150
    %5261 = vmatpush1.msra.mxu0 %v5148
    %5262 = vmatprep.subr.mxu0 0.0
    %5263 = vmatpush1.msra.mxu0 0.0
    %5264 = vmatprep.subr.mxu0 0.0
    %5265 = vmatpush1.msra.mxu0 0.0
    %5266 = vmatprep.subr.mxu0 0.0
    %5267 = vmatpush1.msra.mxu0 0.0
    %5268 = vmatprep.subr.mxu0 0.0
    %5269 = vmatpush1.msra.mxu0 0.0
    %5270 = vmatprep.subr.mxu0 0.0
    %5271 = vmatpush1.msra.mxu0 0.0
    %5272 = vmatprep.subr.mxu0 0.0
    %5273 = vmatpush1.msra.mxu0 0.0
    %5274 = vmatprep.subr.mxu0 0.0
    %5275 = vmatpush1.msra.mxu0 0.0
    %5276 = vmatprep.subr.mxu0 0.0
    %5277 = vmatpush1.msra.mxu0 0.0
    %5278 = vmatprep.subr.mxu0 0.0
    %5279 = vmatpush1.msra.mxu0 0.0
    %5280 = vmatprep.subr.mxu0 0.0
    %5281 = vmatpush1.msra.mxu0 0.0
    %5282 = vmatprep.subr.mxu0 0.0
    %5283 = vmatpush1.msra.mxu0 0.0
    %5284 = vmatprep.subr.mxu0 0.0
    %5285 = vmatpush1.msra.mxu0 0.0
    %5286 = vmatprep.subr.mxu0 0.0
    %5287 = vmatpush1.msra.mxu0 0.0
    %5288 = vmatprep.subr.mxu0 0.0
    %5289 = vmatpush1.msra.mxu0 0.0
    %5290 = vmatprep.subr.mxu0 0.0
    %5291 = vmatpush1.msra.mxu0 0.0
    %5292 = vmatprep.subr.mxu0 0.0
    %5293 = vmatpush1.msra.mxu0 0.0
    %5294 = vmatprep.subr.mxu0 0.0
    %5295 = vmatpush1.msra.mxu0 0.0
    %5296 = vmatprep.subr.mxu0 0.0
    %5297 = vmatpush1.msra.mxu0 0.0
    %5298 = vmatprep.subr.mxu0 0.0
    %5299 = vmatpush1.msra.mxu0 0.0
    %5300 = vmatprep.subr.mxu0 0.0
    %5301 = vmatpush1.msra.mxu0 0.0
    %5302 = vmatprep.subr.mxu0 0.0
    %5303 = vmatpush1.msra.mxu0 0.0
    %5304 = vmatprep.subr.mxu0 0.0
    %5305 = vmatpush1.msra.mxu0 0.0
    %5306 = vmatprep.subr.mxu0 0.0
    %5307 = vmatpush1.msra.mxu0 0.0
    %5308 = vmatprep.mubr.f32.mxu0 0.0
    %5309 = vmatmul.mubr.f32.gmra.mrb[0].mxu0 %v5162
    %v5310 = vpop.f32.mrb[0].mxu0
    %v5311 = vadd.f32 %v5154, %v5310
    %v5312 = vpop.f32.mrb[0].mxu0
    %v5313 = vadd.f32 %v5154, %v5312
    %5314 = vmatprep.mubr.f32.mxu0 0.0
    %5315 = vmatmul.mubr.f32.gmra.mrb[0].mxu0 %v5165
    %v5316 = vpop.f32.mrb[0].mxu0
    %v5317 = vadd.f32 %v5159, %v5316
    %v5318 = vpop.f32.mrb[0].mxu0
    %v5319 = vadd.f32 %v5159, %v5318
    %5320 = vdwg.mxu0
    %5321 = vst [vmem:[%s7] sm:$0xff] %v5234
    %5322 = vst [vmem:[%s7 + $0x8] sm:$0xff] %v5236
    %5323 = vst [vmem:[%s7 + $0x10] sm:$0xff] %v5311
    %5324 = vst [vmem:[%s7 + $0x18] sm:$0xff] %v5313
    %5325 = vst [vmem:[%s7 + $0x20] sm:$0xff] %v5240
    %5326 = vst [vmem:[%s7 + $0x28] sm:$0xff] %v5242
    %5327 = vst [vmem:[%s7 + $0x30] sm:$0xff] %v5317
    %5328 = vst [vmem:[%s7 + $0x38] sm:$0xff] %v5319
    // Predicated region
    $region67: #{autoencoder_forward.1} parent=1 // pred_check
      _
    $region68: #{autoencoder_forward.1} parent=1 // pred_check_branch
      %5330 = sbr.rel (0) target = $region70
    $region69: #{autoencoder_forward.1} parent=1 // pred_region
      _
    $region70: #{autoencoder_forward.1} parent=1 // pred_fallthru
      _
    // Predicated region
    $region71: #{autoencoder_forward.1} parent=1 // pred_check
      _
    $region72: #{autoencoder_forward.1} parent=1 // pred_check_branch
      %5332 = sbr.rel (0) target = $region74
    $region73: #{autoencoder_forward.1} parent=1 // pred_region
      _
    $region74: #{autoencoder_forward.1} parent=1 // pred_fallthru
      _
    %5333 = vsyncpa [#allocation7], 1
    %5334 = vsyncpa [#allocation9], 1
  %5335 = vsyncmov [#allocation5]
  %s5336 = vpop.sfrf %5335
  %p5337 = scmp.eq.s32.totalorder %s5336, 0
  %p5338 = pneg %p5337
  %5340 = shalt.err (%p5338)
  %s5341 = scalar_lea.sflag [#allocation5], 1
  %5342 = vsyncmov %s5341
  %s5343 = vpop.sfrf %5342
  %p5344 = scmp.eq.s32.totalorder %s5343, 0
  %p5345 = pneg %p5344
  %5347 = shalt.err (%p5345)
  %s5348 = scalar_lea.sflag [#allocation5], 2
  %5349 = vsyncmov %s5348
  %s5350 = vpop.sfrf %5349
  %p5351 = scmp.eq.s32.totalorder %s5350, 0
  %p5352 = pneg %p5351
  %5354 = shalt.err (%p5352)

</llo_original>
